<compile_context>
chip_gen: v7x
topology: tpu7x:2x2x1
jax: 0.10.0
libtpu: 0.0.40
codegen_flags: <defaults>
</compile_context>

<pallas_src>
import functools
import math

import jax
import jax.numpy as jnp
from jax.experimental import pallas as pl
from jax.experimental.pallas import tpu as pltpu

MXU_DTYPE = jnp.bfloat16          # matmul operand dtype (f32 accumulation)
GATE_DTYPE = jnp.bfloat16         # storage dtype of the streamed GRU gate slab
VMEM_LIMIT = 32 * 1024 * 1024     # scoped VMEM request, safe on v5e/v6e/v7x
LN_EPS = 1e-5


def _cparams(*sem):
    return pltpu.CompilerParams(dimension_semantics=sem,
                                vmem_limit_bytes=VMEM_LIMIT)


def _gelu(x):
    # tanh-approx GELU: transcendental work lands on the EUP slot.
    c = 0.7978845608028654  # sqrt(2/pi)
    return 0.5 * x * (1.0 + jnp.tanh(c * (x + 0.044715 * x * x * x)))


def _pick_row_tile(m, row_bytes, budget=8 << 20, cap=1024):
    """Largest multiple-of-8 row tile whose double-buffered blocks fit budget."""
    t = min(cap, max(8, budget // max(1, 2 * row_bytes)))
    t -= t % 8
    t = max(t, 8)
    return m if t >= m else t


# ----------------------------------------------------------------------------
# Kernel 1: fused matmul + bias (+ optional GELU, + optional residual add).
#           Used for conv-as-im2col and the fully-connected layer.
# ----------------------------------------------------------------------------
def _linear_kernel(*refs, activation, has_residual):
    if has_residual:
        x_ref, w_ref, b_ref, r_ref, o_ref = refs
    else:
        x_ref, w_ref, b_ref, o_ref = refs
        r_ref = None
    y = jnp.dot(x_ref[...].astype(MXU_DTYPE), w_ref[...],
                preferred_element_type=jnp.float32) + b_ref[...]
    if activation == "gelu":
        y = _gelu(y)
    if has_residual:
        y = y + r_ref[...].astype(jnp.float32)
    o_ref[...] = y.astype(o_ref.dtype)


def pallas_linear(x, w, b, activation=None, residual=None,
                  out_dtype=jnp.float32):
    # x: (M, K), w: (K, N), b: (N,), residual: (M, N) or None  ->  (M, N)
    M, K = x.shape
    N = w.shape[1]
    w = w.astype(MXU_DTYPE)
    b2 = b.reshape(1, N).astype(jnp.float32)
    has_res = residual is not None
    row_bytes = K * x.dtype.itemsize + N * jnp.dtype(out_dtype).itemsize
    if has_res:
        row_bytes += N * residual.dtype.itemsize
    tm = _pick_row_tile(M, row_bytes)
    in_specs = [pl.BlockSpec((tm, K), lambda i: (i, 0)),
                pl.BlockSpec((K, N), lambda i: (0, 0)),
                pl.BlockSpec((1, N), lambda i: (0, 0))]
    args = [x, w, b2]
    if has_res:
        in_specs.append(pl.BlockSpec((tm, N), lambda i: (i, 0)))
        args.append(residual)
    kernel = functools.partial(_linear_kernel, activation=activation,
                               has_residual=has_res)
    return pl.pallas_call(
        kernel,
        out_shape=jax.ShapeDtypeStruct((M, N), out_dtype),
        grid=(pl.cdiv(M, tm),),
        in_specs=in_specs,
        out_specs=pl.BlockSpec((tm, N), lambda i: (i, 0)),
        compiler_params=_cparams("parallel"),
    )(*args)


# ----------------------------------------------------------------------------
# Kernel 2: fused classifier MLP (Linear -> GELU -> Linear, dropout = id).
#           Row-tiled; class dim padded to 128 lanes for unmasked stores.
# ----------------------------------------------------------------------------
def _classifier_kernel(x_ref, w1_ref, b1_ref, w2_ref, b2_ref, o_ref):
    h = jnp.dot(x_ref[...].astype(MXU_DTYPE), w1_ref[...],
                preferred_element_type=jnp.float32) + b1_ref[...]
    h = _gelu(h)
    y = jnp.dot(h.astype(MXU_DTYPE), w2_ref[...],
                preferred_element_type=jnp.float32) + b2_ref[...]
    o_ref[...] = y.astype(o_ref.dtype)


def pallas_classifier(x, w1, b1, w2, b2):
    # w2/b2 are pre-padded to a lane-dense (multiple-of-128) class dim.
    M, K = x.shape
    H = w1.shape[1]
    Np = w2.shape[1]
    tm = _pick_row_tile(M, (K + H + Np) * 4)
    return pl.pallas_call(
        _classifier_kernel,
        out_shape=jax.ShapeDtypeStruct((M, Np), jnp.float32),
        grid=(pl.cdiv(M, tm),),
        in_specs=[pl.BlockSpec((tm, K), lambda i: (i, 0)),
                  pl.BlockSpec((K, H), lambda i: (0, 0)),
                  pl.BlockSpec((1, H), lambda i: (0, 0)),
                  pl.BlockSpec((H, Np), lambda i: (0, 0)),
                  pl.BlockSpec((1, Np), lambda i: (0, 0))],
        out_specs=pl.BlockSpec((tm, Np), lambda i: (i, 0)),
        compiler_params=_cparams("parallel"),
    )(x, w1.astype(MXU_DTYPE), b1.reshape(1, H).astype(jnp.float32),
      w2.astype(MXU_DTYPE), b2.reshape(1, Np).astype(jnp.float32))


# ----------------------------------------------------------------------------
# Kernel 3: fused CNN LayerNorm (over feature axis, eps=1e-5) + GELU.
#           Data is (B, F, T*C): F on sublanes, T*C lane-dense; tiled over
#           batch and lane-chunks.
# ----------------------------------------------------------------------------
def _cnn_ln_gelu_kernel(x_ref, g_ref, b_ref, o_ref, *, eps):
    x = x_ref[...].astype(jnp.float32)                     # (1, F, lane_tile)
    mu = jnp.mean(x, axis=1, keepdims=True)
    xc = x - mu
    var = jnp.mean(xc * xc, axis=1, keepdims=True)
    y = xc * jax.lax.rsqrt(var + eps) * g_ref[...] + b_ref[...]
    o_ref[...] = _gelu(y).astype(o_ref.dtype)


def cnn_layernorm_gelu(x, gamma, beta, eps=LN_EPS):
    # x: (B, F, T, C) channels-last; CNNLayerNorm normalizes over F.
    B, F, T, C = x.shape
    L = T * C
    budget = 8 << 20
    if F * L * 4 * 4 <= budget:
        lt = L
    else:
        lt = max(128, (budget // max(1, F * 16)) // 128 * 128)
        lt = min(lt, L)
    y = pl.pallas_call(
        functools.partial(_cnn_ln_gelu_kernel, eps=eps),
        out_shape=jax.ShapeDtypeStruct((B, F, L), jnp.float32),
        grid=(B, pl.cdiv(L, lt)),
        in_specs=[pl.BlockSpec((1, F, lt), lambda b, j: (b, 0, j)),
                  pl.BlockSpec((1, F, 1), lambda b, j: (0, 0, 0)),
                  pl.BlockSpec((1, F, 1), lambda b, j: (0, 0, 0))],
        out_specs=pl.BlockSpec((1, F, lt), lambda b, j: (b, 0, j)),
        compiler_params=_cparams("parallel", "parallel"),
    )(x.reshape(B, F, L), gamma.reshape(1, F, 1).astype(jnp.float32),
      beta.reshape(1, F, 1).astype(jnp.float32))
    return y.reshape(B, F, T, C)


# ----------------------------------------------------------------------------
# Conv2d (channels-last): im2col stays in XLA glue (bf16 patches), contraction
# + bias (+ residual add of the ResidualCNN block) is one fused Pallas matmul.
# ----------------------------------------------------------------------------
def conv2d_cl(x, w, b, stride, pad, residual=None):
    # x: (B, H, W, Cin) channels-last; w: (Cout, Cin, k, k) (PyTorch layout).
    B, Hh, Ww, Cin = x.shape
    Cout, _, k, _ = w.shape
    xp = jnp.pad(x, ((0, 0), (pad, pad), (pad, pad), (0, 0)))
    Ho = (Hh + 2 * pad - k) // stride + 1
    Wo = (Ww + 2 * pad - k) // stride + 1
    cols = []
    for i in range(k):
        for j in range(k):
            cols.append(xp[:, i:i + (Ho - 1) * stride + 1:stride,
                           j:j + (Wo - 1) * stride + 1:stride, :])
    patches = jnp.concatenate(cols, axis=-1).astype(MXU_DTYPE)
    patches = patches.reshape(B * Ho * Wo, k * k * Cin)
    wm = jnp.transpose(w, (2, 3, 1, 0)).reshape(k * k * Cin, Cout)
    res2d = None if residual is None else residual.reshape(B * Ho * Wo, Cout)
    y = pallas_linear(patches, wm, b, residual=res2d)
    return y.reshape(B, Ho, Wo, Cout)


# ----------------------------------------------------------------------------
# Kernel 4a: BiGRU phase 1 - row-tiled fused LayerNorm + GELU + packed input
#            projection (one (F, 6H) matmul for all gates, both directions).
# ----------------------------------------------------------------------------
def _gru_in_proj_kernel(x_ref, g_ref, be_ref, w_ref, bi_ref, o_ref, *, eps):
    x = x_ref[...].astype(jnp.float32)                     # (tm, F)
    mu = jnp.mean(x, axis=-1, keepdims=True)
    xc = x - mu
    var = jnp.mean(xc * xc, axis=-1, keepdims=True)
    xn = _gelu(xc * jax.lax.rsqrt(var + eps) * g_ref[...] + be_ref[...])
    o_ref[...] = (jnp.dot(xn.astype(MXU_DTYPE), w_ref[...],
                          preferred_element_type=jnp.float32)
                  + bi_ref[...]).astype(o_ref.dtype)


def _gru_input_gates(x2d, ln_g, ln_b, w_ih, b_ih):
    M, F = x2d.shape
    G = w_ih.shape[1]                                      # 6H (fwd r|z|n, bwd r|z|n)
    row_bytes = F * x2d.dtype.itemsize + G * jnp.dtype(GATE_DTYPE).itemsize
    tm = _pick_row_tile(M, row_bytes)
    return pl.pallas_call(
        functools.partial(_gru_in_proj_kernel, eps=LN_EPS),
        out_shape=jax.ShapeDtypeStruct((M, G), GATE_DTYPE),
        grid=(pl.cdiv(M, tm),),
        in_specs=[pl.BlockSpec((tm, F), lambda i: (i, 0)),
                  pl.BlockSpec((1, F), lambda i: (0, 0)),
                  pl.BlockSpec((1, F), lambda i: (0, 0)),
                  pl.BlockSpec((F, G), lambda i: (0, 0)),
                  pl.BlockSpec((1, G), lambda i: (0, 0))],
        out_specs=pl.BlockSpec((tm, G), lambda i: (i, 0)),
        compiler_params=_cparams("parallel"),
    )(x2d, ln_g.reshape(1, F).astype(jnp.float32),
      ln_b.reshape(1, F).astype(jnp.float32),
      w_ih.astype(MXU_DTYPE), b_ih.reshape(1, G).astype(jnp.float32))


# ----------------------------------------------------------------------------
# Kernel 4b: BiGRU phase 2 - streaming recurrence.
#   grid = (direction, time-chunk); gate chunks stream in, output chunks
#   stream out, hidden state lives in a (B, H) VMEM scratch.  Forward writes
#   out[..., :H], backward writes out[..., H:] -> no XLA concat afterwards.
# ----------------------------------------------------------------------------
def _gru_recurrence_kernel(g_ref, whh_ref, bhh_ref, o_ref, h_ref,
                           *, chunk, seq_len, hidden):
    d = pl.program_id(0)          # 0 = forward, 1 = backward (time-reversed)
    ci = pl.program_id(1)         # sequential chunk step within this direction
    nc = pl.num_programs(1)
    H = hidden

    @pl.when(ci == 0)
    def _():
        h_ref[...] = jnp.zeros_like(h_ref)

    # Actual time-chunk index selected by the BlockSpec index maps.
    t_chunk = ci * (1 - d) + (nc - 1 - ci) * d
    if seq_len % chunk == 0:
        valid = chunk
    else:
        valid = jnp.minimum(chunk, seq_len - t_chunk * chunk)

    whh = whh_ref[0]              # (H, 3H) bf16, gate order r|z|n
    bhh = bhh_ref[0]              # (1, 3H) f32

    def step(s, h):
        t = s * (1 - d) + (valid - 1 - s) * d
        g = g_ref[t].astype(jnp.float32)                       # (B, 3H)
        hg = jnp.dot(h.astype(MXU_DTYPE), whh,
                     preferred_element_type=jnp.float32) + bhh  # (B, 3H)
        r = jax.nn.sigmoid(g[:, :H] + hg[:, :H])
        z = jax.nn.sigmoid(g[:, H:2 * H] + hg[:, H:2 * H])
        n = jnp.tanh(g[:, 2 * H:] + r * hg[:, 2 * H:])
        h = (1.0 - z) * n + z * h
        o_ref[t] = h
        return h

    h_ref[...] = jax.lax.fori_loop(0, valid, step, h_ref[...])


def _pick_time_chunk(seq, batch, hidden, budget=4 << 20):
    row_bytes = batch * (3 * hidden * jnp.dtype(GATE_DTYPE).itemsize
                         + hidden * 4)
    t = max(1, budget // max(1, 2 * row_bytes))
    return min(seq, t)


def bigru_layer(x_sbf, p):
    """LayerNorm -> GELU -> bidirectional GRU (dropout = identity).

    x_sbf: (seq, batch, F) in this layer's scan layout.  Returns
    (seq, batch, 2H) with forward in [..., :H], backward in [..., H:].
    """
    S, B, F = x_sbf.shape
    H = p["w_hh"].shape[1]
    gates = _gru_input_gates(x_sbf.reshape(S * B, F), p["ln_g"], p["ln_b"],
                             p["w_ih"], p["b_ih"]).reshape(S, B, 6 * H)
    tc = _pick_time_chunk(S, B, H)
    nc = pl.cdiv(S, tc)
    chunk_of = lambda d, i: i * (1 - d) + (nc - 1 - i) * d
    kernel = functools.partial(_gru_recurrence_kernel, chunk=tc, seq_len=S,
                               hidden=H)
    return pl.pallas_call(
        kernel,
        out_shape=jax.ShapeDtypeStruct((S, B, 2 * H), jnp.float32),
        grid=(2, nc),
        in_specs=[pl.BlockSpec((tc, B, 3 * H),
                               lambda d, i: (chunk_of(d, i), 0, d)),
                  pl.BlockSpec((1, H, 3 * H), lambda d, i: (d, 0, 0)),
                  pl.BlockSpec((1, 1, 3 * H), lambda d, i: (d, 0, 0))],
        out_specs=pl.BlockSpec((tc, B, H),
                               lambda d, i: (chunk_of(d, i), 0, d)),
        scratch_shapes=[pltpu.VMEM((B, H), jnp.float32)],
        compiler_params=_cparams("parallel", "arbitrary"),
    )(gates, p["w_hh"].astype(MXU_DTYPE), p["b_hh"].astype(jnp.float32))


# ----------------------------------------------------------------------------
# Full model forward
# ----------------------------------------------------------------------------
def speech_model_forward(x, params, n_class):
    # x: (B, 1, n_feats, time) NCHW.  CNN stage runs channels-last (B, F, T, C).
    x = jnp.transpose(x, (0, 2, 3, 1))                     # (B, F, T, 1)
    x = conv2d_cl(x, params["cnn_w"], params["cnn_b"], stride=2, pad=1)
    for lp in params["rescnn"]:
        res = x
        y = cnn_layernorm_gelu(x, lp["ln1_g"], lp["ln1_b"])
        y = conv2d_cl(y, lp["cnn1_w"], lp["cnn1_b"], stride=1, pad=1)
        y = cnn_layernorm_gelu(y, lp["ln2_g"], lp["ln2_b"])
        x = conv2d_cl(y, lp["cnn2_w"], lp["cnn2_b"], stride=1, pad=1,
                      residual=res)
    B, F, T, C = x.shape
    # PyTorch: view(B, C*F, T).transpose(1, 2) -> (B, T, C*F), feature = c*F+f.
    x = jnp.transpose(x, (0, 2, 3, 1)).reshape(B, T, C * F)
    x = pallas_linear(x.reshape(B * T, C * F), params["fc_w_t"],
                      params["fc_b"]).reshape(B, T, -1)

    # BiGRU stack.  Layer 0 is batch_first=True (scan over T); later layers
    # are batch_first=False and scan over dim 0 of the incoming (B, T, 2H)
    # tensor, exactly as the PyTorch model does.
    h = bigru_layer(jnp.transpose(x, (1, 0, 2)), params["birnn"][0])  # (T,B,2H)
    h = jnp.transpose(h, (1, 0, 2))                                   # (B,T,2H)
    for lp in params["birnn"][1:]:
        h = bigru_layer(h, lp)                                        # (B,T,2H)
    d0, d1, D = h.shape
    y = pallas_classifier(h.reshape(d0 * d1, D), params["cls1_w_t"],
                          params["cls1_b"], params["cls2_w_t"],
                          params["cls2_b"])
    return y[:, :n_class].reshape(d0, d1, n_class)


# ----------------------------------------------------------------------------
# Deterministic synthetic parameters in kernel-friendly layouts:
#  * GRU input weights packed as (F, 6H): columns [fwd r|z|n, bwd r|z|n]
#  * GRU hidden weights packed as (2, H, 3H) (direction-major, gates r|z|n)
#  * classifier second layer padded to a 128-lane class dim
#  * large matmul weights stored in bf16 (MXU operand dtype)
# ----------------------------------------------------------------------------
def init_params(key, n_cnn_layers, n_rnn_layers, rnn_dim, n_class, n_feats):
    nf = n_feats // 2
    keys = iter(jax.random.split(key, 4096))

    def nrm(shape, scale, dtype=jnp.float32):
        v = scale * jax.random.normal(next(keys), shape, jnp.float32)
        return v.astype(dtype)

    params = {
        "cnn_w": nrm((32, 1, 3, 3), 1.0 / 3.0),
        "cnn_b": nrm((32,), 0.05),
        "rescnn": [],
        "birnn": [],
    }
    for _ in range(n_cnn_layers):
        params["rescnn"].append({
            "ln1_g": jnp.ones((nf,), jnp.float32),
            "ln1_b": jnp.zeros((nf,), jnp.float32),
            "cnn1_w": nrm((32, 32, 3, 3), 1.0 / math.sqrt(32 * 9)),
            "cnn1_b": nrm((32,), 0.05),
            "ln2_g": jnp.ones((nf,), jnp.float32),
            "ln2_b": jnp.zeros((nf,), jnp.float32),
            "cnn2_w": nrm((32, 32, 3, 3), 1.0 / math.sqrt(32 * 9)),
            "cnn2_b": nrm((32,), 0.05),
        })
    params["fc_w_t"] = nrm((nf * 32, rnn_dim), 1.0 / math.sqrt(nf * 32),
                           MXU_DTYPE)
    params["fc_b"] = nrm((rnn_dim,), 0.05)
    H = rnn_dim
    for i in range(n_rnn_layers):
        in_dim = rnn_dim if i == 0 else rnn_dim * 2
        params["birnn"].append({
            "ln_g": jnp.ones((in_dim,), jnp.float32),
            "ln_b": jnp.zeros((in_dim,), jnp.float32),
            "w_ih": nrm((in_dim, 6 * H), 1.0 / math.sqrt(in_dim), MXU_DTYPE),
            "b_ih": nrm((1, 6 * H), 0.05),
            "w_hh": nrm((2, H, 3 * H), 1.0 / math.sqrt(H), MXU_DTYPE),
            "b_hh": nrm((2, 1, 3 * H), 0.05),
        })
    n_class_pad = 128 * pl.cdiv(n_class, 128)
    params["cls1_w_t"] = nrm((2 * H, H), 1.0 / math.sqrt(2 * H), MXU_DTYPE)
    params["cls1_b"] = nrm((H,), 0.05)
    w2 = nrm((H, n_class), 1.0 / math.sqrt(H))
    b2 = nrm((n_class,), 0.05)
    params["cls2_w_t"] = jnp.pad(
        w2, ((0, 0), (0, n_class_pad - n_class))).astype(MXU_DTYPE)
    params["cls2_b"] = jnp.pad(b2, (0, n_class_pad - n_class))
    return params


if __name__ == "__main__":
    # SpeechRecognitionModel(n_cnn_layers=2, n_rnn_layers=2, rnn_dim=128,
    #                        n_class=10, n_feats=16, stride=2, dropout=0.1)
    # rnn_dim=128 keeps every GRU gate slice 128-lane aligned.
    B, n_feats_in, time_in = 2, 16, 16
    n_cnn_layers, n_rnn_layers, rnn_dim, n_class = 2, 2, 128, 10

    key = jax.random.PRNGKey(0)
    pkey, xkey = jax.random.split(key)
    params = init_params(pkey, n_cnn_layers, n_rnn_layers, rnn_dim, n_class,
                         n_feats_in)
    x = jax.random.normal(xkey, (B, 1, n_feats_in, time_in), jnp.float32)

    fwd = jax.jit(functools.partial(speech_model_forward, n_class=n_class))
    out = jax.block_until_ready(fwd(x, params))
    assert out.shape == (B, time_in // 2, n_class), out.shape
    assert bool(jnp.all(jnp.isfinite(out)))
    print("KERNEL_OK")
</pallas_src>

<mosaic_0001>
module attributes {stable_mosaic.version = 11 : i64} {
  func.func @_linear_kernel(%arg0: i32, %arg1: memref<128x9xbf16, #tpu.memory_space<vmem>>, %arg2: memref<9x32xbf16, #tpu.memory_space<vmem>>, %arg3: memref<1x32xf32, #tpu.memory_space<vmem>>, %arg4: memref<128x32xf32, #tpu.memory_space<vmem>>) attributes {dimension_semantics = [#tpu.dimension_semantics<parallel>], iteration_bounds = array<i64: 1>, scalar_prefetch = 0 : i64, scratch_operands = 0 : i64, tpu.core_type = #tpu.core_type<tc>, window_params = [{transform_indices = @transform_0, window_bounds = array<i64: 128, 9>}, {pipeline_mode = #tpu.pipeline_mode<synchronous>, transform_indices = @transform_1, window_bounds = array<i64: 9, 32>}, {pipeline_mode = #tpu.pipeline_mode<synchronous>, transform_indices = @transform_2, window_bounds = array<i64: 1, 32>}, {transform_indices = @transform_3, window_bounds = array<i64: 128, 32>}]} {
    %c0 = arith.constant 0 : index
    %c0_0 = arith.constant 0 : index
    %0 = vector.load %arg1[%c0, %c0_0] : memref<128x9xbf16, #tpu.memory_space<vmem>>, vector<128x9xbf16>
    %c0_1 = arith.constant 0 : index
    %c0_2 = arith.constant 0 : index
    %1 = vector.load %arg2[%c0_1, %c0_2] : memref<9x32xbf16, #tpu.memory_space<vmem>>, vector<9x32xbf16>
    %cst = arith.constant dense<0.000000e+00> : vector<128x32xf32>
    %2 = tpu.matmul %0, %1, %cst {dimension_numbers = #tpu.dot_dimension_numbers<[1], [0], [0], [1], [0, 0, 1, 1], [], []>} : vector<128x9xbf16>, vector<9x32xbf16>, vector<128x32xf32> -> vector<128x32xf32>
    %c0_3 = arith.constant 0 : index
    %c0_4 = arith.constant 0 : index
    %3 = vector.load %arg3[%c0_3, %c0_4] : memref<1x32xf32, #tpu.memory_space<vmem>>, vector<1x32xf32>
    %4 = vector.broadcast %3 : vector<1x32xf32> to vector<128x32xf32>
    %5 = arith.addf %2, %4 : vector<128x32xf32>
    %c0_5 = arith.constant 0 : index
    %c0_6 = arith.constant 0 : index
    %6 = vector.load %arg4[%c0_5, %c0_6] : memref<128x32xf32, #tpu.memory_space<vmem>>, vector<128x32xf32>
    tpu.vector_store %arg4[%c0_5, %c0_6], %5 {strides = array<i32>} : memref<128x32xf32, #tpu.memory_space<vmem>>, vector<128x32xf32>,
    return
  }
  func.func @transform_0(%arg0: i32) -> (i32, i32) {
    %c0_i32 = arith.constant 0 : i32
    %c0_i32_0 = arith.constant 0 : i32
    return %arg0, %c0_i32 : i32, i32
  }
  func.func @transform_1(%arg0: i32) -> (i32, i32) {
    %c0_i32 = arith.constant 0 : i32
    %c0_i32_0 = arith.constant 0 : i32
    %c0_i32_1 = arith.constant 0 : i32
    return %c0_i32, %c0_i32_0 : i32, i32
  }
  func.func @transform_2(%arg0: i32) -> (i32, i32) {
    %c0_i32 = arith.constant 0 : i32
    %c0_i32_0 = arith.constant 0 : i32
    %c0_i32_1 = arith.constant 0 : i32
    return %c0_i32, %c0_i32_0 : i32, i32
  }
  func.func @transform_3(%arg0: i32) -> (i32, i32) {
    %c0_i32 = arith.constant 0 : i32
    %c0_i32_0 = arith.constant 0 : i32
    return %arg0, %c0_i32 : i32, i32
  }
}

module attributes {stable_mosaic.version = 11 : i64} {
  func.func @_cnn_ln_gelu_kernel(%arg0: i32, %arg1: i32, %arg2: memref<1x8x256xf32, #tpu.memory_space<vmem>>, %arg3: memref<1x8x1xf32, #tpu.memory_space<vmem>>, %arg4: memref<1x8x1xf32, #tpu.memory_space<vmem>>, %arg5: memref<1x8x256xf32, #tpu.memory_space<vmem>>) attributes {dimension_semantics = [#tpu.dimension_semantics<parallel>, #tpu.dimension_semantics<parallel>], iteration_bounds = array<i64: 2, 1>, scalar_prefetch = 0 : i64, scratch_operands = 0 : i64, tpu.core_type = #tpu.core_type<tc>, window_params = [{transform_indices = @transform_0, window_bounds = array<i64: 1, 8, 256>}, {pipeline_mode = #tpu.pipeline_mode<synchronous>, transform_indices = @transform_1, window_bounds = array<i64: 1, 8, 1>}, {pipeline_mode = #tpu.pipeline_mode<synchronous>, transform_indices = @transform_2, window_bounds = array<i64: 1, 8, 1>}, {transform_indices = @transform_3, window_bounds = array<i64: 1, 8, 256>}]} {
    %c0 = arith.constant 0 : index
    %c0_0 = arith.constant 0 : index
    %c0_1 = arith.constant 0 : index
    %0 = vector.load %arg2[%c0, %c0_0, %c0_1] : memref<1x8x256xf32, #tpu.memory_space<vmem>>, vector<1x8x256xf32>
    %cst = arith.constant dense<0.000000e+00> : vector<1x256xf32>
    %1 = vector.multi_reduction <add>, %0, %cst [1] : vector<1x8x256xf32> to vector<1x256xf32>
    %2 = vector.shape_cast %1 : vector<1x256xf32> to vector<1x1x256xf32>
    %cst_2 = arith.constant 8.000000e+00 : f32
    %3 = vector.broadcast %cst_2 : f32 to vector<1x1x256xf32>
    %4 = arith.divf %2, %3 : vector<1x1x256xf32>
    %5 = vector.broadcast %4 : vector<1x1x256xf32> to vector<1x8x256xf32>
    %6 = arith.subf %0, %5 : vector<1x8x256xf32>
    %7 = arith.mulf %6, %6 : vector<1x8x256xf32>
    %cst_3 = arith.constant dense<0.000000e+00> : vector<1x256xf32>
    %8 = vector.multi_reduction <add>, %7, %cst_3 [1] : vector<1x8x256xf32> to vector<1x256xf32>
    %9 = vector.shape_cast %8 : vector<1x256xf32> to vector<1x1x256xf32>
    %cst_4 = arith.constant 8.000000e+00 : f32
    %10 = vector.broadcast %cst_4 : f32 to vector<1x1x256xf32>
    %11 = arith.divf %9, %10 : vector<1x1x256xf32>
    %cst_5 = arith.constant 9.99999974E-6 : f32
    %12 = vector.broadcast %cst_5 : f32 to vector<1x1x256xf32>
    %13 = arith.addf %11, %12 : vector<1x1x256xf32>
    %14 = math.rsqrt %13 : vector<1x1x256xf32>
    %15 = vector.broadcast %14 : vector<1x1x256xf32> to vector<1x8x256xf32>
    %16 = arith.mulf %6, %15 : vector<1x8x256xf32>
    %c0_6 = arith.constant 0 : index
    %c0_7 = arith.constant 0 : index
    %c0_8 = arith.constant 0 : index
    %17 = vector.load %arg3[%c0_6, %c0_7, %c0_8] : memref<1x8x1xf32, #tpu.memory_space<vmem>>, vector<1x8x1xf32>
    %18 = vector.broadcast %17 : vector<1x8x1xf32> to vector<1x8x256xf32>
    %19 = arith.mulf %16, %18 : vector<1x8x256xf32>
    %c0_9 = arith.constant 0 : index
    %c0_10 = arith.constant 0 : index
    %c0_11 = arith.constant 0 : index
    %20 = vector.load %arg4[%c0_9, %c0_10, %c0_11] : memref<1x8x1xf32, #tpu.memory_space<vmem>>, vector<1x8x1xf32>
    %21 = vector.broadcast %20 : vector<1x8x1xf32> to vector<1x8x256xf32>
    %22 = arith.addf %19, %21 : vector<1x8x256xf32>
    %cst_12 = arith.constant 5.000000e-01 : f32
    %23 = vector.broadcast %cst_12 : f32 to vector<1x8x256xf32>
    %24 = arith.mulf %23, %22 : vector<1x8x256xf32>
    %cst_13 = arith.constant 4.471500e-02 : f32
    %25 = vector.broadcast %cst_13 : f32 to vector<1x8x256xf32>
    %26 = arith.mulf %25, %22 : vector<1x8x256xf32>
    %27 = arith.mulf %26, %22 : vector<1x8x256xf32>
    %28 = arith.mulf %27, %22 : vector<1x8x256xf32>
    %29 = arith.addf %22, %28 : vector<1x8x256xf32>
    %cst_14 = arith.constant 0.797884583 : f32
    %30 = vector.broadcast %cst_14 : f32 to vector<1x8x256xf32>
    %31 = arith.mulf %30, %29 : vector<1x8x256xf32>
    %32 = math.tanh %31 : vector<1x8x256xf32>
    %cst_15 = arith.constant 1.000000e+00 : f32
    %33 = vector.broadcast %cst_15 : f32 to vector<1x8x256xf32>
    %34 = arith.addf %33, %32 : vector<1x8x256xf32>
    %35 = arith.mulf %24, %34 : vector<1x8x256xf32>
    %c0_16 = arith.constant 0 : index
    %c0_17 = arith.constant 0 : index
    %c0_18 = arith.constant 0 : index
    %36 = vector.load %arg5[%c0_16, %c0_17, %c0_18] : memref<1x8x256xf32, #tpu.memory_space<vmem>>, vector<1x8x256xf32>
    tpu.vector_store %arg5[%c0_16, %c0_17, %c0_18], %35 {strides = array<i32>} : memref<1x8x256xf32, #tpu.memory_space<vmem>>, vector<1x8x256xf32>,
    return
  }
  func.func @transform_0(%arg0: i32, %arg1: i32) -> (i32, i32, i32) {
    %c0_i32 = arith.constant 0 : i32
    %c0_i32_0 = arith.constant 0 : i32
    return %arg0, %c0_i32, %arg1 : i32, i32, i32
  }
  func.func @transform_1(%arg0: i32, %arg1: i32) -> (i32, i32, i32) {
    %c0_i32 = arith.constant 0 : i32
    %c0_i32_0 = arith.constant 0 : i32
    %c0_i32_1 = arith.constant 0 : i32
    %c0_i32_2 = arith.constant 0 : i32
    return %c0_i32, %c0_i32_0, %c0_i32_1 : i32, i32, i32
  }
  func.func @transform_2(%arg0: i32, %arg1: i32) -> (i32, i32, i32) {
    %c0_i32 = arith.constant 0 : i32
    %c0_i32_0 = arith.constant 0 : i32
    %c0_i32_1 = arith.constant 0 : i32
    %c0_i32_2 = arith.constant 0 : i32
    return %c0_i32, %c0_i32_0, %c0_i32_1 : i32, i32, i32
  }
  func.func @transform_3(%arg0: i32, %arg1: i32) -> (i32, i32, i32) {
    %c0_i32 = arith.constant 0 : i32
    %c0_i32_0 = arith.constant 0 : i32
    return %arg0, %c0_i32, %arg1 : i32, i32, i32
  }
}

module attributes {stable_mosaic.version = 11 : i64} {
  func.func @_linear_kernel(%arg0: i32, %arg1: memref<128x288xbf16, #tpu.memory_space<vmem>>, %arg2: memref<288x32xbf16, #tpu.memory_space<vmem>>, %arg3: memref<1x32xf32, #tpu.memory_space<vmem>>, %arg4: memref<128x32xf32, #tpu.memory_space<vmem>>) attributes {dimension_semantics = [#tpu.dimension_semantics<parallel>], iteration_bounds = array<i64: 1>, scalar_prefetch = 0 : i64, scratch_operands = 0 : i64, tpu.core_type = #tpu.core_type<tc>, window_params = [{transform_indices = @transform_0, window_bounds = array<i64: 128, 288>}, {pipeline_mode = #tpu.pipeline_mode<synchronous>, transform_indices = @transform_1, window_bounds = array<i64: 288, 32>}, {pipeline_mode = #tpu.pipeline_mode<synchronous>, transform_indices = @transform_2, window_bounds = array<i64: 1, 32>}, {transform_indices = @transform_3, window_bounds = array<i64: 128, 32>}]} {
    %c0 = arith.constant 0 : index
    %c0_0 = arith.constant 0 : index
    %0 = vector.load %arg1[%c0, %c0_0] : memref<128x288xbf16, #tpu.memory_space<vmem>>, vector<128x288xbf16>
    %c0_1 = arith.constant 0 : index
    %c0_2 = arith.constant 0 : index
    %1 = vector.load %arg2[%c0_1, %c0_2] : memref<288x32xbf16, #tpu.memory_space<vmem>>, vector<288x32xbf16>
    %cst = arith.constant dense<0.000000e+00> : vector<128x32xf32>
    %2 = tpu.matmul %0, %1, %cst {dimension_numbers = #tpu.dot_dimension_numbers<[1], [0], [0], [1], [0, 0, 1, 1], [], []>} : vector<128x288xbf16>, vector<288x32xbf16>, vector<128x32xf32> -> vector<128x32xf32>
    %c0_3 = arith.constant 0 : index
    %c0_4 = arith.constant 0 : index
    %3 = vector.load %arg3[%c0_3, %c0_4] : memref<1x32xf32, #tpu.memory_space<vmem>>, vector<1x32xf32>
    %4 = vector.broadcast %3 : vector<1x32xf32> to vector<128x32xf32>
    %5 = arith.addf %2, %4 : vector<128x32xf32>
    %c0_5 = arith.constant 0 : index
    %c0_6 = arith.constant 0 : index
    %6 = vector.load %arg4[%c0_5, %c0_6] : memref<128x32xf32, #tpu.memory_space<vmem>>, vector<128x32xf32>
    tpu.vector_store %arg4[%c0_5, %c0_6], %5 {strides = array<i32>} : memref<128x32xf32, #tpu.memory_space<vmem>>, vector<128x32xf32>,
    return
  }
  func.func @transform_0(%arg0: i32) -> (i32, i32) {
    %c0_i32 = arith.constant 0 : i32
    %c0_i32_0 = arith.constant 0 : i32
    return %arg0, %c0_i32 : i32, i32
  }
  func.func @transform_1(%arg0: i32) -> (i32, i32) {
    %c0_i32 = arith.constant 0 : i32
    %c0_i32_0 = arith.constant 0 : i32
    %c0_i32_1 = arith.constant 0 : i32
    return %c0_i32, %c0_i32_0 : i32, i32
  }
  func.func @transform_2(%arg0: i32) -> (i32, i32) {
    %c0_i32 = arith.constant 0 : i32
    %c0_i32_0 = arith.constant 0 : i32
    %c0_i32_1 = arith.constant 0 : i32
    return %c0_i32, %c0_i32_0 : i32, i32
  }
  func.func @transform_3(%arg0: i32) -> (i32, i32) {
    %c0_i32 = arith.constant 0 : i32
    %c0_i32_0 = arith.constant 0 : i32
    return %arg0, %c0_i32 : i32, i32
  }
}

module attributes {stable_mosaic.version = 11 : i64} {
  func.func @_linear_kernel(%arg0: i32, %arg1: memref<128x288xbf16, #tpu.memory_space<vmem>>, %arg2: memref<288x32xbf16, #tpu.memory_space<vmem>>, %arg3: memref<1x32xf32, #tpu.memory_space<vmem>>, %arg4: memref<128x32xf32, #tpu.memory_space<vmem>>, %arg5: memref<128x32xf32, #tpu.memory_space<vmem>>) attributes {dimension_semantics = [#tpu.dimension_semantics<parallel>], iteration_bounds = array<i64: 1>, scalar_prefetch = 0 : i64, scratch_operands = 0 : i64, tpu.core_type = #tpu.core_type<tc>, window_params = [{transform_indices = @transform_0, window_bounds = array<i64: 128, 288>}, {pipeline_mode = #tpu.pipeline_mode<synchronous>, transform_indices = @transform_1, window_bounds = array<i64: 288, 32>}, {pipeline_mode = #tpu.pipeline_mode<synchronous>, transform_indices = @transform_2, window_bounds = array<i64: 1, 32>}, {transform_indices = @transform_3, window_bounds = array<i64: 128, 32>}, {transform_indices = @transform_4, window_bounds = array<i64: 128, 32>}]} {
    %c0 = arith.constant 0 : index
    %c0_0 = arith.constant 0 : index
    %0 = vector.load %arg1[%c0, %c0_0] : memref<128x288xbf16, #tpu.memory_space<vmem>>, vector<128x288xbf16>
    %c0_1 = arith.constant 0 : index
    %c0_2 = arith.constant 0 : index
    %1 = vector.load %arg2[%c0_1, %c0_2] : memref<288x32xbf16, #tpu.memory_space<vmem>>, vector<288x32xbf16>
    %cst = arith.constant dense<0.000000e+00> : vector<128x32xf32>
    %2 = tpu.matmul %0, %1, %cst {dimension_numbers = #tpu.dot_dimension_numbers<[1], [0], [0], [1], [0, 0, 1, 1], [], []>} : vector<128x288xbf16>, vector<288x32xbf16>, vector<128x32xf32> -> vector<128x32xf32>
    %c0_3 = arith.constant 0 : index
    %c0_4 = arith.constant 0 : index
    %3 = vector.load %arg3[%c0_3, %c0_4] : memref<1x32xf32, #tpu.memory_space<vmem>>, vector<1x32xf32>
    %4 = vector.broadcast %3 : vector<1x32xf32> to vector<128x32xf32>
    %5 = arith.addf %2, %4 : vector<128x32xf32>
    %c0_5 = arith.constant 0 : index
    %c0_6 = arith.constant 0 : index
    %6 = vector.load %arg4[%c0_5, %c0_6] : memref<128x32xf32, #tpu.memory_space<vmem>>, vector<128x32xf32>
    %7 = arith.addf %5, %6 : vector<128x32xf32>
    %c0_7 = arith.constant 0 : index
    %c0_8 = arith.constant 0 : index
    %8 = vector.load %arg5[%c0_7, %c0_8] : memref<128x32xf32, #tpu.memory_space<vmem>>, vector<128x32xf32>
    tpu.vector_store %arg5[%c0_7, %c0_8], %7 {strides = array<i32>} : memref<128x32xf32, #tpu.memory_space<vmem>>, vector<128x32xf32>,
    return
  }
  func.func @transform_0(%arg0: i32) -> (i32, i32) {
    %c0_i32 = arith.constant 0 : i32
    %c0_i32_0 = arith.constant 0 : i32
    return %arg0, %c0_i32 : i32, i32
  }
  func.func @transform_1(%arg0: i32) -> (i32, i32) {
    %c0_i32 = arith.constant 0 : i32
    %c0_i32_0 = arith.constant 0 : i32
    %c0_i32_1 = arith.constant 0 : i32
    return %c0_i32, %c0_i32_0 : i32, i32
  }
  func.func @transform_2(%arg0: i32) -> (i32, i32) {
    %c0_i32 = arith.constant 0 : i32
    %c0_i32_0 = arith.constant 0 : i32
    %c0_i32_1 = arith.constant 0 : i32
    return %c0_i32, %c0_i32_0 : i32, i32
  }
  func.func @transform_3(%arg0: i32) -> (i32, i32) {
    %c0_i32 = arith.constant 0 : i32
    %c0_i32_0 = arith.constant 0 : i32
    return %arg0, %c0_i32 : i32, i32
  }
  func.func @transform_4(%arg0: i32) -> (i32, i32) {
    %c0_i32 = arith.constant 0 : i32
    %c0_i32_0 = arith.constant 0 : i32
    return %arg0, %c0_i32 : i32, i32
  }
}

module attributes {stable_mosaic.version = 11 : i64} {
  func.func @_linear_kernel(%arg0: i32, %arg1: memref<16x256xf32, #tpu.memory_space<vmem>>, %arg2: memref<256x128xbf16, #tpu.memory_space<vmem>>, %arg3: memref<1x128xf32, #tpu.memory_space<vmem>>, %arg4: memref<16x128xf32, #tpu.memory_space<vmem>>) attributes {dimension_semantics = [#tpu.dimension_semantics<parallel>], iteration_bounds = array<i64: 1>, scalar_prefetch = 0 : i64, scratch_operands = 0 : i64, tpu.core_type = #tpu.core_type<tc>, window_params = [{transform_indices = @transform_0, window_bounds = array<i64: 16, 256>}, {pipeline_mode = #tpu.pipeline_mode<synchronous>, transform_indices = @transform_1, window_bounds = array<i64: 256, 128>}, {pipeline_mode = #tpu.pipeline_mode<synchronous>, transform_indices = @transform_2, window_bounds = array<i64: 1, 128>}, {transform_indices = @transform_3, window_bounds = array<i64: 16, 128>}]} {
    %c0 = arith.constant 0 : index
    %c0_0 = arith.constant 0 : index
    %0 = vector.load %arg1[%c0, %c0_0] : memref<16x256xf32, #tpu.memory_space<vmem>>, vector<16x256xf32>
    %1 = arith.truncf %0 : vector<16x256xf32> to vector<16x256xbf16>
    %c0_1 = arith.constant 0 : index
    %c0_2 = arith.constant 0 : index
    %2 = vector.load %arg2[%c0_1, %c0_2] : memref<256x128xbf16, #tpu.memory_space<vmem>>, vector<256x128xbf16>
    %cst = arith.constant dense<0.000000e+00> : vector<16x128xf32>
    %3 = tpu.matmul %1, %2, %cst {dimension_numbers = #tpu.dot_dimension_numbers<[1], [0], [0], [1], [0, 0, 1, 1], [], []>} : vector<16x256xbf16>, vector<256x128xbf16>, vector<16x128xf32> -> vector<16x128xf32>
    %c0_3 = arith.constant 0 : index
    %c0_4 = arith.constant 0 : index
    %4 = vector.load %arg3[%c0_3, %c0_4] : memref<1x128xf32, #tpu.memory_space<vmem>>, vector<1x128xf32>
    %5 = vector.broadcast %4 : vector<1x128xf32> to vector<16x128xf32>
    %6 = arith.addf %3, %5 : vector<16x128xf32>
    %c0_5 = arith.constant 0 : index
    %c0_6 = arith.constant 0 : index
    %7 = vector.load %arg4[%c0_5, %c0_6] : memref<16x128xf32, #tpu.memory_space<vmem>>, vector<16x128xf32>
    tpu.vector_store %arg4[%c0_5, %c0_6], %6 {strides = array<i32>} : memref<16x128xf32, #tpu.memory_space<vmem>>, vector<16x128xf32>,
    return
  }
  func.func @transform_0(%arg0: i32) -> (i32, i32) {
    %c0_i32 = arith.constant 0 : i32
    %c0_i32_0 = arith.constant 0 : i32
    return %arg0, %c0_i32 : i32, i32
  }
  func.func @transform_1(%arg0: i32) -> (i32, i32) {
    %c0_i32 = arith.constant 0 : i32
    %c0_i32_0 = arith.constant 0 : i32
    %c0_i32_1 = arith.constant 0 : i32
    return %c0_i32, %c0_i32_0 : i32, i32
  }
  func.func @transform_2(%arg0: i32) -> (i32, i32) {
    %c0_i32 = arith.constant 0 : i32
    %c0_i32_0 = arith.constant 0 : i32
    %c0_i32_1 = arith.constant 0 : i32
    return %c0_i32, %c0_i32_0 : i32, i32
  }
  func.func @transform_3(%arg0: i32) -> (i32, i32) {
    %c0_i32 = arith.constant 0 : i32
    %c0_i32_0 = arith.constant 0 : i32
    return %arg0, %c0_i32 : i32, i32
  }
}

module attributes {stable_mosaic.version = 11 : i64} {
  func.func @_gru_in_proj_kernel(%arg0: i32, %arg1: memref<16x128xf32, #tpu.memory_space<vmem>>, %arg2: memref<1x128xf32, #tpu.memory_space<vmem>>, %arg3: memref<1x128xf32, #tpu.memory_space<vmem>>, %arg4: memref<128x768xbf16, #tpu.memory_space<vmem>>, %arg5: memref<1x768xf32, #tpu.memory_space<vmem>>, %arg6: memref<16x768xbf16, #tpu.memory_space<vmem>>) attributes {dimension_semantics = [#tpu.dimension_semantics<parallel>], iteration_bounds = array<i64: 1>, scalar_prefetch = 0 : i64, scratch_operands = 0 : i64, tpu.core_type = #tpu.core_type<tc>, window_params = [{transform_indices = @transform_0, window_bounds = array<i64: 16, 128>}, {pipeline_mode = #tpu.pipeline_mode<synchronous>, transform_indices = @transform_1, window_bounds = array<i64: 1, 128>}, {pipeline_mode = #tpu.pipeline_mode<synchronous>, transform_indices = @transform_2, window_bounds = array<i64: 1, 128>}, {pipeline_mode = #tpu.pipeline_mode<synchronous>, transform_indices = @transform_3, window_bounds = array<i64: 128, 768>}, {pipeline_mode = #tpu.pipeline_mode<synchronous>, transform_indices = @transform_4, window_bounds = array<i64: 1, 768>}, {transform_indices = @transform_5, window_bounds = array<i64: 16, 768>}]} {
    %c0 = arith.constant 0 : index
    %c0_0 = arith.constant 0 : index
    %0 = vector.load %arg1[%c0, %c0_0] : memref<16x128xf32, #tpu.memory_space<vmem>>, vector<16x128xf32>
    %cst = arith.constant dense<0.000000e+00> : vector<16xf32>
    %1 = vector.multi_reduction <add>, %0, %cst [1] : vector<16x128xf32> to vector<16xf32>
    %2 = vector.shape_cast %1 : vector<16xf32> to vector<16x1xf32>
    %cst_1 = arith.constant 1.280000e+02 : f32
    %3 = vector.broadcast %cst_1 : f32 to vector<16x1xf32>
    %4 = arith.divf %2, %3 : vector<16x1xf32>
    %5 = vector.broadcast %4 : vector<16x1xf32> to vector<16x128xf32>
    %6 = arith.subf %0, %5 : vector<16x128xf32>
    %7 = arith.mulf %6, %6 : vector<16x128xf32>
    %cst_2 = arith.constant dense<0.000000e+00> : vector<16xf32>
    %8 = vector.multi_reduction <add>, %7, %cst_2 [1] : vector<16x128xf32> to vector<16xf32>
    %9 = vector.shape_cast %8 : vector<16xf32> to vector<16x1xf32>
    %cst_3 = arith.constant 1.280000e+02 : f32
    %10 = vector.broadcast %cst_3 : f32 to vector<16x1xf32>
    %11 = arith.divf %9, %10 : vector<16x1xf32>
    %cst_4 = arith.constant 9.99999974E-6 : f32
    %12 = vector.broadcast %cst_4 : f32 to vector<16x1xf32>
    %13 = arith.addf %11, %12 : vector<16x1xf32>
    %14 = math.rsqrt %13 : vector<16x1xf32>
    %15 = vector.broadcast %14 : vector<16x1xf32> to vector<16x128xf32>
    %16 = arith.mulf %6, %15 : vector<16x128xf32>
    %c0_5 = arith.constant 0 : index
    %c0_6 = arith.constant 0 : index
    %17 = vector.load %arg2[%c0_5, %c0_6] : memref<1x128xf32, #tpu.memory_space<vmem>>, vector<1x128xf32>
    %18 = vector.broadcast %17 : vector<1x128xf32> to vector<16x128xf32>
    %19 = arith.mulf %16, %18 : vector<16x128xf32>
    %c0_7 = arith.constant 0 : index
    %c0_8 = arith.constant 0 : index
    %20 = vector.load %arg3[%c0_7, %c0_8] : memref<1x128xf32, #tpu.memory_space<vmem>>, vector<1x128xf32>
    %21 = vector.broadcast %20 : vector<1x128xf32> to vector<16x128xf32>
    %22 = arith.addf %19, %21 : vector<16x128xf32>
    %cst_9 = arith.constant 5.000000e-01 : f32
    %23 = vector.broadcast %cst_9 : f32 to vector<16x128xf32>
    %24 = arith.mulf %23, %22 : vector<16x128xf32>
    %cst_10 = arith.constant 4.471500e-02 : f32
    %25 = vector.broadcast %cst_10 : f32 to vector<16x128xf32>
    %26 = arith.mulf %25, %22 : vector<16x128xf32>
    %27 = arith.mulf %26, %22 : vector<16x128xf32>
    %28 = arith.mulf %27, %22 : vector<16x128xf32>
    %29 = arith.addf %22, %28 : vector<16x128xf32>
    %cst_11 = arith.constant 0.797884583 : f32
    %30 = vector.broadcast %cst_11 : f32 to vector<16x128xf32>
    %31 = arith.mulf %30, %29 : vector<16x128xf32>
    %32 = math.tanh %31 : vector<16x128xf32>
    %cst_12 = arith.constant 1.000000e+00 : f32
    %33 = vector.broadcast %cst_12 : f32 to vector<16x128xf32>
    %34 = arith.addf %33, %32 : vector<16x128xf32>
    %35 = arith.mulf %24, %34 : vector<16x128xf32>
    %36 = arith.truncf %35 : vector<16x128xf32> to vector<16x128xbf16>
    %c0_13 = arith.constant 0 : index
    %c0_14 = arith.constant 0 : index
    %37 = vector.load %arg4[%c0_13, %c0_14] : memref<128x768xbf16, #tpu.memory_space<vmem>>, vector<128x768xbf16>
    %cst_15 = arith.constant dense<0.000000e+00> : vector<16x768xf32>
    %38 = tpu.matmul %36, %37, %cst_15 {dimension_numbers = #tpu.dot_dimension_numbers<[1], [0], [0], [1], [0, 0, 1, 1], [], []>} : vector<16x128xbf16>, vector<128x768xbf16>, vector<16x768xf32> -> vector<16x768xf32>
    %c0_16 = arith.constant 0 : index
    %c0_17 = arith.constant 0 : index
    %39 = vector.load %arg5[%c0_16, %c0_17] : memref<1x768xf32, #tpu.memory_space<vmem>>, vector<1x768xf32>
    %40 = vector.broadcast %39 : vector<1x768xf32> to vector<16x768xf32>
    %41 = arith.addf %38, %40 : vector<16x768xf32>
    %42 = arith.truncf %41 : vector<16x768xf32> to vector<16x768xbf16>
    %c0_18 = arith.constant 0 : index
    %c0_19 = arith.constant 0 : index
    %43 = vector.load %arg6[%c0_18, %c0_19] : memref<16x768xbf16, #tpu.memory_space<vmem>>, vector<16x768xbf16>
    tpu.vector_store %arg6[%c0_18, %c0_19], %42 {strides = array<i32>} : memref<16x768xbf16, #tpu.memory_space<vmem>>, vector<16x768xbf16>,
    return
  }
  func.func @transform_0(%arg0: i32) -> (i32, i32) {
    %c0_i32 = arith.constant 0 : i32
    %c0_i32_0 = arith.constant 0 : i32
    return %arg0, %c0_i32 : i32, i32
  }
  func.func @transform_1(%arg0: i32) -> (i32, i32) {
    %c0_i32 = arith.constant 0 : i32
    %c0_i32_0 = arith.constant 0 : i32
    %c0_i32_1 = arith.constant 0 : i32
    return %c0_i32, %c0_i32_0 : i32, i32
  }
  func.func @transform_2(%arg0: i32) -> (i32, i32) {
    %c0_i32 = arith.constant 0 : i32
    %c0_i32_0 = arith.constant 0 : i32
    %c0_i32_1 = arith.constant 0 : i32
    return %c0_i32, %c0_i32_0 : i32, i32
  }
  func.func @transform_3(%arg0: i32) -> (i32, i32) {
    %c0_i32 = arith.constant 0 : i32
    %c0_i32_0 = arith.constant 0 : i32
    %c0_i32_1 = arith.constant 0 : i32
    return %c0_i32, %c0_i32_0 : i32, i32
  }
  func.func @transform_4(%arg0: i32) -> (i32, i32) {
    %c0_i32 = arith.constant 0 : i32
    %c0_i32_0 = arith.constant 0 : i32
    %c0_i32_1 = arith.constant 0 : i32
    return %c0_i32, %c0_i32_0 : i32, i32
  }
  func.func @transform_5(%arg0: i32) -> (i32, i32) {
    %c0_i32 = arith.constant 0 : i32
    %c0_i32_0 = arith.constant 0 : i32
    return %arg0, %c0_i32 : i32, i32
  }
}

module attributes {stable_mosaic.version = 11 : i64} {
  func.func @_gru_recurrence_kernel(%arg0: i32, %arg1: i32, %arg2: memref<8x2x384xbf16, #tpu.memory_space<vmem>>, %arg3: memref<1x128x384xbf16, #tpu.memory_space<vmem>>, %arg4: memref<1x1x384xf32, #tpu.memory_space<vmem>>, %arg5: memref<8x2x128xf32, #tpu.memory_space<vmem>>, %arg6: memref<2x128xf32, #tpu.memory_space<vmem>>) attributes {dimension_semantics = [#tpu.dimension_semantics<parallel>, #tpu.dimension_semantics<arbitrary>], iteration_bounds = array<i64: 2, 1>, scalar_prefetch = 0 : i64, scratch_operands = 1 : i64, tpu.core_type = #tpu.core_type<tc>, window_params = [{transform_indices = @transform_0, window_bounds = array<i64: 8, 2, 384>}, {transform_indices = @transform_1, window_bounds = array<i64: 1, 128, 384>}, {transform_indices = @transform_2, window_bounds = array<i64: 1, 1, 384>}, {transform_indices = @transform_3, window_bounds = array<i64: 8, 2, 128>}]} {
    %c0_i32 = arith.constant 0 : i32
    %0 = arith.cmpi eq, %arg1, %c0_i32 : i32
    %1 = arith.extui %0 : i1 to i32
    %c0_i32_0 = arith.constant 0 : i32
    %2 = arith.cmpi ne, %1, %c0_i32_0 : i32
    scf.if %2 {
      %cst = arith.constant 0.000000e+00 : f32
      %11 = vector.broadcast %cst : f32 to vector<2x128xf32>
      %c0_12 = arith.constant 0 : index
      %c0_13 = arith.constant 0 : index
      %12 = vector.load %arg6[%c0_12, %c0_13] : memref<2x128xf32, #tpu.memory_space<vmem>>, vector<2x128xf32>
      tpu.vector_store %arg6[%c0_12, %c0_13], %11 {strides = array<i32>} : memref<2x128xf32, #tpu.memory_space<vmem>>, vector<2x128xf32>,
    } else {
    }
    %c0 = arith.constant 0 : index
    %c0_1 = arith.constant 0 : index
    %c0_2 = arith.constant 0 : index
    %3 = vector.load %arg3[%c0, %c0_1, %c0_2] : memref<1x128x384xbf16, #tpu.memory_space<vmem>>, vector<1x128x384xbf16>
    %4 = vector.shape_cast %3 : vector<1x128x384xbf16> to vector<128x384xbf16>
    %c0_3 = arith.constant 0 : index
    %c0_4 = arith.constant 0 : index
    %c0_5 = arith.constant 0 : index
    %5 = vector.load %arg4[%c0_3, %c0_4, %c0_5] : memref<1x1x384xf32, #tpu.memory_space<vmem>>, vector<1x1x384xf32>
    %6 = vector.shape_cast %5 : vector<1x1x384xf32> to vector<1x384xf32>
    %c0_6 = arith.constant 0 : index
    %c0_7 = arith.constant 0 : index
    %7 = vector.load %arg6[%c0_6, %c0_7] : memref<2x128xf32, #tpu.memory_space<vmem>>, vector<2x128xf32>
    %c0_i32_8 = arith.constant 0 : i32
    %c8_i32 = arith.constant 8 : i32
    %8 = arith.addi %c0_i32_8, %c8_i32 : i32
    %c1_i32 = arith.constant 1 : i32
    %9 = scf.for %arg7 = %c0_i32_8 to %8 step %c1_i32 iter_args(%arg8 = %7) -> (vector<2x128xf32>)  : i32 {
      %c1_i32_12 = arith.constant 1 : i32
      %11 = arith.subi %c1_i32_12, %arg0 : i32
      %12 = arith.muli %arg7, %11 : i32
      %c7_i32 = arith.constant 7 : i32
      %13 = arith.subi %c7_i32, %arg7 : i32
      %14 = arith.muli %13, %arg0 : i32
      %15 = arith.addi %12, %14 : i32
      %16 = arith.index_cast %15 : i32 to index
      %c0_13 = arith.constant 0 : index
      %c0_14 = arith.constant 0 : index
      %17 = vector.load %arg2[%16, %c0_13, %c0_14] : memref<8x2x384xbf16, #tpu.memory_space<vmem>>, vector<1x2x384xbf16>
      %18 = vector.shape_cast %17 : vector<1x2x384xbf16> to vector<2x384xbf16>
      %19 = arith.extf %18 : vector<2x384xbf16> to vector<2x384xf32>
      %20 = arith.truncf %arg8 : vector<2x128xf32> to vector<2x128xbf16>
      %cst = arith.constant dense<0.000000e+00> : vector<2x384xf32>
      %21 = tpu.matmul %20, %4, %cst {dimension_numbers = #tpu.dot_dimension_numbers<[1], [0], [0], [1], [0, 0, 1, 1], [], []>} : vector<2x128xbf16>, vector<128x384xbf16>, vector<2x384xf32> -> vector<2x384xf32>
      %22 = vector.broadcast %6 : vector<1x384xf32> to vector<2x384xf32>
      %23 = arith.addf %21, %22 : vector<2x384xf32>
      %24 = vector.extract_strided_slice %19 {offsets = [0, 0], sizes = [2, 128], strides = [1, 1]} : vector<2x384xf32> to vector<2x128xf32>
      %25 = vector.extract_strided_slice %23 {offsets = [0, 0], sizes = [2, 128], strides = [1, 1]} : vector<2x384xf32> to vector<2x128xf32>
      %26 = arith.addf %24, %25 : vector<2x128xf32>
      %27 = arith.negf %26 : vector<2x128xf32>
      %28 = math.exp %27 : vector<2x128xf32>
      %cst_15 = arith.constant 1.000000e+00 : f32
      %29 = vector.broadcast %cst_15 : f32 to vector<2x128xf32>
      %30 = arith.addf %29, %28 : vector<2x128xf32>
      %31 = arith.divf %29, %30 : vector<2x128xf32>
      %32 = vector.extract_strided_slice %19 {offsets = [0, 128], sizes = [2, 128], strides = [1, 1]} : vector<2x384xf32> to vector<2x128xf32>
      %33 = vector.extract_strided_slice %23 {offsets = [0, 128], sizes = [2, 128], strides = [1, 1]} : vector<2x384xf32> to vector<2x128xf32>
      %34 = arith.addf %32, %33 : vector<2x128xf32>
      %35 = arith.negf %34 : vector<2x128xf32>
      %36 = math.exp %35 : vector<2x128xf32>
      %cst_16 = arith.constant 1.000000e+00 : f32
      %37 = vector.broadcast %cst_16 : f32 to vector<2x128xf32>
      %38 = arith.addf %37, %36 : vector<2x128xf32>
      %39 = arith.divf %37, %38 : vector<2x128xf32>
      %40 = vector.extract_strided_slice %19 {offsets = [0, 256], sizes = [2, 128], strides = [1, 1]} : vector<2x384xf32> to vector<2x128xf32>
      %41 = vector.extract_strided_slice %23 {offsets = [0, 256], sizes = [2, 128], strides = [1, 1]} : vector<2x384xf32> to vector<2x128xf32>
      %42 = arith.mulf %31, %41 : vector<2x128xf32>
      %43 = arith.addf %40, %42 : vector<2x128xf32>
      %44 = math.tanh %43 : vector<2x128xf32>
      %cst_17 = arith.constant 1.000000e+00 : f32
      %45 = vector.broadcast %cst_17 : f32 to vector<2x128xf32>
      %46 = arith.subf %45, %39 : vector<2x128xf32>
      %47 = arith.mulf %46, %44 : vector<2x128xf32>
      %48 = arith.mulf %39, %arg8 : vector<2x128xf32>
      %49 = arith.addf %47, %48 : vector<2x128xf32>
      %50 = arith.index_cast %15 : i32 to index
      %c0_18 = arith.constant 0 : index
      %c0_19 = arith.constant 0 : index
      %51 = vector.load %arg5[%50, %c0_18, %c0_19] : memref<8x2x128xf32, #tpu.memory_space<vmem>>, vector<1x2x128xf32>
      %52 = vector.shape_cast %51 : vector<1x2x128xf32> to vector<2x128xf32>
      %53 = vector.shape_cast %49 : vector<2x128xf32> to vector<1x2x128xf32>
      tpu.vector_store %arg5[%50, %c0_18, %c0_19], %53 {strides = array<i32>} : memref<8x2x128xf32, #tpu.memory_space<vmem>>, vector<1x2x128xf32>,
      scf.yield %49 : vector<2x128xf32>
    }
    %c8_i32_9 = arith.constant 8 : i32
    %c0_10 = arith.constant 0 : index
    %c0_11 = arith.constant 0 : index
    %10 = vector.load %arg6[%c0_10, %c0_11] : memref<2x128xf32, #tpu.memory_space<vmem>>, vector<2x128xf32>
    tpu.vector_store %arg6[%c0_10, %c0_11], %9 {strides = array<i32>} : memref<2x128xf32, #tpu.memory_space<vmem>>, vector<2x128xf32>,
    return
  }
  func.func @transform_0(%arg0: i32, %arg1: i32) -> (i32, i32, i32) {
    %c1_i32 = arith.constant 1 : i32
    %0 = arith.subi %c1_i32, %arg0 : i32
    %1 = arith.muli %arg1, %0 : i32
    %c0_i32 = arith.constant 0 : i32
    %2 = arith.subi %c0_i32, %arg1 : i32
    %3 = arith.muli %2, %arg0 : i32
    %4 = arith.addi %1, %3 : i32
    %c0_i32_0 = arith.constant 0 : i32
    %c0_i32_1 = arith.constant 0 : i32
    return %4, %c0_i32_0, %arg0 : i32, i32, i32
  }
  func.func @transform_1(%arg0: i32, %arg1: i32) -> (i32, i32, i32) {
    %c0_i32 = arith.constant 0 : i32
    %c0_i32_0 = arith.constant 0 : i32
    %c0_i32_1 = arith.constant 0 : i32
    return %arg0, %c0_i32, %c0_i32_0 : i32, i32, i32
  }
  func.func @transform_2(%arg0: i32, %arg1: i32) -> (i32, i32, i32) {
    %c0_i32 = arith.constant 0 : i32
    %c0_i32_0 = arith.constant 0 : i32
    %c0_i32_1 = arith.constant 0 : i32
    return %arg0, %c0_i32, %c0_i32_0 : i32, i32, i32
  }
  func.func @transform_3(%arg0: i32, %arg1: i32) -> (i32, i32, i32) {
    %c1_i32 = arith.constant 1 : i32
    %0 = arith.subi %c1_i32, %arg0 : i32
    %1 = arith.muli %arg1, %0 : i32
    %c0_i32 = arith.constant 0 : i32
    %2 = arith.subi %c0_i32, %arg1 : i32
    %3 = arith.muli %2, %arg0 : i32
    %4 = arith.addi %1, %3 : i32
    %c0_i32_0 = arith.constant 0 : i32
    %c0_i32_1 = arith.constant 0 : i32
    return %4, %c0_i32_0, %arg0 : i32, i32, i32
  }
}

module attributes {stable_mosaic.version = 11 : i64} {
  func.func @_gru_recurrence_kernel(%arg0: i32, %arg1: i32, %arg2: memref<2x8x384xbf16, #tpu.memory_space<vmem>>, %arg3: memref<1x128x384xbf16, #tpu.memory_space<vmem>>, %arg4: memref<1x1x384xf32, #tpu.memory_space<vmem>>, %arg5: memref<2x8x128xf32, #tpu.memory_space<vmem>>, %arg6: memref<8x128xf32, #tpu.memory_space<vmem>>) attributes {dimension_semantics = [#tpu.dimension_semantics<parallel>, #tpu.dimension_semantics<arbitrary>], iteration_bounds = array<i64: 2, 1>, scalar_prefetch = 0 : i64, scratch_operands = 1 : i64, tpu.core_type = #tpu.core_type<tc>, window_params = [{transform_indices = @transform_0, window_bounds = array<i64: 2, 8, 384>}, {transform_indices = @transform_1, window_bounds = array<i64: 1, 128, 384>}, {transform_indices = @transform_2, window_bounds = array<i64: 1, 1, 384>}, {transform_indices = @transform_3, window_bounds = array<i64: 2, 8, 128>}]} {
    %c0_i32 = arith.constant 0 : i32
    %0 = arith.cmpi eq, %arg1, %c0_i32 : i32
    %1 = arith.extui %0 : i1 to i32
    %c0_i32_0 = arith.constant 0 : i32
    %2 = arith.cmpi ne, %1, %c0_i32_0 : i32
    scf.if %2 {
      %cst = arith.constant 0.000000e+00 : f32
      %11 = vector.broadcast %cst : f32 to vector<8x128xf32>
      %c0_12 = arith.constant 0 : index
      %c0_13 = arith.constant 0 : index
      %12 = vector.load %arg6[%c0_12, %c0_13] : memref<8x128xf32, #tpu.memory_space<vmem>>, vector<8x128xf32>
      tpu.vector_store %arg6[%c0_12, %c0_13], %11 {strides = array<i32>} : memref<8x128xf32, #tpu.memory_space<vmem>>, vector<8x128xf32>,
    } else {
    }
    %c0 = arith.constant 0 : index
    %c0_1 = arith.constant 0 : index
    %c0_2 = arith.constant 0 : index
    %3 = vector.load %arg3[%c0, %c0_1, %c0_2] : memref<1x128x384xbf16, #tpu.memory_space<vmem>>, vector<1x128x384xbf16>
    %4 = vector.shape_cast %3 : vector<1x128x384xbf16> to vector<128x384xbf16>
    %c0_3 = arith.constant 0 : index
    %c0_4 = arith.constant 0 : index
    %c0_5 = arith.constant 0 : index
    %5 = vector.load %arg4[%c0_3, %c0_4, %c0_5] : memref<1x1x384xf32, #tpu.memory_space<vmem>>, vector<1x1x384xf32>
    %6 = vector.shape_cast %5 : vector<1x1x384xf32> to vector<1x384xf32>
    %c0_6 = arith.constant 0 : index
    %c0_7 = arith.constant 0 : index
    %7 = vector.load %arg6[%c0_6, %c0_7] : memref<8x128xf32, #tpu.memory_space<vmem>>, vector<8x128xf32>
    %c0_i32_8 = arith.constant 0 : i32
    %c2_i32 = arith.constant 2 : i32
    %8 = arith.addi %c0_i32_8, %c2_i32 : i32
    %c1_i32 = arith.constant 1 : i32
    %9 = scf.for %arg7 = %c0_i32_8 to %8 step %c1_i32 iter_args(%arg8 = %7) -> (vector<8x128xf32>)  : i32 {
      %c1_i32_12 = arith.constant 1 : i32
      %11 = arith.subi %c1_i32_12, %arg0 : i32
      %12 = arith.muli %arg7, %11 : i32
      %c1_i32_13 = arith.constant 1 : i32
      %13 = arith.subi %c1_i32_13, %arg7 : i32
      %14 = arith.muli %13, %arg0 : i32
      %15 = arith.addi %12, %14 : i32
      %16 = arith.index_cast %15 : i32 to index
      %c0_14 = arith.constant 0 : index
      %c0_15 = arith.constant 0 : index
      %17 = vector.load %arg2[%16, %c0_14, %c0_15] : memref<2x8x384xbf16, #tpu.memory_space<vmem>>, vector<1x8x384xbf16>
      %18 = vector.shape_cast %17 : vector<1x8x384xbf16> to vector<8x384xbf16>
      %19 = arith.extf %18 : vector<8x384xbf16> to vector<8x384xf32>
      %20 = arith.truncf %arg8 : vector<8x128xf32> to vector<8x128xbf16>
      %cst = arith.constant dense<0.000000e+00> : vector<8x384xf32>
      %21 = tpu.matmul %20, %4, %cst {dimension_numbers = #tpu.dot_dimension_numbers<[1], [0], [0], [1], [0, 0, 1, 1], [], []>} : vector<8x128xbf16>, vector<128x384xbf16>, vector<8x384xf32> -> vector<8x384xf32>
      %22 = vector.broadcast %6 : vector<1x384xf32> to vector<8x384xf32>
      %23 = arith.addf %21, %22 : vector<8x384xf32>
      %24 = vector.extract_strided_slice %19 {offsets = [0, 0], sizes = [8, 128], strides = [1, 1]} : vector<8x384xf32> to vector<8x128xf32>
      %25 = vector.extract_strided_slice %23 {offsets = [0, 0], sizes = [8, 128], strides = [1, 1]} : vector<8x384xf32> to vector<8x128xf32>
      %26 = arith.addf %24, %25 : vector<8x128xf32>
      %27 = arith.negf %26 : vector<8x128xf32>
      %28 = math.exp %27 : vector<8x128xf32>
      %cst_16 = arith.constant 1.000000e+00 : f32
      %29 = vector.broadcast %cst_16 : f32 to vector<8x128xf32>
      %30 = arith.addf %29, %28 : vector<8x128xf32>
      %31 = arith.divf %29, %30 : vector<8x128xf32>
      %32 = vector.extract_strided_slice %19 {offsets = [0, 128], sizes = [8, 128], strides = [1, 1]} : vector<8x384xf32> to vector<8x128xf32>
      %33 = vector.extract_strided_slice %23 {offsets = [0, 128], sizes = [8, 128], strides = [1, 1]} : vector<8x384xf32> to vector<8x128xf32>
      %34 = arith.addf %32, %33 : vector<8x128xf32>
      %35 = arith.negf %34 : vector<8x128xf32>
      %36 = math.exp %35 : vector<8x128xf32>
      %cst_17 = arith.constant 1.000000e+00 : f32
      %37 = vector.broadcast %cst_17 : f32 to vector<8x128xf32>
      %38 = arith.addf %37, %36 : vector<8x128xf32>
      %39 = arith.divf %37, %38 : vector<8x128xf32>
      %40 = vector.extract_strided_slice %19 {offsets = [0, 256], sizes = [8, 128], strides = [1, 1]} : vector<8x384xf32> to vector<8x128xf32>
      %41 = vector.extract_strided_slice %23 {offsets = [0, 256], sizes = [8, 128], strides = [1, 1]} : vector<8x384xf32> to vector<8x128xf32>
      %42 = arith.mulf %31, %41 : vector<8x128xf32>
      %43 = arith.addf %40, %42 : vector<8x128xf32>
      %44 = math.tanh %43 : vector<8x128xf32>
      %cst_18 = arith.constant 1.000000e+00 : f32
      %45 = vector.broadcast %cst_18 : f32 to vector<8x128xf32>
      %46 = arith.subf %45, %39 : vector<8x128xf32>
      %47 = arith.mulf %46, %44 : vector<8x128xf32>
      %48 = arith.mulf %39, %arg8 : vector<8x128xf32>
      %49 = arith.addf %47, %48 : vector<8x128xf32>
      %50 = arith.index_cast %15 : i32 to index
      %c0_19 = arith.constant 0 : index
      %c0_20 = arith.constant 0 : index
      %51 = vector.load %arg5[%50, %c0_19, %c0_20] : memref<2x8x128xf32, #tpu.memory_space<vmem>>, vector<1x8x128xf32>
      %52 = vector.shape_cast %51 : vector<1x8x128xf32> to vector<8x128xf32>
      %53 = vector.shape_cast %49 : vector<8x128xf32> to vector<1x8x128xf32>
      tpu.vector_store %arg5[%50, %c0_19, %c0_20], %53 {strides = array<i32>} : memref<2x8x128xf32, #tpu.memory_space<vmem>>, vector<1x8x128xf32>,
      scf.yield %49 : vector<8x128xf32>
    }
    %c2_i32_9 = arith.constant 2 : i32
    %c0_10 = arith.constant 0 : index
    %c0_11 = arith.constant 0 : index
    %10 = vector.load %arg6[%c0_10, %c0_11] : memref<8x128xf32, #tpu.memory_space<vmem>>, vector<8x128xf32>
    tpu.vector_store %arg6[%c0_10, %c0_11], %9 {strides = array<i32>} : memref<8x128xf32, #tpu.memory_space<vmem>>, vector<8x128xf32>,
    return
  }
  func.func @transform_0(%arg0: i32, %arg1: i32) -> (i32, i32, i32) {
    %c1_i32 = arith.constant 1 : i32
    %0 = arith.subi %c1_i32, %arg0 : i32
    %1 = arith.muli %arg1, %0 : i32
    %c0_i32 = arith.constant 0 : i32
    %2 = arith.subi %c0_i32, %arg1 : i32
    %3 = arith.muli %2, %arg0 : i32
    %4 = arith.addi %1, %3 : i32
    %c0_i32_0 = arith.constant 0 : i32
    %c0_i32_1 = arith.constant 0 : i32
    return %4, %c0_i32_0, %arg0 : i32, i32, i32
  }
  func.func @transform_1(%arg0: i32, %arg1: i32) -> (i32, i32, i32) {
    %c0_i32 = arith.constant 0 : i32
    %c0_i32_0 = arith.constant 0 : i32
    %c0_i32_1 = arith.constant 0 : i32
    return %arg0, %c0_i32, %c0_i32_0 : i32, i32, i32
  }
  func.func @transform_2(%arg0: i32, %arg1: i32) -> (i32, i32, i32) {
    %c0_i32 = arith.constant 0 : i32
    %c0_i32_0 = arith.constant 0 : i32
    %c0_i32_1 = arith.constant 0 : i32
    return %arg0, %c0_i32, %c0_i32_0 : i32, i32, i32
  }
  func.func @transform_3(%arg0: i32, %arg1: i32) -> (i32, i32, i32) {
    %c1_i32 = arith.constant 1 : i32
    %0 = arith.subi %c1_i32, %arg0 : i32
    %1 = arith.muli %arg1, %0 : i32
    %c0_i32 = arith.constant 0 : i32
    %2 = arith.subi %c0_i32, %arg1 : i32
    %3 = arith.muli %2, %arg0 : i32
    %4 = arith.addi %1, %3 : i32
    %c0_i32_0 = arith.constant 0 : i32
    %c0_i32_1 = arith.constant 0 : i32
    return %4, %c0_i32_0, %arg0 : i32, i32, i32
  }
}

module attributes {stable_mosaic.version = 11 : i64} {
  func.func @_gru_in_proj_kernel(%arg0: i32, %arg1: memref<16x256xf32, #tpu.memory_space<vmem>>, %arg2: memref<1x256xf32, #tpu.memory_space<vmem>>, %arg3: memref<1x256xf32, #tpu.memory_space<vmem>>, %arg4: memref<256x768xbf16, #tpu.memory_space<vmem>>, %arg5: memref<1x768xf32, #tpu.memory_space<vmem>>, %arg6: memref<16x768xbf16, #tpu.memory_space<vmem>>) attributes {dimension_semantics = [#tpu.dimension_semantics<parallel>], iteration_bounds = array<i64: 1>, scalar_prefetch = 0 : i64, scratch_operands = 0 : i64, tpu.core_type = #tpu.core_type<tc>, window_params = [{transform_indices = @transform_0, window_bounds = array<i64: 16, 256>}, {pipeline_mode = #tpu.pipeline_mode<synchronous>, transform_indices = @transform_1, window_bounds = array<i64: 1, 256>}, {pipeline_mode = #tpu.pipeline_mode<synchronous>, transform_indices = @transform_2, window_bounds = array<i64: 1, 256>}, {pipeline_mode = #tpu.pipeline_mode<synchronous>, transform_indices = @transform_3, window_bounds = array<i64: 256, 768>}, {pipeline_mode = #tpu.pipeline_mode<synchronous>, transform_indices = @transform_4, window_bounds = array<i64: 1, 768>}, {transform_indices = @transform_5, window_bounds = array<i64: 16, 768>}]} {
    %c0 = arith.constant 0 : index
    %c0_0 = arith.constant 0 : index
    %0 = vector.load %arg1[%c0, %c0_0] : memref<16x256xf32, #tpu.memory_space<vmem>>, vector<16x256xf32>
    %cst = arith.constant dense<0.000000e+00> : vector<16xf32>
    %1 = vector.multi_reduction <add>, %0, %cst [1] : vector<16x256xf32> to vector<16xf32>
    %2 = vector.shape_cast %1 : vector<16xf32> to vector<16x1xf32>
    %cst_1 = arith.constant 2.560000e+02 : f32
    %3 = vector.broadcast %cst_1 : f32 to vector<16x1xf32>
    %4 = arith.divf %2, %3 : vector<16x1xf32>
    %5 = vector.broadcast %4 : vector<16x1xf32> to vector<16x256xf32>
    %6 = arith.subf %0, %5 : vector<16x256xf32>
    %7 = arith.mulf %6, %6 : vector<16x256xf32>
    %cst_2 = arith.constant dense<0.000000e+00> : vector<16xf32>
    %8 = vector.multi_reduction <add>, %7, %cst_2 [1] : vector<16x256xf32> to vector<16xf32>
    %9 = vector.shape_cast %8 : vector<16xf32> to vector<16x1xf32>
    %cst_3 = arith.constant 2.560000e+02 : f32
    %10 = vector.broadcast %cst_3 : f32 to vector<16x1xf32>
    %11 = arith.divf %9, %10 : vector<16x1xf32>
    %cst_4 = arith.constant 9.99999974E-6 : f32
    %12 = vector.broadcast %cst_4 : f32 to vector<16x1xf32>
    %13 = arith.addf %11, %12 : vector<16x1xf32>
    %14 = math.rsqrt %13 : vector<16x1xf32>
    %15 = vector.broadcast %14 : vector<16x1xf32> to vector<16x256xf32>
    %16 = arith.mulf %6, %15 : vector<16x256xf32>
    %c0_5 = arith.constant 0 : index
    %c0_6 = arith.constant 0 : index
    %17 = vector.load %arg2[%c0_5, %c0_6] : memref<1x256xf32, #tpu.memory_space<vmem>>, vector<1x256xf32>
    %18 = vector.broadcast %17 : vector<1x256xf32> to vector<16x256xf32>
    %19 = arith.mulf %16, %18 : vector<16x256xf32>
    %c0_7 = arith.constant 0 : index
    %c0_8 = arith.constant 0 : index
    %20 = vector.load %arg3[%c0_7, %c0_8] : memref<1x256xf32, #tpu.memory_space<vmem>>, vector<1x256xf32>
    %21 = vector.broadcast %20 : vector<1x256xf32> to vector<16x256xf32>
    %22 = arith.addf %19, %21 : vector<16x256xf32>
    %cst_9 = arith.constant 5.000000e-01 : f32
    %23 = vector.broadcast %cst_9 : f32 to vector<16x256xf32>
    %24 = arith.mulf %23, %22 : vector<16x256xf32>
    %cst_10 = arith.constant 4.471500e-02 : f32
    %25 = vector.broadcast %cst_10 : f32 to vector<16x256xf32>
    %26 = arith.mulf %25, %22 : vector<16x256xf32>
    %27 = arith.mulf %26, %22 : vector<16x256xf32>
    %28 = arith.mulf %27, %22 : vector<16x256xf32>
    %29 = arith.addf %22, %28 : vector<16x256xf32>
    %cst_11 = arith.constant 0.797884583 : f32
    %30 = vector.broadcast %cst_11 : f32 to vector<16x256xf32>
    %31 = arith.mulf %30, %29 : vector<16x256xf32>
    %32 = math.tanh %31 : vector<16x256xf32>
    %cst_12 = arith.constant 1.000000e+00 : f32
    %33 = vector.broadcast %cst_12 : f32 to vector<16x256xf32>
    %34 = arith.addf %33, %32 : vector<16x256xf32>
    %35 = arith.mulf %24, %34 : vector<16x256xf32>
    %36 = arith.truncf %35 : vector<16x256xf32> to vector<16x256xbf16>
    %c0_13 = arith.constant 0 : index
    %c0_14 = arith.constant 0 : index
    %37 = vector.load %arg4[%c0_13, %c0_14] : memref<256x768xbf16, #tpu.memory_space<vmem>>, vector<256x768xbf16>
    %cst_15 = arith.constant dense<0.000000e+00> : vector<16x768xf32>
    %38 = tpu.matmul %36, %37, %cst_15 {dimension_numbers = #tpu.dot_dimension_numbers<[1], [0], [0], [1], [0, 0, 1, 1], [], []>} : vector<16x256xbf16>, vector<256x768xbf16>, vector<16x768xf32> -> vector<16x768xf32>
    %c0_16 = arith.constant 0 : index
    %c0_17 = arith.constant 0 : index
    %39 = vector.load %arg5[%c0_16, %c0_17] : memref<1x768xf32, #tpu.memory_space<vmem>>, vector<1x768xf32>
    %40 = vector.broadcast %39 : vector<1x768xf32> to vector<16x768xf32>
    %41 = arith.addf %38, %40 : vector<16x768xf32>
    %42 = arith.truncf %41 : vector<16x768xf32> to vector<16x768xbf16>
    %c0_18 = arith.constant 0 : index
    %c0_19 = arith.constant 0 : index
    %43 = vector.load %arg6[%c0_18, %c0_19] : memref<16x768xbf16, #tpu.memory_space<vmem>>, vector<16x768xbf16>
    tpu.vector_store %arg6[%c0_18, %c0_19], %42 {strides = array<i32>} : memref<16x768xbf16, #tpu.memory_space<vmem>>, vector<16x768xbf16>,
    return
  }
  func.func @transform_0(%arg0: i32) -> (i32, i32) {
    %c0_i32 = arith.constant 0 : i32
    %c0_i32_0 = arith.constant 0 : i32
    return %arg0, %c0_i32 : i32, i32
  }
  func.func @transform_1(%arg0: i32) -> (i32, i32) {
    %c0_i32 = arith.constant 0 : i32
    %c0_i32_0 = arith.constant 0 : i32
    %c0_i32_1 = arith.constant 0 : i32
    return %c0_i32, %c0_i32_0 : i32, i32
  }
  func.func @transform_2(%arg0: i32) -> (i32, i32) {
    %c0_i32 = arith.constant 0 : i32
    %c0_i32_0 = arith.constant 0 : i32
    %c0_i32_1 = arith.constant 0 : i32
    return %c0_i32, %c0_i32_0 : i32, i32
  }
  func.func @transform_3(%arg0: i32) -> (i32, i32) {
    %c0_i32 = arith.constant 0 : i32
    %c0_i32_0 = arith.constant 0 : i32
    %c0_i32_1 = arith.constant 0 : i32
    return %c0_i32, %c0_i32_0 : i32, i32
  }
  func.func @transform_4(%arg0: i32) -> (i32, i32) {
    %c0_i32 = arith.constant 0 : i32
    %c0_i32_0 = arith.constant 0 : i32
    %c0_i32_1 = arith.constant 0 : i32
    return %c0_i32, %c0_i32_0 : i32, i32
  }
  func.func @transform_5(%arg0: i32) -> (i32, i32) {
    %c0_i32 = arith.constant 0 : i32
    %c0_i32_0 = arith.constant 0 : i32
    return %arg0, %c0_i32 : i32, i32
  }
}

module attributes {stable_mosaic.version = 11 : i64} {
  func.func @_classifier_kernel(%arg0: i32, %arg1: memref<16x256xf32, #tpu.memory_space<vmem>>, %arg2: memref<256x128xbf16, #tpu.memory_space<vmem>>, %arg3: memref<1x128xf32, #tpu.memory_space<vmem>>, %arg4: memref<128x128xbf16, #tpu.memory_space<vmem>>, %arg5: memref<1x128xf32, #tpu.memory_space<vmem>>, %arg6: memref<16x128xf32, #tpu.memory_space<vmem>>) attributes {dimension_semantics = [#tpu.dimension_semantics<parallel>], iteration_bounds = array<i64: 1>, scalar_prefetch = 0 : i64, scratch_operands = 0 : i64, tpu.core_type = #tpu.core_type<tc>, window_params = [{transform_indices = @transform_0, window_bounds = array<i64: 16, 256>}, {pipeline_mode = #tpu.pipeline_mode<synchronous>, transform_indices = @transform_1, window_bounds = array<i64: 256, 128>}, {pipeline_mode = #tpu.pipeline_mode<synchronous>, transform_indices = @transform_2, window_bounds = array<i64: 1, 128>}, {pipeline_mode = #tpu.pipeline_mode<synchronous>, transform_indices = @transform_3, window_bounds = array<i64: 128, 128>}, {pipeline_mode = #tpu.pipeline_mode<synchronous>, transform_indices = @transform_4, window_bounds = array<i64: 1, 128>}, {transform_indices = @transform_5, window_bounds = array<i64: 16, 128>}]} {
    %c0 = arith.constant 0 : index
    %c0_0 = arith.constant 0 : index
    %0 = vector.load %arg1[%c0, %c0_0] : memref<16x256xf32, #tpu.memory_space<vmem>>, vector<16x256xf32>
    %1 = arith.truncf %0 : vector<16x256xf32> to vector<16x256xbf16>
    %c0_1 = arith.constant 0 : index
    %c0_2 = arith.constant 0 : index
    %2 = vector.load %arg2[%c0_1, %c0_2] : memref<256x128xbf16, #tpu.memory_space<vmem>>, vector<256x128xbf16>
    %cst = arith.constant dense<0.000000e+00> : vector<16x128xf32>
    %3 = tpu.matmul %1, %2, %cst {dimension_numbers = #tpu.dot_dimension_numbers<[1], [0], [0], [1], [0, 0, 1, 1], [], []>} : vector<16x256xbf16>, vector<256x128xbf16>, vector<16x128xf32> -> vector<16x128xf32>
    %c0_3 = arith.constant 0 : index
    %c0_4 = arith.constant 0 : index
    %4 = vector.load %arg3[%c0_3, %c0_4] : memref<1x128xf32, #tpu.memory_space<vmem>>, vector<1x128xf32>
    %5 = vector.broadcast %4 : vector<1x128xf32> to vector<16x128xf32>
    %6 = arith.addf %3, %5 : vector<16x128xf32>
    %cst_5 = arith.constant 5.000000e-01 : f32
    %7 = vector.broadcast %cst_5 : f32 to vector<16x128xf32>
    %8 = arith.mulf %7, %6 : vector<16x128xf32>
    %cst_6 = arith.constant 4.471500e-02 : f32
    %9 = vector.broadcast %cst_6 : f32 to vector<16x128xf32>
    %10 = arith.mulf %9, %6 : vector<16x128xf32>
    %11 = arith.mulf %10, %6 : vector<16x128xf32>
    %12 = arith.mulf %11, %6 : vector<16x128xf32>
    %13 = arith.addf %6, %12 : vector<16x128xf32>
    %cst_7 = arith.constant 0.797884583 : f32
    %14 = vector.broadcast %cst_7 : f32 to vector<16x128xf32>
    %15 = arith.mulf %14, %13 : vector<16x128xf32>
    %16 = math.tanh %15 : vector<16x128xf32>
    %cst_8 = arith.constant 1.000000e+00 : f32
    %17 = vector.broadcast %cst_8 : f32 to vector<16x128xf32>
    %18 = arith.addf %17, %16 : vector<16x128xf32>
    %19 = arith.mulf %8, %18 : vector<16x128xf32>
    %20 = arith.truncf %19 : vector<16x128xf32> to vector<16x128xbf16>
    %c0_9 = arith.constant 0 : index
    %c0_10 = arith.constant 0 : index
    %21 = vector.load %arg4[%c0_9, %c0_10] : memref<128x128xbf16, #tpu.memory_space<vmem>>, vector<128x128xbf16>
    %cst_11 = arith.constant dense<0.000000e+00> : vector<16x128xf32>
    %22 = tpu.matmul %20, %21, %cst_11 {dimension_numbers = #tpu.dot_dimension_numbers<[1], [0], [0], [1], [0, 0, 1, 1], [], []>} : vector<16x128xbf16>, vector<128x128xbf16>, vector<16x128xf32> -> vector<16x128xf32>
    %c0_12 = arith.constant 0 : index
    %c0_13 = arith.constant 0 : index
    %23 = vector.load %arg5[%c0_12, %c0_13] : memref<1x128xf32, #tpu.memory_space<vmem>>, vector<1x128xf32>
    %24 = vector.broadcast %23 : vector<1x128xf32> to vector<16x128xf32>
    %25 = arith.addf %22, %24 : vector<16x128xf32>
    %c0_14 = arith.constant 0 : index
    %c0_15 = arith.constant 0 : index
    %26 = vector.load %arg6[%c0_14, %c0_15] : memref<16x128xf32, #tpu.memory_space<vmem>>, vector<16x128xf32>
    tpu.vector_store %arg6[%c0_14, %c0_15], %25 {strides = array<i32>} : memref<16x128xf32, #tpu.memory_space<vmem>>, vector<16x128xf32>,
    return
  }
  func.func @transform_0(%arg0: i32) -> (i32, i32) {
    %c0_i32 = arith.constant 0 : i32
    %c0_i32_0 = arith.constant 0 : i32
    return %arg0, %c0_i32 : i32, i32
  }
  func.func @transform_1(%arg0: i32) -> (i32, i32) {
    %c0_i32 = arith.constant 0 : i32
    %c0_i32_0 = arith.constant 0 : i32
    %c0_i32_1 = arith.constant 0 : i32
    return %c0_i32, %c0_i32_0 : i32, i32
  }
  func.func @transform_2(%arg0: i32) -> (i32, i32) {
    %c0_i32 = arith.constant 0 : i32
    %c0_i32_0 = arith.constant 0 : i32
    %c0_i32_1 = arith.constant 0 : i32
    return %c0_i32, %c0_i32_0 : i32, i32
  }
  func.func @transform_3(%arg0: i32) -> (i32, i32) {
    %c0_i32 = arith.constant 0 : i32
    %c0_i32_0 = arith.constant 0 : i32
    %c0_i32_1 = arith.constant 0 : i32
    return %c0_i32, %c0_i32_0 : i32, i32
  }
  func.func @transform_4(%arg0: i32) -> (i32, i32) {
    %c0_i32 = arith.constant 0 : i32
    %c0_i32_0 = arith.constant 0 : i32
    %c0_i32_1 = arith.constant 0 : i32
    return %c0_i32, %c0_i32_0 : i32, i32
  }
  func.func @transform_5(%arg0: i32) -> (i32, i32) {
    %c0_i32 = arith.constant 0 : i32
    %c0_i32_0 = arith.constant 0 : i32
    return %arg0, %c0_i32 : i32, i32
  }
}

</mosaic_0001>

<llo_original>
// kernel: speech_model_forward.16
$region0: #{speech_model_forward.16}
  #allocation0 [shape = 'u32[]', space=smem, size = 0x4, offset = 0x4, fixed_abs, tag = 'smem constant byte address 0x4 - core index']
  #allocation1 [shape = 'u32[144,128]{1,0:T(1,128)}', space=vmem, size = 0x12000, scoped, tag = 'internal scratch']
  %s0 = inlined_call_operand.vmem [shape: f32[2,8,256], index: 0, kind: input, shape index: {}]
  %s1 = inlined_call_operand.vmem [shape: f32[1,8,1], index: 1, kind: input, shape index: {}]
  %s2 = inlined_call_operand.vmem [shape: f32[1,8,1], index: 2, kind: input, shape index: {}]
  %s3 = inlined_call_operand.vmem [shape: f32[2,8,256], index: 3, kind: output, shape index: {}]
  %s4 = sld [smem:[#allocation0]]
  $region45: #{speech_model_forward.16} parent=0
    _
  %s6 = ssub.s32 1, %s4
  %s7 = scalar_select 0, %s6, %s4
  loop: start=0, step=1, limit=4
  $region2: #{speech_model_forward.16} parent=0 // loop_pre_header
    _
  $region3: #{speech_model_forward.16} parent=0 // loop_header
    %s9 = sphi 0, %s13
    %p10 = scmp.ge.s32.totalorder %s9, 4
    %s16 = sphi 0, %s28
    %s17 = sphi 0, %s24
    %s18 = sphi 0, %s16
    %s19 = sphi 0, %s17
    %s20 = sphi 0, %s18
    %s21 = sphi 0, %s19
    %s33 = sphi 0, %s35
    %s36 = sphi 0, %s33
    %s37 = sphi 0, %s36
    %s53 = sphi 0, %s37
    %s57 = sphi 0, %s57
    %s59 = sphi 0, %s57
    %s60 = sphi 0, %s59
    %s74 = sphi 0, %s60
    %s78 = sphi 0, %s78
    %s80 = sphi 0, %s78
    %s81 = sphi 0, %s80
    %s95 = sphi 0, %s81
    %s103 = sphi 0, %s105
    %s106 = sphi 0, %s103
    %s107 = sphi 0, %s106
    %s123 = sphi 0, %s107
  $region4: #{speech_model_forward.16} parent=0 // loop_header_branch
    %12 = sbr.rel (%p10) target = $region8
  $region5: #{speech_model_forward.16} parent=0 // loop_body
    %s14 = ssub.s32 %s9, 1
    %s15 = ssub.s32 %s9, 2
    %s22 = sadd.s32 1, %s17
    %p23 = scmp.ge.s32.totalorder %s22, 1
    %s24 = scalar_select %p23, 0, %s22
    %s25 = sadd.s32 1, %s16
    %s26 = scalar_select %p23, %s25, %s16
    %p27 = scmp.ge.s32.totalorder %s26, 2
    %s28 = scalar_select %p27, 0, %s26
    %s29 = ssub.s32 %s16, %s28
    %s30 = ssub.s32 %s17, %s24
    %s31 = sor.u32 %s29, %s30
    %p32 = scmp.eq.s32.totalorder %s31, 0
    %s34 = sadd.s32 %s33, 1
    %s35 = scalar_select %p32, %s33, %s34
    %p38 = pneg %p32
    %p39 = scmp.eq.s32.totalorder %s9, 1
    %p40 = por %p38, %p39
    %p41 = scmp.ne.s32.totalorder %s33, %s36
    %p42 = scmp.eq.s32.totalorder %s9, 0
    %p43 = por %p41, %p42
    %p44 = scmp.ne.s32.totalorder %s33, %s36
    %p45 = scmp.eq.s32.totalorder %s14, 1
    %p46 = por %p44, %p45
    %p47 = scmp.ne.s32.totalorder %s36, %s37
    %p48 = scmp.eq.s32.totalorder %s14, 0
    %p49 = por %p47, %p48
    %p50 = scmp.ne.s32.totalorder %s36, %s37
    %p51 = scmp.eq.s32.totalorder %s15, 1
    %p52 = por %p50, %p51
    %p54 = scmp.ne.s32.totalorder %s37, %s53
    %p55 = scmp.eq.s32.totalorder %s15, 0
    %p56 = por %p54, %p55
    %s58 = sadd.s32 %s57, 1
    %p61 = scmp.eq.s32.totalorder %s9, 1
    %p62 = scmp.ne.s32.totalorder %s57, %s59
    %p63 = scmp.eq.s32.totalorder %s9, 0
    %p64 = por %p62, %p63
    %p65 = scmp.ne.s32.totalorder %s57, %s59
    %p66 = scmp.eq.s32.totalorder %s14, 1
    %p67 = por %p65, %p66
    %p68 = scmp.ne.s32.totalorder %s59, %s60
    %p69 = scmp.eq.s32.totalorder %s14, 0
    %p70 = por %p68, %p69
    %p71 = scmp.ne.s32.totalorder %s59, %s60
    %p72 = scmp.eq.s32.totalorder %s15, 1
    %p73 = por %p71, %p72
    %p75 = scmp.ne.s32.totalorder %s60, %s74
    %p76 = scmp.eq.s32.totalorder %s15, 0
    %p77 = por %p75, %p76
    %s79 = sadd.s32 %s78, 1
    %p82 = scmp.eq.s32.totalorder %s9, 1
    %p83 = scmp.ne.s32.totalorder %s78, %s80
    %p84 = scmp.eq.s32.totalorder %s9, 0
    %p85 = por %p83, %p84
    %p86 = scmp.ne.s32.totalorder %s78, %s80
    %p87 = scmp.eq.s32.totalorder %s14, 1
    %p88 = por %p86, %p87
    %p89 = scmp.ne.s32.totalorder %s80, %s81
    %p90 = scmp.eq.s32.totalorder %s14, 0
    %p91 = por %p89, %p90
    %p92 = scmp.ne.s32.totalorder %s80, %s81
    %p93 = scmp.eq.s32.totalorder %s15, 1
    %p94 = por %p92, %p93
    %p96 = scmp.ne.s32.totalorder %s81, %s95
    %p97 = scmp.eq.s32.totalorder %s15, 0
    %p98 = por %p96, %p97
    %s99 = ssub.s32 %s16, %s28
    %s100 = ssub.s32 %s17, %s24
    %s101 = sor.u32 %s99, %s100
    %p102 = scmp.eq.s32.totalorder %s101, 0
    %s104 = sadd.s32 %s103, 1
    %s105 = scalar_select %p102, %s103, %s104
    %p108 = pneg %p102
    %p109 = scmp.eq.s32.totalorder %s9, 1
    %p110 = por %p108, %p109
    %p111 = scmp.ne.s32.totalorder %s103, %s106
    %p112 = scmp.eq.s32.totalorder %s9, 0
    %p113 = por %p111, %p112
    %p114 = scmp.ne.s32.totalorder %s103, %s106
    %p115 = scmp.eq.s32.totalorder %s14, 1
    %p116 = por %p114, %p115
    %p117 = scmp.ne.s32.totalorder %s106, %s107
    %p118 = scmp.eq.s32.totalorder %s14, 0
    %p119 = por %p117, %p118
    %p120 = scmp.ne.s32.totalorder %s106, %s107
    %p121 = scmp.eq.s32.totalorder %s15, 1
    %p122 = por %p120, %p121
    %p124 = scmp.ne.s32.totalorder %s107, %s123
    %p125 = scmp.eq.s32.totalorder %s15, 0
    %p126 = por %p124, %p125
    %p127 = scmp.le.s32.totalorder 1, %s9
    %p128 = scmp.lt.s32.totalorder %s9, 3
    %p129 = pnand %p127, %p128
    %p130 = pneg %p129
    // Predicated region
    $region9: #{speech_model_forward.16} parent=5 // pred_check
      _
    $region10: #{speech_model_forward.16} parent=5 // pred_check_branch
      %132 = sbr.rel (%p129) target = $region12
    $region11: #{speech_model_forward.16} parent=5 // pred_region
      %s133 = ssub.s32 %s9, 1
      // Predicated region
      $region13: #{speech_model_forward.16} parent=11 // pred_check
        %p134 = pneg %p70
      $region14: #{speech_model_forward.16} parent=11 // pred_check_branch
        %136 = sbr.rel (%p134) target = $region16
      $region15: #{speech_model_forward.16} parent=11 // pred_region
        _
      $region16: #{speech_model_forward.16} parent=11 // pred_fallthru
        _
      // Predicated region
      $region17: #{speech_model_forward.16} parent=11 // pred_check
        %p137 = pneg %p91
      $region18: #{speech_model_forward.16} parent=11 // pred_check_branch
        %139 = sbr.rel (%p137) target = $region20
      $region19: #{speech_model_forward.16} parent=11 // pred_region
        _
      $region20: #{speech_model_forward.16} parent=11 // pred_fallthru
        _
    $region12: #{speech_model_forward.16} parent=5 // pred_fallthru
      _
    %p140 = scmp.lt.s32.totalorder %s9, 2
    // Predicated region
    $region21: #{speech_model_forward.16} parent=5 // pred_check
      %p141 = pneg %p140
    $region22: #{speech_model_forward.16} parent=5 // pred_check_branch
      %143 = sbr.rel (%p141) target = $region24
    $region23: #{speech_model_forward.16} parent=5 // pred_region
      // Predicated region
      $region25: #{speech_model_forward.16} parent=23 // pred_check
        %p144 = pneg %p43
      $region26: #{speech_model_forward.16} parent=23 // pred_check_branch
        %146 = sbr.rel (%p144) target = $region28
      $region27: #{speech_model_forward.16} parent=23 // pred_region
        %s147 = smul.u32 2, %s17
        %p148 = scmp.lt.s32.totalorder %s16, 1
        %s149 = scalar_select %p148, %s16, 1
        %p150 = scmp.lt.s32.totalorder %s147, 1
        %s151 = scalar_select %p150, %s147, 1
        %s152 = smul.addr %s149, 2
        %s153 = sadd.s32 %s151, %s152
        %s154 = smul.addr %s153, 8
        %s155 = scalar_lea.vmem %s0, %s154
        %s156 = smul.u32 2, %s17
      $region28: #{speech_model_forward.16} parent=23 // pred_fallthru
        _
    $region24: #{speech_model_forward.16} parent=5 // pred_fallthru
      _
    %p157 = scmp.le.s32.totalorder 1, %s9
    %p158 = scmp.lt.s32.totalorder %s9, 3
    %p159 = pnand %p157, %p158
    %p160 = pneg %p159
    // Predicated region
    $region29: #{speech_model_forward.16} parent=5 // pred_check
      _
    $region30: #{speech_model_forward.16} parent=5 // pred_check_branch
      %162 = sbr.rel (%p159) target = $region32
    $region31: #{speech_model_forward.16} parent=5 // pred_region
      %s163 = ssub.s32 %s9, 1
      %s164 = smul.u32 2, %s19
      %p165 = scmp.lt.s32.totalorder %s18, 1
      %s166 = scalar_select %p165, %s18, 1
      %p167 = scmp.lt.s32.totalorder %s164, 1
      %s168 = scalar_select %p167, %s164, 1
      %s169 = smul.addr %s166, 2
      %s170 = sadd.s32 %s168, %s169
      %s171 = smul.addr %s170, 8
      %s172 = scalar_lea.vmem %s0, %s171
      %p173 = pneg %p49
      %p174 = pneg %p46
      %p175 = pneg %p70
      %p176 = pneg %p67
      %p177 = pneg %p91
      %p178 = pneg %p88
      %p179 = pneg %p119
      %p180 = pneg %p116
      %s181 = smul.u32 2, %s19
      %p182 = scmp.lt.s32.totalorder %s18, 1
      %s183 = scalar_select %p182, %s18, 1
      %p184 = scmp.lt.s32.totalorder %s181, 1
      %s185 = scalar_select %p184, %s181, 1
      %s186 = smul.addr %s183, 2
      %s187 = sadd.s32 %s185, %s186
      %s188 = smul.addr %s187, 8
      %s189 = scalar_lea.vmem %s3, %s188
      %s190 = smul.u32 2, %s19
      %p191 = scmp.lt.s32.totalorder %s18, 1
      %s192 = scalar_select %p191, %s18, 1
      %p193 = scmp.lt.s32.totalorder %s190, 1
      %s194 = scalar_select %p193, %s190, 1
      %s195 = smul.addr %s192, 2
      %s196 = sadd.s32 %s194, %s195
      %s197 = smul.addr %s196, 8
      %s198 = scalar_lea.vmem %s0, %s197
      %s199 = smul.u32 2, %s19
      %s200 = smul.u32 2, %s19
      %p201 = scmp.lt.s32.totalorder %s18, 1
      %s202 = scalar_select %p201, %s18, 1
      %p203 = scmp.lt.s32.totalorder %s200, 1
      %s204 = scalar_select %p203, %s200, 1
      %s205 = smul.addr %s202, 2
      %s206 = sadd.s32 %s204, %s205
      %s207 = smul.addr %s206, 8
      %s208 = scalar_lea.vmem %s3, %s207
      %s209 = smul.u32 2, %s19
      %v210 = vld [vmem:[%s198] sm:$0xff]
      %v211 = vld [vmem:[%s198 + $0x8] sm:$0xff]
      %v212 = vrot.slane %v210, 4
      %v213 = vadd.f32 %v210, %v212
      %v214 = vrot.slane %v213, 2
      %v215 = vadd.f32 %v213, %v214
      %v216 = vrot.slane %v215, 1
      %v217 = vadd.f32 %v215, %v216
      %v218 = vrot.slane %v211, 4
      %v219 = vadd.f32 %v211, %v218
      %v220 = vrot.slane %v219, 2
      %v221 = vadd.f32 %v219, %v220
      %v222 = vrot.slane %v221, 1
      %v223 = vadd.f32 %v221, %v222
      %v224 = vrcp.pop 8.0
      %v225 = vmul.f32 %v217, %v224
      %v226 = vmul.f32 %v223, %v224
      %v227 = vsub.f32 %v210, %v225
      %v228 = vsub.f32 %v211, %v226
      %v229 = vmul.f32 %v227, %v227
      %v230 = vmul.f32 %v228, %v228
      %v231 = vrot.slane %v229, 4
      %v232 = vadd.f32 %v229, %v231
      %v233 = vrot.slane %v232, 2
      %v234 = vadd.f32 %v232, %v233
      %v235 = vrot.slane %v234, 1
      %v236 = vadd.f32 %v234, %v235
      %v237 = vrot.slane %v230, 4
      %v238 = vadd.f32 %v230, %v237
      %v239 = vrot.slane %v238, 2
      %v240 = vadd.f32 %v238, %v239
      %v241 = vrot.slane %v240, 1
      %v242 = vadd.f32 %v240, %v241
      %v243 = vmul.f32 %v236, %v224
      %v244 = vmul.f32 %v242, %v224
      %v245 = vadd.f32 %v243, 1e-05
      %v246 = vadd.f32 %v244, 1e-05
      %v247 = vrsqrt.pop %v245
      %v248 = vrsqrt.pop %v246
      %v249 = vmul.f32 %v227, %v247
      %v250 = vmul.f32 %v228, %v248
      %v251 = vld [vmem:[%s1] sm:$0xff]
      %253 = vset.pattern.permute.xlu0 0
      %254 = vperm.xlu0 %253, %v251
      %v255 = vpop.permute.xlu0 %254
      %v257 = vmul.f32 %v249, %v255
      %v258 = vmul.f32 %v250, %v255
      %v259 = vld [vmem:[%s2] sm:$0xff]
      %261 = vset.pattern.permute.xlu0 0
      %262 = vperm.xlu0 %261, %v259
      %v263 = vpop.permute.xlu0 %262
      %v265 = vadd.f32 %v257, %v263
      %v266 = vadd.f32 %v258, %v263
      %v267 = vmul.f32 %v265, 0.5
      %v268 = vmul.f32 %v266, 0.5
      %v269 = vmul.f32 %v265, 0.044715
      %v270 = vmul.f32 %v266, 0.044715
      %v271 = vmul.f32 %v269, %v265
      %v272 = vmul.f32 %v270, %v266
      %v273 = vmul.f32 %v271, %v265
      %v274 = vmul.f32 %v272, %v266
      %v275 = vadd.f32 %v265, %v273
      %v276 = vadd.f32 %v266, %v274
      %v277 = vmul.f32 %v275, 0.7978846
      %v278 = vmul.f32 %v276, 0.7978846
      %v279 = vtanh.pop %v277
      %v280 = vtanh.pop %v278
      %v281 = vadd.f32 %v279, 1.0
      %v282 = vadd.f32 %v280, 1.0
      %v283 = vmul.f32 %v267, %v281
      %v284 = vmul.f32 %v268, %v282
      %285 = vst [vmem:[%s208] sm:$0xff] %v283
      %286 = vst [vmem:[%s208 + $0x8] sm:$0xff] %v284
      %s287 = smul.u32 2, %s19
      %p288 = scmp.lt.s32.totalorder %s18, 1
      %s289 = scalar_select %p288, %s18, 1
      %p290 = scmp.lt.s32.totalorder %s287, 1
      %s291 = scalar_select %p290, %s287, 1
      %s292 = smul.addr %s289, 2
      %s293 = sadd.s32 %s291, %s292
      %s294 = smul.addr %s293, 8
      %s295 = scalar_lea.vmem %s3, %s294
      // Predicated region
      $region33: #{speech_model_forward.16} parent=31 // pred_check
        %p296 = pneg %p116
      $region34: #{speech_model_forward.16} parent=31 // pred_check_branch
        %298 = sbr.rel (%p296) target = $region36
      $region35: #{speech_model_forward.16} parent=31 // pred_region
        %s299 = smul.u32 2, %s19
      $region36: #{speech_model_forward.16} parent=31 // pred_fallthru
        _
    $region32: #{speech_model_forward.16} parent=5 // pred_fallthru
      _
    %p300 = scmp.le.s32.totalorder 2, %s9
    // Predicated region
    $region37: #{speech_model_forward.16} parent=5 // pred_check
      %p301 = pneg %p300
    $region38: #{speech_model_forward.16} parent=5 // pred_check_branch
      %303 = sbr.rel (%p301) target = $region40
    $region39: #{speech_model_forward.16} parent=5 // pred_region
      %s304 = ssub.s32 %s9, 2
      // Predicated region
      $region41: #{speech_model_forward.16} parent=39 // pred_check
        %p305 = pneg %p122
      $region42: #{speech_model_forward.16} parent=39 // pred_check_branch
        %307 = sbr.rel (%p305) target = $region44
      $region43: #{speech_model_forward.16} parent=39 // pred_region
        %s308 = smul.u32 2, %s21
        %p309 = scmp.lt.s32.totalorder %s20, 1
        %s310 = scalar_select %p309, %s20, 1
        %p311 = scmp.lt.s32.totalorder %s308, 1
        %s312 = scalar_select %p311, %s308, 1
        %s313 = smul.addr %s310, 2
        %s314 = sadd.s32 %s312, %s313
        %s315 = smul.addr %s314, 8
        %s316 = scalar_lea.vmem %s3, %s315
      $region44: #{speech_model_forward.16} parent=39 // pred_fallthru
        _
    $region40: #{speech_model_forward.16} parent=5 // pred_fallthru
      _
  $region6: #{speech_model_forward.16} parent=0 // loop_footer
    %s13 = sadd.s32 1, %s9
  $region7: #{speech_model_forward.16} parent=0 // loop_footer_branch
    %8 = sbr.rel target = $region3
  $region8: #{speech_model_forward.16} parent=0 // loop_exit
    _

// kernel: speech_model_forward.15
$region0: #{speech_model_forward.15}
  #allocation0 [shape = 'u32[]', space=smem, size = 0x4, offset = 0x4, fixed_abs, tag = 'smem constant byte address 0x4 - core index']
  #allocation1 [shape = 'u32[144,128]{1,0:T(1,128)}', space=vmem, size = 0x12000, scoped, tag = 'internal scratch']
  %s0 = inlined_call_operand.vmem [shape: bf16[128,9], index: 0, kind: input, shape index: {}]
  %s1 = inlined_call_operand.vmem [shape: bf16[9,32], index: 1, kind: input, shape index: {}]
  %s2 = inlined_call_operand.vmem [shape: f32[1,32], index: 2, kind: input, shape index: {}]
  %s3 = inlined_call_operand.vmem [shape: f32[128,32], index: 3, kind: output, shape index: {}]
  %s4 = sld [smem:[#allocation0]]
  $region22: #{speech_model_forward.15} parent=0
    _
  %s6 = ssub.s32 1, %s4
  %s7 = scalar_select 0, %s6, %s4
  // Predicated region
  $region2: #{speech_model_forward.15} parent=0 // pred_check
    _
  $region3: #{speech_model_forward.15} parent=0 // pred_check_branch
    %9 = sbr.rel (0) target = $region5
  $region4: #{speech_model_forward.15} parent=0 // pred_region
    _
  $region5: #{speech_model_forward.15} parent=0 // pred_fallthru
    _
  // Predicated region
  $region6: #{speech_model_forward.15} parent=0 // pred_check
    _
  $region7: #{speech_model_forward.15} parent=0 // pred_check_branch
    %11 = sbr.rel (0) target = $region9
  $region8: #{speech_model_forward.15} parent=0 // pred_region
    _
  $region9: #{speech_model_forward.15} parent=0 // pred_fallthru
    _
  // Predicated region
  $region10: #{speech_model_forward.15} parent=0 // pred_check
    _
  $region11: #{speech_model_forward.15} parent=0 // pred_check_branch
    %13 = sbr.rel (0) target = $region13
  $region12: #{speech_model_forward.15} parent=0 // pred_region
    _
  $region13: #{speech_model_forward.15} parent=0 // pred_fallthru
    _
  %v15 = vld [vmem:[%s0] sm:$0xf]
  %v16 = vld [vmem:[%s0 + $0x4] sm:$0xf]
  %v17 = vld [vmem:[%s0 + $0x8] sm:$0xf]
  %v18 = vld [vmem:[%s0 + $0xc] sm:$0xf]
  %v19 = vld [vmem:[%s0 + $0x10] sm:$0xf]
  %v20 = vld [vmem:[%s0 + $0x14] sm:$0xf]
  %v21 = vld [vmem:[%s0 + $0x18] sm:$0xf]
  %v22 = vld [vmem:[%s0 + $0x1c] sm:$0xf]
  %v23 = vld [vmem:[%s0 + $0x20] sm:$0xf]
  %v24 = vld [vmem:[%s0 + $0x24] sm:$0xf]
  %v25 = vld [vmem:[%s0 + $0x28] sm:$0xf]
  %v26 = vld [vmem:[%s0 + $0x2c] sm:$0xf]
  %v27 = vld [vmem:[%s0 + $0x30] sm:$0xf]
  %v28 = vld [vmem:[%s0 + $0x34] sm:$0xf]
  %v29 = vld [vmem:[%s0 + $0x38] sm:$0xf]
  %v30 = vld [vmem:[%s0 + $0x3c] sm:$0xf]
  %v31 = vld [vmem:[%s1] sm:$0xf]
  %v32 = vld [vmem:[%s1 + $0x4] sm:$0x1]
  %v33 = vld [vmem:[%s2] sm:$0x1]
  %v35 = vlaneseq
  %v36 = vshrl.u32 %v35, 7
  %v37 = vsub.s32 0, %v36
  %v38 = vrot.slane %v33, %v37
  %v56 = vunpack.c.l.b16 %v15
  %v57 = vunpack.c.l.b16 %v16
  %v58 = vunpack.c.l.b16 %v17
  %v59 = vunpack.c.l.b16 %v18
  %v60 = vunpack.c.l.b16 %v19
  %v61 = vunpack.c.l.b16 %v20
  %v62 = vunpack.c.l.b16 %v21
  %v63 = vunpack.c.l.b16 %v22
  %v64 = vunpack.c.l.b16 %v23
  %v65 = vunpack.c.l.b16 %v24
  %v66 = vunpack.c.l.b16 %v25
  %v67 = vunpack.c.l.b16 %v26
  %v68 = vunpack.c.l.b16 %v27
  %v69 = vunpack.c.l.b16 %v28
  %v70 = vunpack.c.l.b16 %v29
  %v71 = vunpack.c.l.b16 %v30
  %v72 = vpack.c.b16 %v57, %v56
  %v73 = vpack.c.b16 %v59, %v58
  %v74 = vpack.c.b16 %v61, %v60
  %v75 = vpack.c.b16 %v63, %v62
  %v76 = vpack.c.b16 %v65, %v64
  %v77 = vpack.c.b16 %v67, %v66
  %v78 = vpack.c.b16 %v69, %v68
  %v79 = vpack.c.b16 %v71, %v70
  %v82 = vunpack.c.l.b16 %v31
  %v83 = vunpack.c.l.b16 %v32
  %v84 = vpack.c.b16 %v83, %v82
  %vm85 = vcmask 72704
  %v87 = vsel %vm85, %v72, 0
  %v90 = vsel %vm85, %v73, 0
  %v93 = vsel %vm85, %v74, 0
  %v96 = vsel %vm85, %v75, 0
  %v99 = vsel %vm85, %v76, 0
  %v102 = vsel %vm85, %v77, 0
  %v105 = vsel %vm85, %v78, 0
  %v108 = vsel %vm85, %v79, 0
  %vm110 = vcmask 1043456
  %vm111 = vcmask 1044480
  %v112 = vsel %vm110, 4294967295, 65535
  %v113 = vsel %vm111, %v112, 0
  %v115 = vand.u32 %v84, %v113
  %117 = vmatprep.subr.bf16.mxu0 0
  %118 = vmatpush1.bf16.msra.mxu0 %v115
  %119 = vmatprep.subr.bf16.mxu0 0
  %120 = vmatpush1.bf16.msra.mxu0 0
  %121 = vmatprep.subr.bf16.mxu0 0
  %122 = vmatpush1.bf16.msra.mxu0 0
  %123 = vmatprep.subr.bf16.mxu0 0
  %124 = vmatpush1.bf16.msra.mxu0 0
  %125 = vmatprep.subr.bf16.mxu0 0
  %126 = vmatpush1.bf16.msra.mxu0 0
  %127 = vmatprep.subr.bf16.mxu0 0
  %128 = vmatpush1.bf16.msra.mxu0 0
  %129 = vmatprep.subr.bf16.mxu0 0
  %130 = vmatpush1.bf16.msra.mxu0 0
  %131 = vmatprep.subr.bf16.mxu0 0
  %132 = vmatpush1.bf16.msra.mxu0 0
  %133 = vmatprep.subr.bf16.mxu0 0
  %134 = vmatpush1.bf16.msra.mxu0 0
  %135 = vmatprep.subr.bf16.mxu0 0
  %136 = vmatpush1.bf16.msra.mxu0 0
  %137 = vmatprep.subr.bf16.mxu0 0
  %138 = vmatpush1.bf16.msra.mxu0 0
  %139 = vmatprep.subr.bf16.mxu0 0
  %140 = vmatpush1.bf16.msra.mxu0 0
  %141 = vmatprep.subr.bf16.mxu0 0
  %142 = vmatpush1.bf16.msra.mxu0 0
  %143 = vmatprep.subr.bf16.mxu0 0
  %144 = vmatpush1.bf16.msra.mxu0 0
  %145 = vmatprep.subr.bf16.mxu0 0
  %146 = vmatpush1.bf16.msra.mxu0 0
  %147 = vmatprep.subr.bf16.mxu0 0
  %148 = vmatpush1.bf16.msra.mxu0 0
  %149 = vmatprep.mubr.bf16.mxu0 0
  %150 = vmatmul.mubr.bf16.gmra.mrb[0].mxu0 %v87
  %v151 = vpop.f32.mrb[0].mxu0
  %v152 = vadd.f32 %v38, %v151
  %v153 = vpop.f32.mrb[0].mxu0
  %v154 = vpop.f32.mrb[0].mxu0
  %v155 = vadd.f32 %v38, %v154
  %v156 = vpop.f32.mrb[0].mxu0
  %157 = vmatprep.mubr.bf16.mxu0 0
  %158 = vmatmul.mubr.bf16.gmra.mrb[0].mxu0 %v90
  %v159 = vpop.f32.mrb[0].mxu0
  %v160 = vadd.f32 %v38, %v159
  %v161 = vpop.f32.mrb[0].mxu0
  %v162 = vpop.f32.mrb[0].mxu0
  %v163 = vadd.f32 %v38, %v162
  %v164 = vpop.f32.mrb[0].mxu0
  %165 = vmatprep.mubr.bf16.mxu0 0
  %166 = vmatmul.mubr.bf16.gmra.mrb[0].mxu0 %v93
  %v167 = vpop.f32.mrb[0].mxu0
  %v168 = vadd.f32 %v38, %v167
  %v169 = vpop.f32.mrb[0].mxu0
  %v170 = vpop.f32.mrb[0].mxu0
  %v171 = vadd.f32 %v38, %v170
  %v172 = vpop.f32.mrb[0].mxu0
  %173 = vmatprep.mubr.bf16.mxu0 0
  %174 = vmatmul.mubr.bf16.gmra.mrb[0].mxu0 %v96
  %v175 = vpop.f32.mrb[0].mxu0
  %v176 = vadd.f32 %v38, %v175
  %v177 = vpop.f32.mrb[0].mxu0
  %v178 = vpop.f32.mrb[0].mxu0
  %v179 = vadd.f32 %v38, %v178
  %v180 = vpop.f32.mrb[0].mxu0
  %181 = vmatprep.mubr.bf16.mxu0 0
  %182 = vmatmul.mubr.bf16.gmra.mrb[0].mxu0 %v99
  %v183 = vpop.f32.mrb[0].mxu0
  %v184 = vadd.f32 %v38, %v183
  %v185 = vpop.f32.mrb[0].mxu0
  %v186 = vpop.f32.mrb[0].mxu0
  %v187 = vadd.f32 %v38, %v186
  %v188 = vpop.f32.mrb[0].mxu0
  %189 = vmatprep.mubr.bf16.mxu0 0
  %190 = vmatmul.mubr.bf16.gmra.mrb[0].mxu0 %v102
  %v191 = vpop.f32.mrb[0].mxu0
  %v192 = vadd.f32 %v38, %v191
  %v193 = vpop.f32.mrb[0].mxu0
  %v194 = vpop.f32.mrb[0].mxu0
  %v195 = vadd.f32 %v38, %v194
  %v196 = vpop.f32.mrb[0].mxu0
  %197 = vmatprep.mubr.bf16.mxu0 0
  %198 = vmatmul.mubr.bf16.gmra.mrb[0].mxu0 %v105
  %v199 = vpop.f32.mrb[0].mxu0
  %v200 = vadd.f32 %v38, %v199
  %v201 = vpop.f32.mrb[0].mxu0
  %v202 = vpop.f32.mrb[0].mxu0
  %v203 = vadd.f32 %v38, %v202
  %v204 = vpop.f32.mrb[0].mxu0
  %205 = vmatprep.mubr.bf16.mxu0 0
  %206 = vmatmul.mubr.bf16.gmra.mrb[0].mxu0 %v108
  %v207 = vpop.f32.mrb[0].mxu0
  %v208 = vadd.f32 %v38, %v207
  %v209 = vpop.f32.mrb[0].mxu0
  %v210 = vpop.f32.mrb[0].mxu0
  %v211 = vadd.f32 %v38, %v210
  %v212 = vpop.f32.mrb[0].mxu0
  %213 = vdwg.mxu0
  %vm214 = vcmask 261120
  %215 = vst.msk [vmem:[%s3] sm:$0xff] %vm214, %v152
  %216 = vst.msk [vmem:[%s3 + $0x8] sm:$0xff] %vm214, %v155
  %217 = vst.msk [vmem:[%s3 + $0x10] sm:$0xff] %vm214, %v160
  %218 = vst.msk [vmem:[%s3 + $0x18] sm:$0xff] %vm214, %v163
  %219 = vst.msk [vmem:[%s3 + $0x20] sm:$0xff] %vm214, %v168
  %220 = vst.msk [vmem:[%s3 + $0x28] sm:$0xff] %vm214, %v171
  %221 = vst.msk [vmem:[%s3 + $0x30] sm:$0xff] %vm214, %v176
  %222 = vst.msk [vmem:[%s3 + $0x38] sm:$0xff] %vm214, %v179
  %223 = vst.msk [vmem:[%s3 + $0x40] sm:$0xff] %vm214, %v184
  %224 = vst.msk [vmem:[%s3 + $0x48] sm:$0xff] %vm214, %v187
  %225 = vst.msk [vmem:[%s3 + $0x50] sm:$0xff] %vm214, %v192
  %226 = vst.msk [vmem:[%s3 + $0x58] sm:$0xff] %vm214, %v195
  %227 = vst.msk [vmem:[%s3 + $0x60] sm:$0xff] %vm214, %v200
  %228 = vst.msk [vmem:[%s3 + $0x68] sm:$0xff] %vm214, %v203
  %229 = vst.msk [vmem:[%s3 + $0x70] sm:$0xff] %vm214, %v208
  %230 = vst.msk [vmem:[%s3 + $0x78] sm:$0xff] %vm214, %v211
  // Predicated region
  $region14: #{speech_model_forward.15} parent=0 // pred_check
    _
  $region15: #{speech_model_forward.15} parent=0 // pred_check_branch
    %232 = sbr.rel (0) target = $region17
  $region16: #{speech_model_forward.15} parent=0 // pred_region
    _
  $region17: #{speech_model_forward.15} parent=0 // pred_fallthru
    _
  // Predicated region
  $region18: #{speech_model_forward.15} parent=0 // pred_check
    _
  $region19: #{speech_model_forward.15} parent=0 // pred_check_branch
    %234 = sbr.rel (0) target = $region21
  $region20: #{speech_model_forward.15} parent=0 // pred_region
    _
  $region21: #{speech_model_forward.15} parent=0 // pred_fallthru
    _

// kernel: speech_model_forward.19
$region0: #{speech_model_forward.19}
  #allocation0 [shape = 'u32[]', space=smem, size = 0x4, offset = 0x4, fixed_abs, tag = 'smem constant byte address 0x4 - core index']
  #allocation1 [shape = 'u32[144,128]{1,0:T(1,128)}', space=vmem, size = 0x12000, scoped, tag = 'internal scratch']
  %s0 = inlined_call_operand.vmem [shape: bf16[128,288], index: 0, kind: input, shape index: {}]
  %s1 = inlined_call_operand.vmem [shape: bf16[288,32], index: 1, kind: input, shape index: {}]
  %s2 = inlined_call_operand.vmem [shape: f32[1,32], index: 2, kind: input, shape index: {}]
  %s3 = inlined_call_operand.vmem [shape: f32[128,32], index: 3, kind: input, shape index: {}]
  %s4 = inlined_call_operand.vmem [shape: f32[128,32], index: 4, kind: output, shape index: {}]
  %s5 = sld [smem:[#allocation0]]
  $region26: #{speech_model_forward.19} parent=0
    _
  %s7 = ssub.s32 1, %s5
  %s8 = scalar_select 0, %s7, %s5
  // Predicated region
  $region2: #{speech_model_forward.19} parent=0 // pred_check
    _
  $region3: #{speech_model_forward.19} parent=0 // pred_check_branch
    %10 = sbr.rel (0) target = $region5
  $region4: #{speech_model_forward.19} parent=0 // pred_region
    _
  $region5: #{speech_model_forward.19} parent=0 // pred_fallthru
    _
  // Predicated region
  $region6: #{speech_model_forward.19} parent=0 // pred_check
    _
  $region7: #{speech_model_forward.19} parent=0 // pred_check_branch
    %12 = sbr.rel (0) target = $region9
  $region8: #{speech_model_forward.19} parent=0 // pred_region
    _
  $region9: #{speech_model_forward.19} parent=0 // pred_fallthru
    _
  // Predicated region
  $region10: #{speech_model_forward.19} parent=0 // pred_check
    _
  $region11: #{speech_model_forward.19} parent=0 // pred_check_branch
    %14 = sbr.rel (0) target = $region13
  $region12: #{speech_model_forward.19} parent=0 // pred_region
    _
  $region13: #{speech_model_forward.19} parent=0 // pred_fallthru
    _
  // Predicated region
  $region14: #{speech_model_forward.19} parent=0 // pred_check
    _
  $region15: #{speech_model_forward.19} parent=0 // pred_check_branch
    %16 = sbr.rel (0) target = $region17
  $region16: #{speech_model_forward.19} parent=0 // pred_region
    _
  $region17: #{speech_model_forward.19} parent=0 // pred_fallthru
    _
  %v18 = vld [vmem:[%s0] sm:$0xff]
  %v19 = vld [vmem:[%s0 + $0x8] sm:$0xf]
  %v20 = vld [vmem:[%s0 + $0xc] sm:$0xff]
  %v21 = vld [vmem:[%s0 + $0x14] sm:$0xf]
  %v22 = vld [vmem:[%s0 + $0x18] sm:$0xff]
  %v23 = vld [vmem:[%s0 + $0x20] sm:$0xf]
  %v24 = vld [vmem:[%s0 + $0x24] sm:$0xff]
  %v25 = vld [vmem:[%s0 + $0x2c] sm:$0xf]
  %v26 = vld [vmem:[%s0 + $0x30] sm:$0xff]
  %v27 = vld [vmem:[%s0 + $0x38] sm:$0xf]
  %v28 = vld [vmem:[%s0 + $0x3c] sm:$0xff]
  %v29 = vld [vmem:[%s0 + $0x44] sm:$0xf]
  %v30 = vld [vmem:[%s0 + $0x48] sm:$0xff]
  %v31 = vld [vmem:[%s0 + $0x50] sm:$0xf]
  %v32 = vld [vmem:[%s0 + $0x54] sm:$0xff]
  %v33 = vld [vmem:[%s0 + $0x5c] sm:$0xf]
  %v34 = vld [vmem:[%s0 + $0x60] sm:$0xff]
  %v35 = vld [vmem:[%s0 + $0x68] sm:$0xf]
  %v36 = vld [vmem:[%s0 + $0x6c] sm:$0xff]
  %v37 = vld [vmem:[%s0 + $0x74] sm:$0xf]
  %v38 = vld [vmem:[%s0 + $0x78] sm:$0xff]
  %v39 = vld [vmem:[%s0 + $0x80] sm:$0xf]
  %v40 = vld [vmem:[%s0 + $0x84] sm:$0xff]
  %v41 = vld [vmem:[%s0 + $0x8c] sm:$0xf]
  %v42 = vld [vmem:[%s0 + $0x90] sm:$0xff]
  %v43 = vld [vmem:[%s0 + $0x98] sm:$0xf]
  %v44 = vld [vmem:[%s0 + $0x9c] sm:$0xff]
  %v45 = vld [vmem:[%s0 + $0xa4] sm:$0xf]
  %v46 = vld [vmem:[%s0 + $0xa8] sm:$0xff]
  %v47 = vld [vmem:[%s0 + $0xb0] sm:$0xf]
  %v48 = vld [vmem:[%s0 + $0xb4] sm:$0xff]
  %v49 = vld [vmem:[%s0 + $0xbc] sm:$0xf]
  %v50 = vld [vmem:[%s1] sm:$0xf]
  %v51 = vld [vmem:[%s1 + $0x4] sm:$0xf]
  %v52 = vld [vmem:[%s1 + $0x8] sm:$0xf]
  %v53 = vld [vmem:[%s1 + $0xc] sm:$0xf]
  %v54 = vld [vmem:[%s1 + $0x10] sm:$0xf]
  %v55 = vld [vmem:[%s1 + $0x14] sm:$0xf]
  %v56 = vld [vmem:[%s1 + $0x18] sm:$0xf]
  %v57 = vld [vmem:[%s1 + $0x1c] sm:$0xf]
  %v58 = vld [vmem:[%s1 + $0x20] sm:$0xf]
  %v59 = vld [vmem:[%s1 + $0x24] sm:$0xf]
  %v60 = vld [vmem:[%s1 + $0x28] sm:$0xf]
  %v61 = vld [vmem:[%s1 + $0x2c] sm:$0xf]
  %v62 = vld [vmem:[%s1 + $0x30] sm:$0xf]
  %v63 = vld [vmem:[%s1 + $0x34] sm:$0xf]
  %v64 = vld [vmem:[%s1 + $0x38] sm:$0xf]
  %v65 = vld [vmem:[%s1 + $0x3c] sm:$0xf]
  %v66 = vld [vmem:[%s1 + $0x40] sm:$0xf]
  %v67 = vld [vmem:[%s1 + $0x44] sm:$0xf]
  %v68 = vld [vmem:[%s1 + $0x48] sm:$0xf]
  %v69 = vld [vmem:[%s1 + $0x4c] sm:$0xf]
  %v70 = vld [vmem:[%s1 + $0x50] sm:$0xf]
  %v71 = vld [vmem:[%s1 + $0x54] sm:$0xf]
  %v72 = vld [vmem:[%s1 + $0x58] sm:$0xf]
  %v73 = vld [vmem:[%s1 + $0x5c] sm:$0xf]
  %v74 = vld [vmem:[%s1 + $0x60] sm:$0xf]
  %v75 = vld [vmem:[%s1 + $0x64] sm:$0xf]
  %v76 = vld [vmem:[%s1 + $0x68] sm:$0xf]
  %v77 = vld [vmem:[%s1 + $0x6c] sm:$0xf]
  %v78 = vld [vmem:[%s1 + $0x70] sm:$0xf]
  %v79 = vld [vmem:[%s1 + $0x74] sm:$0xf]
  %v80 = vld [vmem:[%s1 + $0x78] sm:$0xf]
  %v81 = vld [vmem:[%s1 + $0x7c] sm:$0xf]
  %v82 = vld [vmem:[%s1 + $0x80] sm:$0xf]
  %v83 = vld [vmem:[%s1 + $0x84] sm:$0xf]
  %v84 = vld [vmem:[%s1 + $0x88] sm:$0xf]
  %v85 = vld [vmem:[%s1 + $0x8c] sm:$0xf]
  %v86 = vld [vmem:[%s2] sm:$0x1]
  %v88 = vlaneseq
  %v89 = vshrl.u32 %v88, 7
  %v90 = vsub.s32 0, %v89
  %v91 = vrot.slane %v86, %v90
  %v125 = vunpack.c.l.b16 %v18
  %v126 = vunpack.c.h.b16 %v18
  %v127 = vunpack.c.l.b16 %v19
  %v128 = vunpack.c.l.b16 %v20
  %v129 = vunpack.c.h.b16 %v20
  %v130 = vunpack.c.l.b16 %v21
  %v131 = vunpack.c.l.b16 %v22
  %v132 = vunpack.c.h.b16 %v22
  %v133 = vunpack.c.l.b16 %v23
  %v134 = vunpack.c.l.b16 %v24
  %v135 = vunpack.c.h.b16 %v24
  %v136 = vunpack.c.l.b16 %v25
  %v137 = vunpack.c.l.b16 %v26
  %v138 = vunpack.c.h.b16 %v26
  %v139 = vunpack.c.l.b16 %v27
  %v140 = vunpack.c.l.b16 %v28
  %v141 = vunpack.c.h.b16 %v28
  %v142 = vunpack.c.l.b16 %v29
  %v143 = vunpack.c.l.b16 %v30
  %v144 = vunpack.c.h.b16 %v30
  %v145 = vunpack.c.l.b16 %v31
  %v146 = vunpack.c.l.b16 %v32
  %v147 = vunpack.c.h.b16 %v32
  %v148 = vunpack.c.l.b16 %v33
  %v149 = vunpack.c.l.b16 %v34
  %v150 = vunpack.c.h.b16 %v34
  %v151 = vunpack.c.l.b16 %v35
  %v152 = vunpack.c.l.b16 %v36
  %v153 = vunpack.c.h.b16 %v36
  %v154 = vunpack.c.l.b16 %v37
  %v155 = vunpack.c.l.b16 %v38
  %v156 = vunpack.c.h.b16 %v38
  %v157 = vunpack.c.l.b16 %v39
  %v158 = vunpack.c.l.b16 %v40
  %v159 = vunpack.c.h.b16 %v40
  %v160 = vunpack.c.l.b16 %v41
  %v161 = vunpack.c.l.b16 %v42
  %v162 = vunpack.c.h.b16 %v42
  %v163 = vunpack.c.l.b16 %v43
  %v164 = vunpack.c.l.b16 %v44
  %v165 = vunpack.c.h.b16 %v44
  %v166 = vunpack.c.l.b16 %v45
  %v167 = vunpack.c.l.b16 %v46
  %v168 = vunpack.c.h.b16 %v46
  %v169 = vunpack.c.l.b16 %v47
  %v170 = vunpack.c.l.b16 %v48
  %v171 = vunpack.c.h.b16 %v48
  %v172 = vunpack.c.l.b16 %v49
  %v173 = vpack.c.b16 %v128, %v125
  %v174 = vpack.c.b16 %v129, %v126
  %v175 = vpack.c.b16 %v130, %v127
  %v176 = vpack.c.b16 %v134, %v131
  %v177 = vpack.c.b16 %v135, %v132
  %v178 = vpack.c.b16 %v136, %v133
  %v179 = vpack.c.b16 %v140, %v137
  %v180 = vpack.c.b16 %v141, %v138
  %v181 = vpack.c.b16 %v142, %v139
  %v182 = vpack.c.b16 %v146, %v143
  %v183 = vpack.c.b16 %v147, %v144
  %v184 = vpack.c.b16 %v148, %v145
  %v185 = vpack.c.b16 %v152, %v149
  %v186 = vpack.c.b16 %v153, %v150
  %v187 = vpack.c.b16 %v154, %v151
  %v188 = vpack.c.b16 %v158, %v155
  %v189 = vpack.c.b16 %v159, %v156
  %v190 = vpack.c.b16 %v160, %v157
  %v191 = vpack.c.b16 %v164, %v161
  %v192 = vpack.c.b16 %v165, %v162
  %v193 = vpack.c.b16 %v166, %v163
  %v194 = vpack.c.b16 %v170, %v167
  %v195 = vpack.c.b16 %v171, %v168
  %v196 = vpack.c.b16 %v172, %v169
  %v249 = vunpack.c.l.b16 %v50
  %v250 = vunpack.c.l.b16 %v51
  %v251 = vunpack.c.l.b16 %v52
  %v252 = vunpack.c.l.b16 %v53
  %v253 = vunpack.c.l.b16 %v54
  %v254 = vunpack.c.l.b16 %v55
  %v255 = vunpack.c.l.b16 %v56
  %v256 = vunpack.c.l.b16 %v57
  %v257 = vunpack.c.l.b16 %v58
  %v258 = vunpack.c.l.b16 %v59
  %v259 = vunpack.c.l.b16 %v60
  %v260 = vunpack.c.l.b16 %v61
  %v261 = vunpack.c.l.b16 %v62
  %v262 = vunpack.c.l.b16 %v63
  %v263 = vunpack.c.l.b16 %v64
  %v264 = vunpack.c.l.b16 %v65
  %v265 = vunpack.c.l.b16 %v66
  %v266 = vunpack.c.l.b16 %v67
  %v267 = vunpack.c.l.b16 %v68
  %v268 = vunpack.c.l.b16 %v69
  %v269 = vunpack.c.l.b16 %v70
  %v270 = vunpack.c.l.b16 %v71
  %v271 = vunpack.c.l.b16 %v72
  %v272 = vunpack.c.l.b16 %v73
  %v273 = vunpack.c.l.b16 %v74
  %v274 = vunpack.c.l.b16 %v75
  %v275 = vunpack.c.l.b16 %v76
  %v276 = vunpack.c.l.b16 %v77
  %v277 = vunpack.c.l.b16 %v78
  %v278 = vunpack.c.l.b16 %v79
  %v279 = vunpack.c.l.b16 %v80
  %v280 = vunpack.c.l.b16 %v81
  %v281 = vunpack.c.l.b16 %v82
  %v282 = vunpack.c.l.b16 %v83
  %v283 = vunpack.c.l.b16 %v84
  %v284 = vunpack.c.l.b16 %v85
  %v285 = vpack.c.b16 %v250, %v249
  %v286 = vpack.c.b16 %v252, %v251
  %v287 = vpack.c.b16 %v254, %v253
  %v288 = vpack.c.b16 %v256, %v255
  %v289 = vpack.c.b16 %v258, %v257
  %v290 = vpack.c.b16 %v260, %v259
  %v291 = vpack.c.b16 %v262, %v261
  %v292 = vpack.c.b16 %v264, %v263
  %v293 = vpack.c.b16 %v266, %v265
  %v294 = vpack.c.b16 %v268, %v267
  %v295 = vpack.c.b16 %v270, %v269
  %v296 = vpack.c.b16 %v272, %v271
  %v297 = vpack.c.b16 %v274, %v273
  %v298 = vpack.c.b16 %v276, %v275
  %v299 = vpack.c.b16 %v278, %v277
  %v300 = vpack.c.b16 %v280, %v279
  %v301 = vpack.c.b16 %v282, %v281
  %v302 = vpack.c.b16 %v284, %v283
  %vm321 = vcmask 261120
  %v323 = vsel %vm321, %v175, 0
  %v326 = vsel %vm321, %v178, 0
  %v329 = vsel %vm321, %v181, 0
  %v332 = vsel %vm321, %v184, 0
  %v335 = vsel %vm321, %v187, 0
  %v338 = vsel %vm321, %v190, 0
  %v341 = vsel %vm321, %v193, 0
  %v344 = vsel %vm321, %v196, 0
  %346 = vmatprep.subr.bf16.mxu0 0
  %347 = vmatpush1.bf16.msra.mxu0 %v285
  %348 = vmatprep.subr.bf16.mxu0 0
  %349 = vmatpush1.bf16.msra.mxu0 %v286
  %350 = vmatprep.subr.bf16.mxu0 0
  %351 = vmatpush1.bf16.msra.mxu0 %v287
  %352 = vmatprep.subr.bf16.mxu0 0
  %353 = vmatpush1.bf16.msra.mxu0 %v288
  %354 = vmatprep.subr.bf16.mxu0 0
  %355 = vmatpush1.bf16.msra.mxu0 %v289
  %356 = vmatprep.subr.bf16.mxu0 0
  %357 = vmatpush1.bf16.msra.mxu0 %v290
  %358 = vmatprep.subr.bf16.mxu0 0
  %359 = vmatpush1.bf16.msra.mxu0 %v291
  %360 = vmatprep.subr.bf16.mxu0 0
  %361 = vmatpush1.bf16.msra.mxu0 %v292
  %362 = vmatprep.subr.bf16.mxu0 0
  %363 = vmatpush1.bf16.msra.mxu0 %v293
  %364 = vmatprep.subr.bf16.mxu0 0
  %365 = vmatpush1.bf16.msra.mxu0 %v294
  %366 = vmatprep.subr.bf16.mxu0 0
  %367 = vmatpush1.bf16.msra.mxu0 %v295
  %368 = vmatprep.subr.bf16.mxu0 0
  %369 = vmatpush1.bf16.msra.mxu0 %v296
  %370 = vmatprep.subr.bf16.mxu0 0
  %371 = vmatpush1.bf16.msra.mxu0 %v297
  %372 = vmatprep.subr.bf16.mxu0 0
  %373 = vmatpush1.bf16.msra.mxu0 %v298
  %374 = vmatprep.subr.bf16.mxu0 0
  %375 = vmatpush1.bf16.msra.mxu0 %v299
  %376 = vmatprep.subr.bf16.mxu0 0
  %377 = vmatpush1.bf16.msra.mxu0 %v300
  %378 = vmatprep.mubr.bf16.mxu0 %v174
  %379 = vmatmul.mubr.bf16.gmra.mrb[0].mxu0 %v173
  %v380 = vpop.f32.mrb[0].mxu0
  %v381 = vadd.f32 %v91, %v380
  %v382 = vpop.f32.mrb[0].mxu0
  %v383 = vpop.f32.mrb[0].mxu0
  %v384 = vadd.f32 %v91, %v383
  %v385 = vpop.f32.mrb[0].mxu0
  %386 = vmatprep.mubr.bf16.mxu0 %v177
  %387 = vmatmul.mubr.bf16.gmra.mrb[0].mxu0 %v176
  %v388 = vpop.f32.mrb[0].mxu0
  %v389 = vadd.f32 %v91, %v388
  %v390 = vpop.f32.mrb[0].mxu0
  %v391 = vpop.f32.mrb[0].mxu0
  %v392 = vadd.f32 %v91, %v391
  %v393 = vpop.f32.mrb[0].mxu0
  %394 = vmatprep.mubr.bf16.mxu0 %v180
  %395 = vmatmul.mubr.bf16.gmra.mrb[0].mxu0 %v179
  %v396 = vpop.f32.mrb[0].mxu0
  %v397 = vadd.f32 %v91, %v396
  %v398 = vpop.f32.mrb[0].mxu0
  %v399 = vpop.f32.mrb[0].mxu0
  %v400 = vadd.f32 %v91, %v399
  %v401 = vpop.f32.mrb[0].mxu0
  %402 = vmatprep.mubr.bf16.mxu0 %v183
  %403 = vmatmul.mubr.bf16.gmra.mrb[0].mxu0 %v182
  %v404 = vpop.f32.mrb[0].mxu0
  %v405 = vadd.f32 %v91, %v404
  %v406 = vpop.f32.mrb[0].mxu0
  %v407 = vpop.f32.mrb[0].mxu0
  %v408 = vadd.f32 %v91, %v407
  %v409 = vpop.f32.mrb[0].mxu0
  %410 = vmatprep.mubr.bf16.mxu0 %v186
  %411 = vmatmul.mubr.bf16.gmra.mrb[0].mxu0 %v185
  %v412 = vpop.f32.mrb[0].mxu0
  %v413 = vadd.f32 %v91, %v412
  %v414 = vpop.f32.mrb[0].mxu0
  %v415 = vpop.f32.mrb[0].mxu0
  %v416 = vadd.f32 %v91, %v415
  %v417 = vpop.f32.mrb[0].mxu0
  %418 = vmatprep.mubr.bf16.mxu0 %v189
  %419 = vmatmul.mubr.bf16.gmra.mrb[0].mxu0 %v188
  %v420 = vpop.f32.mrb[0].mxu0
  %v421 = vadd.f32 %v91, %v420
  %v422 = vpop.f32.mrb[0].mxu0
  %v423 = vpop.f32.mrb[0].mxu0
  %v424 = vadd.f32 %v91, %v423
  %v425 = vpop.f32.mrb[0].mxu0
  %426 = vmatprep.mubr.bf16.mxu0 %v192
  %427 = vmatmul.mubr.bf16.gmra.mrb[0].mxu0 %v191
  %v428 = vpop.f32.mrb[0].mxu0
  %v429 = vadd.f32 %v91, %v428
  %v430 = vpop.f32.mrb[0].mxu0
  %v431 = vpop.f32.mrb[0].mxu0
  %v432 = vadd.f32 %v91, %v431
  %v433 = vpop.f32.mrb[0].mxu0
  %434 = vmatprep.mubr.bf16.mxu0 %v195
  %435 = vmatmul.mubr.bf16.gmra.mrb[0].mxu0 %v194
  %v436 = vpop.f32.mrb[0].mxu0
  %v437 = vadd.f32 %v91, %v436
  %v438 = vpop.f32.mrb[0].mxu0
  %v439 = vpop.f32.mrb[0].mxu0
  %v440 = vadd.f32 %v91, %v439
  %v441 = vpop.f32.mrb[0].mxu0
  %442 = vdwg.mxu0
  %443 = vmatprep.subr.bf16.mxu0 0
  %444 = vmatpush1.bf16.msra.mxu0 %v301
  %445 = vmatprep.subr.bf16.mxu0 0
  %446 = vmatpush1.bf16.msra.mxu0 %v302
  %447 = vmatprep.subr.bf16.mxu0 0
  %448 = vmatpush1.bf16.msra.mxu0 0
  %449 = vmatprep.subr.bf16.mxu0 0
  %450 = vmatpush1.bf16.msra.mxu0 0
  %451 = vmatprep.subr.bf16.mxu0 0
  %452 = vmatpush1.bf16.msra.mxu0 0
  %453 = vmatprep.subr.bf16.mxu0 0
  %454 = vmatpush1.bf16.msra.mxu0 0
  %455 = vmatprep.subr.bf16.mxu0 0
  %456 = vmatpush1.bf16.msra.mxu0 0
  %457 = vmatprep.subr.bf16.mxu0 0
  %458 = vmatpush1.bf16.msra.mxu0 0
  %459 = vmatprep.subr.bf16.mxu0 0
  %460 = vmatpush1.bf16.msra.mxu0 0
  %461 = vmatprep.subr.bf16.mxu0 0
  %462 = vmatpush1.bf16.msra.mxu0 0
  %463 = vmatprep.subr.bf16.mxu0 0
  %464 = vmatpush1.bf16.msra.mxu0 0
  %465 = vmatprep.subr.bf16.mxu0 0
  %466 = vmatpush1.bf16.msra.mxu0 0
  %467 = vmatprep.subr.bf16.mxu0 0
  %468 = vmatpush1.bf16.msra.mxu0 0
  %469 = vmatprep.subr.bf16.mxu0 0
  %470 = vmatpush1.bf16.msra.mxu0 0
  %471 = vmatprep.subr.bf16.mxu0 0
  %472 = vmatpush1.bf16.msra.mxu0 0
  %473 = vmatprep.subr.bf16.mxu0 0
  %474 = vmatpush1.bf16.msra.mxu0 0
  %475 = vmatprep.mubr.bf16.mxu0 0
  %476 = vmatmul.mubr.bf16.gmra.mrb[0].mxu0 %v323
  %v477 = vpop.f32.mrb[0].mxu0
  %v478 = vadd.f32 %v381, %v477
  %v479 = vpop.f32.mrb[0].mxu0
  %v480 = vpop.f32.mrb[0].mxu0
  %v481 = vadd.f32 %v384, %v480
  %v482 = vpop.f32.mrb[0].mxu0
  %483 = vmatprep.mubr.bf16.mxu0 0
  %484 = vmatmul.mubr.bf16.gmra.mrb[0].mxu0 %v326
  %v485 = vpop.f32.mrb[0].mxu0
  %v486 = vadd.f32 %v389, %v485
  %v487 = vpop.f32.mrb[0].mxu0
  %v488 = vpop.f32.mrb[0].mxu0
  %v489 = vadd.f32 %v392, %v488
  %v490 = vpop.f32.mrb[0].mxu0
  %491 = vmatprep.mubr.bf16.mxu0 0
  %492 = vmatmul.mubr.bf16.gmra.mrb[0].mxu0 %v329
  %v493 = vpop.f32.mrb[0].mxu0
  %v494 = vadd.f32 %v397, %v493
  %v495 = vpop.f32.mrb[0].mxu0
  %v496 = vpop.f32.mrb[0].mxu0
  %v497 = vadd.f32 %v400, %v496
  %v498 = vpop.f32.mrb[0].mxu0
  %499 = vmatprep.mubr.bf16.mxu0 0
  %500 = vmatmul.mubr.bf16.gmra.mrb[0].mxu0 %v332
  %v501 = vpop.f32.mrb[0].mxu0
  %v502 = vadd.f32 %v405, %v501
  %v503 = vpop.f32.mrb[0].mxu0
  %v504 = vpop.f32.mrb[0].mxu0
  %v505 = vadd.f32 %v408, %v504
  %v506 = vpop.f32.mrb[0].mxu0
  %507 = vmatprep.mubr.bf16.mxu0 0
  %508 = vmatmul.mubr.bf16.gmra.mrb[0].mxu0 %v335
  %v509 = vpop.f32.mrb[0].mxu0
  %v510 = vadd.f32 %v413, %v509
  %v511 = vpop.f32.mrb[0].mxu0
  %v512 = vpop.f32.mrb[0].mxu0
  %v513 = vadd.f32 %v416, %v512
  %v514 = vpop.f32.mrb[0].mxu0
  %515 = vmatprep.mubr.bf16.mxu0 0
  %516 = vmatmul.mubr.bf16.gmra.mrb[0].mxu0 %v338
  %v517 = vpop.f32.mrb[0].mxu0
  %v518 = vadd.f32 %v421, %v517
  %v519 = vpop.f32.mrb[0].mxu0
  %v520 = vpop.f32.mrb[0].mxu0
  %v521 = vadd.f32 %v424, %v520
  %v522 = vpop.f32.mrb[0].mxu0
  %523 = vmatprep.mubr.bf16.mxu0 0
  %524 = vmatmul.mubr.bf16.gmra.mrb[0].mxu0 %v341
  %v525 = vpop.f32.mrb[0].mxu0
  %v526 = vadd.f32 %v429, %v525
  %v527 = vpop.f32.mrb[0].mxu0
  %v528 = vpop.f32.mrb[0].mxu0
  %v529 = vadd.f32 %v432, %v528
  %v530 = vpop.f32.mrb[0].mxu0
  %531 = vmatprep.mubr.bf16.mxu0 0
  %532 = vmatmul.mubr.bf16.gmra.mrb[0].mxu0 %v344
  %v533 = vpop.f32.mrb[0].mxu0
  %v534 = vadd.f32 %v437, %v533
  %v535 = vpop.f32.mrb[0].mxu0
  %v536 = vpop.f32.mrb[0].mxu0
  %v537 = vadd.f32 %v440, %v536
  %v538 = vpop.f32.mrb[0].mxu0
  %539 = vdwg.mxu0
  %v540 = vld [vmem:[%s3] sm:$0xff]
  %v541 = vld [vmem:[%s3 + $0x8] sm:$0xff]
  %v542 = vld [vmem:[%s3 + $0x10] sm:$0xff]
  %v543 = vld [vmem:[%s3 + $0x18] sm:$0xff]
  %v544 = vld [vmem:[%s3 + $0x20] sm:$0xff]
  %v545 = vld [vmem:[%s3 + $0x28] sm:$0xff]
  %v546 = vld [vmem:[%s3 + $0x30] sm:$0xff]
  %v547 = vld [vmem:[%s3 + $0x38] sm:$0xff]
  %v548 = vld [vmem:[%s3 + $0x40] sm:$0xff]
  %v549 = vld [vmem:[%s3 + $0x48] sm:$0xff]
  %v550 = vld [vmem:[%s3 + $0x50] sm:$0xff]
  %v551 = vld [vmem:[%s3 + $0x58] sm:$0xff]
  %v552 = vld [vmem:[%s3 + $0x60] sm:$0xff]
  %v553 = vld [vmem:[%s3 + $0x68] sm:$0xff]
  %v554 = vld [vmem:[%s3 + $0x70] sm:$0xff]
  %v555 = vld [vmem:[%s3 + $0x78] sm:$0xff]
  %v556 = vadd.f32 %v478, %v540
  %v557 = vadd.f32 %v481, %v541
  %v558 = vadd.f32 %v486, %v542
  %v559 = vadd.f32 %v489, %v543
  %v560 = vadd.f32 %v494, %v544
  %v561 = vadd.f32 %v497, %v545
  %v562 = vadd.f32 %v502, %v546
  %v563 = vadd.f32 %v505, %v547
  %v564 = vadd.f32 %v510, %v548
  %v565 = vadd.f32 %v513, %v549
  %v566 = vadd.f32 %v518, %v550
  %v567 = vadd.f32 %v521, %v551
  %v568 = vadd.f32 %v526, %v552
  %v569 = vadd.f32 %v529, %v553
  %v570 = vadd.f32 %v534, %v554
  %v571 = vadd.f32 %v537, %v555
  %572 = vst.msk [vmem:[%s4] sm:$0xff] %vm321, %v556
  %573 = vst.msk [vmem:[%s4 + $0x8] sm:$0xff] %vm321, %v557
  %574 = vst.msk [vmem:[%s4 + $0x10] sm:$0xff] %vm321, %v558
  %575 = vst.msk [vmem:[%s4 + $0x18] sm:$0xff] %vm321, %v559
  %576 = vst.msk [vmem:[%s4 + $0x20] sm:$0xff] %vm321, %v560
  %577 = vst.msk [vmem:[%s4 + $0x28] sm:$0xff] %vm321, %v561
  %578 = vst.msk [vmem:[%s4 + $0x30] sm:$0xff] %vm321, %v562
  %579 = vst.msk [vmem:[%s4 + $0x38] sm:$0xff] %vm321, %v563
  %580 = vst.msk [vmem:[%s4 + $0x40] sm:$0xff] %vm321, %v564
  %581 = vst.msk [vmem:[%s4 + $0x48] sm:$0xff] %vm321, %v565
  %582 = vst.msk [vmem:[%s4 + $0x50] sm:$0xff] %vm321, %v566
  %583 = vst.msk [vmem:[%s4 + $0x58] sm:$0xff] %vm321, %v567
  %584 = vst.msk [vmem:[%s4 + $0x60] sm:$0xff] %vm321, %v568
  %585 = vst.msk [vmem:[%s4 + $0x68] sm:$0xff] %vm321, %v569
  %586 = vst.msk [vmem:[%s4 + $0x70] sm:$0xff] %vm321, %v570
  %587 = vst.msk [vmem:[%s4 + $0x78] sm:$0xff] %vm321, %v571
  // Predicated region
  $region18: #{speech_model_forward.19} parent=0 // pred_check
    _
  $region19: #{speech_model_forward.19} parent=0 // pred_check_branch
    %589 = sbr.rel (0) target = $region21
  $region20: #{speech_model_forward.19} parent=0 // pred_region
    _
  $region21: #{speech_model_forward.19} parent=0 // pred_fallthru
    _
  // Predicated region
  $region22: #{speech_model_forward.19} parent=0 // pred_check
    _
  $region23: #{speech_model_forward.19} parent=0 // pred_check_branch
    %591 = sbr.rel (0) target = $region25
  $region24: #{speech_model_forward.19} parent=0 // pred_region
    _
  $region25: #{speech_model_forward.19} parent=0 // pred_fallthru
    _

// kernel: speech_model_forward.17
$region0: #{speech_model_forward.17}
  #allocation0 [shape = 'u32[]', space=smem, size = 0x4, offset = 0x4, fixed_abs, tag = 'smem constant byte address 0x4 - core index']
  #allocation1 [shape = 'u32[144,128]{1,0:T(1,128)}', space=vmem, size = 0x12000, scoped, tag = 'internal scratch']
  %s0 = inlined_call_operand.vmem [shape: bf16[128,288], index: 0, kind: input, shape index: {}]
  %s1 = inlined_call_operand.vmem [shape: bf16[288,32], index: 1, kind: input, shape index: {}]
  %s2 = inlined_call_operand.vmem [shape: f32[1,32], index: 2, kind: input, shape index: {}]
  %s3 = inlined_call_operand.vmem [shape: f32[128,32], index: 3, kind: output, shape index: {}]
  %s4 = sld [smem:[#allocation0]]
  $region22: #{speech_model_forward.17} parent=0
    _
  %s6 = ssub.s32 1, %s4
  %s7 = scalar_select 0, %s6, %s4
  // Predicated region
  $region2: #{speech_model_forward.17} parent=0 // pred_check
    _
  $region3: #{speech_model_forward.17} parent=0 // pred_check_branch
    %9 = sbr.rel (0) target = $region5
  $region4: #{speech_model_forward.17} parent=0 // pred_region
    _
  $region5: #{speech_model_forward.17} parent=0 // pred_fallthru
    _
  // Predicated region
  $region6: #{speech_model_forward.17} parent=0 // pred_check
    _
  $region7: #{speech_model_forward.17} parent=0 // pred_check_branch
    %11 = sbr.rel (0) target = $region9
  $region8: #{speech_model_forward.17} parent=0 // pred_region
    _
  $region9: #{speech_model_forward.17} parent=0 // pred_fallthru
    _
  // Predicated region
  $region10: #{speech_model_forward.17} parent=0 // pred_check
    _
  $region11: #{speech_model_forward.17} parent=0 // pred_check_branch
    %13 = sbr.rel (0) target = $region13
  $region12: #{speech_model_forward.17} parent=0 // pred_region
    _
  $region13: #{speech_model_forward.17} parent=0 // pred_fallthru
    _
  %v15 = vld [vmem:[%s0] sm:$0xff]
  %v16 = vld [vmem:[%s0 + $0x8] sm:$0xf]
  %v17 = vld [vmem:[%s0 + $0xc] sm:$0xff]
  %v18 = vld [vmem:[%s0 + $0x14] sm:$0xf]
  %v19 = vld [vmem:[%s0 + $0x18] sm:$0xff]
  %v20 = vld [vmem:[%s0 + $0x20] sm:$0xf]
  %v21 = vld [vmem:[%s0 + $0x24] sm:$0xff]
  %v22 = vld [vmem:[%s0 + $0x2c] sm:$0xf]
  %v23 = vld [vmem:[%s0 + $0x30] sm:$0xff]
  %v24 = vld [vmem:[%s0 + $0x38] sm:$0xf]
  %v25 = vld [vmem:[%s0 + $0x3c] sm:$0xff]
  %v26 = vld [vmem:[%s0 + $0x44] sm:$0xf]
  %v27 = vld [vmem:[%s0 + $0x48] sm:$0xff]
  %v28 = vld [vmem:[%s0 + $0x50] sm:$0xf]
  %v29 = vld [vmem:[%s0 + $0x54] sm:$0xff]
  %v30 = vld [vmem:[%s0 + $0x5c] sm:$0xf]
  %v31 = vld [vmem:[%s0 + $0x60] sm:$0xff]
  %v32 = vld [vmem:[%s0 + $0x68] sm:$0xf]
  %v33 = vld [vmem:[%s0 + $0x6c] sm:$0xff]
  %v34 = vld [vmem:[%s0 + $0x74] sm:$0xf]
  %v35 = vld [vmem:[%s0 + $0x78] sm:$0xff]
  %v36 = vld [vmem:[%s0 + $0x80] sm:$0xf]
  %v37 = vld [vmem:[%s0 + $0x84] sm:$0xff]
  %v38 = vld [vmem:[%s0 + $0x8c] sm:$0xf]
  %v39 = vld [vmem:[%s0 + $0x90] sm:$0xff]
  %v40 = vld [vmem:[%s0 + $0x98] sm:$0xf]
  %v41 = vld [vmem:[%s0 + $0x9c] sm:$0xff]
  %v42 = vld [vmem:[%s0 + $0xa4] sm:$0xf]
  %v43 = vld [vmem:[%s0 + $0xa8] sm:$0xff]
  %v44 = vld [vmem:[%s0 + $0xb0] sm:$0xf]
  %v45 = vld [vmem:[%s0 + $0xb4] sm:$0xff]
  %v46 = vld [vmem:[%s0 + $0xbc] sm:$0xf]
  %v47 = vld [vmem:[%s1] sm:$0xf]
  %v48 = vld [vmem:[%s1 + $0x4] sm:$0xf]
  %v49 = vld [vmem:[%s1 + $0x8] sm:$0xf]
  %v50 = vld [vmem:[%s1 + $0xc] sm:$0xf]
  %v51 = vld [vmem:[%s1 + $0x10] sm:$0xf]
  %v52 = vld [vmem:[%s1 + $0x14] sm:$0xf]
  %v53 = vld [vmem:[%s1 + $0x18] sm:$0xf]
  %v54 = vld [vmem:[%s1 + $0x1c] sm:$0xf]
  %v55 = vld [vmem:[%s1 + $0x20] sm:$0xf]
  %v56 = vld [vmem:[%s1 + $0x24] sm:$0xf]
  %v57 = vld [vmem:[%s1 + $0x28] sm:$0xf]
  %v58 = vld [vmem:[%s1 + $0x2c] sm:$0xf]
  %v59 = vld [vmem:[%s1 + $0x30] sm:$0xf]
  %v60 = vld [vmem:[%s1 + $0x34] sm:$0xf]
  %v61 = vld [vmem:[%s1 + $0x38] sm:$0xf]
  %v62 = vld [vmem:[%s1 + $0x3c] sm:$0xf]
  %v63 = vld [vmem:[%s1 + $0x40] sm:$0xf]
  %v64 = vld [vmem:[%s1 + $0x44] sm:$0xf]
  %v65 = vld [vmem:[%s1 + $0x48] sm:$0xf]
  %v66 = vld [vmem:[%s1 + $0x4c] sm:$0xf]
  %v67 = vld [vmem:[%s1 + $0x50] sm:$0xf]
  %v68 = vld [vmem:[%s1 + $0x54] sm:$0xf]
  %v69 = vld [vmem:[%s1 + $0x58] sm:$0xf]
  %v70 = vld [vmem:[%s1 + $0x5c] sm:$0xf]
  %v71 = vld [vmem:[%s1 + $0x60] sm:$0xf]
  %v72 = vld [vmem:[%s1 + $0x64] sm:$0xf]
  %v73 = vld [vmem:[%s1 + $0x68] sm:$0xf]
  %v74 = vld [vmem:[%s1 + $0x6c] sm:$0xf]
  %v75 = vld [vmem:[%s1 + $0x70] sm:$0xf]
  %v76 = vld [vmem:[%s1 + $0x74] sm:$0xf]
  %v77 = vld [vmem:[%s1 + $0x78] sm:$0xf]
  %v78 = vld [vmem:[%s1 + $0x7c] sm:$0xf]
  %v79 = vld [vmem:[%s1 + $0x80] sm:$0xf]
  %v80 = vld [vmem:[%s1 + $0x84] sm:$0xf]
  %v81 = vld [vmem:[%s1 + $0x88] sm:$0xf]
  %v82 = vld [vmem:[%s1 + $0x8c] sm:$0xf]
  %v83 = vld [vmem:[%s2] sm:$0x1]
  %v85 = vlaneseq
  %v86 = vshrl.u32 %v85, 7
  %v87 = vsub.s32 0, %v86
  %v88 = vrot.slane %v83, %v87
  %v122 = vunpack.c.l.b16 %v15
  %v123 = vunpack.c.h.b16 %v15
  %v124 = vunpack.c.l.b16 %v16
  %v125 = vunpack.c.l.b16 %v17
  %v126 = vunpack.c.h.b16 %v17
  %v127 = vunpack.c.l.b16 %v18
  %v128 = vunpack.c.l.b16 %v19
  %v129 = vunpack.c.h.b16 %v19
  %v130 = vunpack.c.l.b16 %v20
  %v131 = vunpack.c.l.b16 %v21
  %v132 = vunpack.c.h.b16 %v21
  %v133 = vunpack.c.l.b16 %v22
  %v134 = vunpack.c.l.b16 %v23
  %v135 = vunpack.c.h.b16 %v23
  %v136 = vunpack.c.l.b16 %v24
  %v137 = vunpack.c.l.b16 %v25
  %v138 = vunpack.c.h.b16 %v25
  %v139 = vunpack.c.l.b16 %v26
  %v140 = vunpack.c.l.b16 %v27
  %v141 = vunpack.c.h.b16 %v27
  %v142 = vunpack.c.l.b16 %v28
  %v143 = vunpack.c.l.b16 %v29
  %v144 = vunpack.c.h.b16 %v29
  %v145 = vunpack.c.l.b16 %v30
  %v146 = vunpack.c.l.b16 %v31
  %v147 = vunpack.c.h.b16 %v31
  %v148 = vunpack.c.l.b16 %v32
  %v149 = vunpack.c.l.b16 %v33
  %v150 = vunpack.c.h.b16 %v33
  %v151 = vunpack.c.l.b16 %v34
  %v152 = vunpack.c.l.b16 %v35
  %v153 = vunpack.c.h.b16 %v35
  %v154 = vunpack.c.l.b16 %v36
  %v155 = vunpack.c.l.b16 %v37
  %v156 = vunpack.c.h.b16 %v37
  %v157 = vunpack.c.l.b16 %v38
  %v158 = vunpack.c.l.b16 %v39
  %v159 = vunpack.c.h.b16 %v39
  %v160 = vunpack.c.l.b16 %v40
  %v161 = vunpack.c.l.b16 %v41
  %v162 = vunpack.c.h.b16 %v41
  %v163 = vunpack.c.l.b16 %v42
  %v164 = vunpack.c.l.b16 %v43
  %v165 = vunpack.c.h.b16 %v43
  %v166 = vunpack.c.l.b16 %v44
  %v167 = vunpack.c.l.b16 %v45
  %v168 = vunpack.c.h.b16 %v45
  %v169 = vunpack.c.l.b16 %v46
  %v170 = vpack.c.b16 %v125, %v122
  %v171 = vpack.c.b16 %v126, %v123
  %v172 = vpack.c.b16 %v127, %v124
  %v173 = vpack.c.b16 %v131, %v128
  %v174 = vpack.c.b16 %v132, %v129
  %v175 = vpack.c.b16 %v133, %v130
  %v176 = vpack.c.b16 %v137, %v134
  %v177 = vpack.c.b16 %v138, %v135
  %v178 = vpack.c.b16 %v139, %v136
  %v179 = vpack.c.b16 %v143, %v140
  %v180 = vpack.c.b16 %v144, %v141
  %v181 = vpack.c.b16 %v145, %v142
  %v182 = vpack.c.b16 %v149, %v146
  %v183 = vpack.c.b16 %v150, %v147
  %v184 = vpack.c.b16 %v151, %v148
  %v185 = vpack.c.b16 %v155, %v152
  %v186 = vpack.c.b16 %v156, %v153
  %v187 = vpack.c.b16 %v157, %v154
  %v188 = vpack.c.b16 %v161, %v158
  %v189 = vpack.c.b16 %v162, %v159
  %v190 = vpack.c.b16 %v163, %v160
  %v191 = vpack.c.b16 %v167, %v164
  %v192 = vpack.c.b16 %v168, %v165
  %v193 = vpack.c.b16 %v169, %v166
  %v246 = vunpack.c.l.b16 %v47
  %v247 = vunpack.c.l.b16 %v48
  %v248 = vunpack.c.l.b16 %v49
  %v249 = vunpack.c.l.b16 %v50
  %v250 = vunpack.c.l.b16 %v51
  %v251 = vunpack.c.l.b16 %v52
  %v252 = vunpack.c.l.b16 %v53
  %v253 = vunpack.c.l.b16 %v54
  %v254 = vunpack.c.l.b16 %v55
  %v255 = vunpack.c.l.b16 %v56
  %v256 = vunpack.c.l.b16 %v57
  %v257 = vunpack.c.l.b16 %v58
  %v258 = vunpack.c.l.b16 %v59
  %v259 = vunpack.c.l.b16 %v60
  %v260 = vunpack.c.l.b16 %v61
  %v261 = vunpack.c.l.b16 %v62
  %v262 = vunpack.c.l.b16 %v63
  %v263 = vunpack.c.l.b16 %v64
  %v264 = vunpack.c.l.b16 %v65
  %v265 = vunpack.c.l.b16 %v66
  %v266 = vunpack.c.l.b16 %v67
  %v267 = vunpack.c.l.b16 %v68
  %v268 = vunpack.c.l.b16 %v69
  %v269 = vunpack.c.l.b16 %v70
  %v270 = vunpack.c.l.b16 %v71
  %v271 = vunpack.c.l.b16 %v72
  %v272 = vunpack.c.l.b16 %v73
  %v273 = vunpack.c.l.b16 %v74
  %v274 = vunpack.c.l.b16 %v75
  %v275 = vunpack.c.l.b16 %v76
  %v276 = vunpack.c.l.b16 %v77
  %v277 = vunpack.c.l.b16 %v78
  %v278 = vunpack.c.l.b16 %v79
  %v279 = vunpack.c.l.b16 %v80
  %v280 = vunpack.c.l.b16 %v81
  %v281 = vunpack.c.l.b16 %v82
  %v282 = vpack.c.b16 %v247, %v246
  %v283 = vpack.c.b16 %v249, %v248
  %v284 = vpack.c.b16 %v251, %v250
  %v285 = vpack.c.b16 %v253, %v252
  %v286 = vpack.c.b16 %v255, %v254
  %v287 = vpack.c.b16 %v257, %v256
  %v288 = vpack.c.b16 %v259, %v258
  %v289 = vpack.c.b16 %v261, %v260
  %v290 = vpack.c.b16 %v263, %v262
  %v291 = vpack.c.b16 %v265, %v264
  %v292 = vpack.c.b16 %v267, %v266
  %v293 = vpack.c.b16 %v269, %v268
  %v294 = vpack.c.b16 %v271, %v270
  %v295 = vpack.c.b16 %v273, %v272
  %v296 = vpack.c.b16 %v275, %v274
  %v297 = vpack.c.b16 %v277, %v276
  %v298 = vpack.c.b16 %v279, %v278
  %v299 = vpack.c.b16 %v281, %v280
  %vm318 = vcmask 261120
  %v320 = vsel %vm318, %v172, 0
  %v323 = vsel %vm318, %v175, 0
  %v326 = vsel %vm318, %v178, 0
  %v329 = vsel %vm318, %v181, 0
  %v332 = vsel %vm318, %v184, 0
  %v335 = vsel %vm318, %v187, 0
  %v338 = vsel %vm318, %v190, 0
  %v341 = vsel %vm318, %v193, 0
  %343 = vmatprep.subr.bf16.mxu0 0
  %344 = vmatpush1.bf16.msra.mxu0 %v282
  %345 = vmatprep.subr.bf16.mxu0 0
  %346 = vmatpush1.bf16.msra.mxu0 %v283
  %347 = vmatprep.subr.bf16.mxu0 0
  %348 = vmatpush1.bf16.msra.mxu0 %v284
  %349 = vmatprep.subr.bf16.mxu0 0
  %350 = vmatpush1.bf16.msra.mxu0 %v285
  %351 = vmatprep.subr.bf16.mxu0 0
  %352 = vmatpush1.bf16.msra.mxu0 %v286
  %353 = vmatprep.subr.bf16.mxu0 0
  %354 = vmatpush1.bf16.msra.mxu0 %v287
  %355 = vmatprep.subr.bf16.mxu0 0
  %356 = vmatpush1.bf16.msra.mxu0 %v288
  %357 = vmatprep.subr.bf16.mxu0 0
  %358 = vmatpush1.bf16.msra.mxu0 %v289
  %359 = vmatprep.subr.bf16.mxu0 0
  %360 = vmatpush1.bf16.msra.mxu0 %v290
  %361 = vmatprep.subr.bf16.mxu0 0
  %362 = vmatpush1.bf16.msra.mxu0 %v291
  %363 = vmatprep.subr.bf16.mxu0 0
  %364 = vmatpush1.bf16.msra.mxu0 %v292
  %365 = vmatprep.subr.bf16.mxu0 0
  %366 = vmatpush1.bf16.msra.mxu0 %v293
  %367 = vmatprep.subr.bf16.mxu0 0
  %368 = vmatpush1.bf16.msra.mxu0 %v294
  %369 = vmatprep.subr.bf16.mxu0 0
  %370 = vmatpush1.bf16.msra.mxu0 %v295
  %371 = vmatprep.subr.bf16.mxu0 0
  %372 = vmatpush1.bf16.msra.mxu0 %v296
  %373 = vmatprep.subr.bf16.mxu0 0
  %374 = vmatpush1.bf16.msra.mxu0 %v297
  %375 = vmatprep.mubr.bf16.mxu0 %v171
  %376 = vmatmul.mubr.bf16.gmra.mrb[0].mxu0 %v170
  %v377 = vpop.f32.mrb[0].mxu0
  %v378 = vadd.f32 %v88, %v377
  %v379 = vpop.f32.mrb[0].mxu0
  %v380 = vpop.f32.mrb[0].mxu0
  %v381 = vadd.f32 %v88, %v380
  %v382 = vpop.f32.mrb[0].mxu0
  %383 = vmatprep.mubr.bf16.mxu0 %v174
  %384 = vmatmul.mubr.bf16.gmra.mrb[0].mxu0 %v173
  %v385 = vpop.f32.mrb[0].mxu0
  %v386 = vadd.f32 %v88, %v385
  %v387 = vpop.f32.mrb[0].mxu0
  %v388 = vpop.f32.mrb[0].mxu0
  %v389 = vadd.f32 %v88, %v388
  %v390 = vpop.f32.mrb[0].mxu0
  %391 = vmatprep.mubr.bf16.mxu0 %v177
  %392 = vmatmul.mubr.bf16.gmra.mrb[0].mxu0 %v176
  %v393 = vpop.f32.mrb[0].mxu0
  %v394 = vadd.f32 %v88, %v393
  %v395 = vpop.f32.mrb[0].mxu0
  %v396 = vpop.f32.mrb[0].mxu0
  %v397 = vadd.f32 %v88, %v396
  %v398 = vpop.f32.mrb[0].mxu0
  %399 = vmatprep.mubr.bf16.mxu0 %v180
  %400 = vmatmul.mubr.bf16.gmra.mrb[0].mxu0 %v179
  %v401 = vpop.f32.mrb[0].mxu0
  %v402 = vadd.f32 %v88, %v401
  %v403 = vpop.f32.mrb[0].mxu0
  %v404 = vpop.f32.mrb[0].mxu0
  %v405 = vadd.f32 %v88, %v404
  %v406 = vpop.f32.mrb[0].mxu0
  %407 = vmatprep.mubr.bf16.mxu0 %v183
  %408 = vmatmul.mubr.bf16.gmra.mrb[0].mxu0 %v182
  %v409 = vpop.f32.mrb[0].mxu0
  %v410 = vadd.f32 %v88, %v409
  %v411 = vpop.f32.mrb[0].mxu0
  %v412 = vpop.f32.mrb[0].mxu0
  %v413 = vadd.f32 %v88, %v412
  %v414 = vpop.f32.mrb[0].mxu0
  %415 = vmatprep.mubr.bf16.mxu0 %v186
  %416 = vmatmul.mubr.bf16.gmra.mrb[0].mxu0 %v185
  %v417 = vpop.f32.mrb[0].mxu0
  %v418 = vadd.f32 %v88, %v417
  %v419 = vpop.f32.mrb[0].mxu0
  %v420 = vpop.f32.mrb[0].mxu0
  %v421 = vadd.f32 %v88, %v420
  %v422 = vpop.f32.mrb[0].mxu0
  %423 = vmatprep.mubr.bf16.mxu0 %v189
  %424 = vmatmul.mubr.bf16.gmra.mrb[0].mxu0 %v188
  %v425 = vpop.f32.mrb[0].mxu0
  %v426 = vadd.f32 %v88, %v425
  %v427 = vpop.f32.mrb[0].mxu0
  %v428 = vpop.f32.mrb[0].mxu0
  %v429 = vadd.f32 %v88, %v428
  %v430 = vpop.f32.mrb[0].mxu0
  %431 = vmatprep.mubr.bf16.mxu0 %v192
  %432 = vmatmul.mubr.bf16.gmra.mrb[0].mxu0 %v191
  %v433 = vpop.f32.mrb[0].mxu0
  %v434 = vadd.f32 %v88, %v433
  %v435 = vpop.f32.mrb[0].mxu0
  %v436 = vpop.f32.mrb[0].mxu0
  %v437 = vadd.f32 %v88, %v436
  %v438 = vpop.f32.mrb[0].mxu0
  %439 = vdwg.mxu0
  %440 = vmatprep.subr.bf16.mxu0 0
  %441 = vmatpush1.bf16.msra.mxu0 %v298
  %442 = vmatprep.subr.bf16.mxu0 0
  %443 = vmatpush1.bf16.msra.mxu0 %v299
  %444 = vmatprep.subr.bf16.mxu0 0
  %445 = vmatpush1.bf16.msra.mxu0 0
  %446 = vmatprep.subr.bf16.mxu0 0
  %447 = vmatpush1.bf16.msra.mxu0 0
  %448 = vmatprep.subr.bf16.mxu0 0
  %449 = vmatpush1.bf16.msra.mxu0 0
  %450 = vmatprep.subr.bf16.mxu0 0
  %451 = vmatpush1.bf16.msra.mxu0 0
  %452 = vmatprep.subr.bf16.mxu0 0
  %453 = vmatpush1.bf16.msra.mxu0 0
  %454 = vmatprep.subr.bf16.mxu0 0
  %455 = vmatpush1.bf16.msra.mxu0 0
  %456 = vmatprep.subr.bf16.mxu0 0
  %457 = vmatpush1.bf16.msra.mxu0 0
  %458 = vmatprep.subr.bf16.mxu0 0
  %459 = vmatpush1.bf16.msra.mxu0 0
  %460 = vmatprep.subr.bf16.mxu0 0
  %461 = vmatpush1.bf16.msra.mxu0 0
  %462 = vmatprep.subr.bf16.mxu0 0
  %463 = vmatpush1.bf16.msra.mxu0 0
  %464 = vmatprep.subr.bf16.mxu0 0
  %465 = vmatpush1.bf16.msra.mxu0 0
  %466 = vmatprep.subr.bf16.mxu0 0
  %467 = vmatpush1.bf16.msra.mxu0 0
  %468 = vmatprep.subr.bf16.mxu0 0
  %469 = vmatpush1.bf16.msra.mxu0 0
  %470 = vmatprep.subr.bf16.mxu0 0
  %471 = vmatpush1.bf16.msra.mxu0 0
  %472 = vmatprep.mubr.bf16.mxu0 0
  %473 = vmatmul.mubr.bf16.gmra.mrb[0].mxu0 %v320
  %v474 = vpop.f32.mrb[0].mxu0
  %v475 = vadd.f32 %v378, %v474
  %v476 = vpop.f32.mrb[0].mxu0
  %v477 = vpop.f32.mrb[0].mxu0
  %v478 = vadd.f32 %v381, %v477
  %v479 = vpop.f32.mrb[0].mxu0
  %480 = vmatprep.mubr.bf16.mxu0 0
  %481 = vmatmul.mubr.bf16.gmra.mrb[0].mxu0 %v323
  %v482 = vpop.f32.mrb[0].mxu0
  %v483 = vadd.f32 %v386, %v482
  %v484 = vpop.f32.mrb[0].mxu0
  %v485 = vpop.f32.mrb[0].mxu0
  %v486 = vadd.f32 %v389, %v485
  %v487 = vpop.f32.mrb[0].mxu0
  %488 = vmatprep.mubr.bf16.mxu0 0
  %489 = vmatmul.mubr.bf16.gmra.mrb[0].mxu0 %v326
  %v490 = vpop.f32.mrb[0].mxu0
  %v491 = vadd.f32 %v394, %v490
  %v492 = vpop.f32.mrb[0].mxu0
  %v493 = vpop.f32.mrb[0].mxu0
  %v494 = vadd.f32 %v397, %v493
  %v495 = vpop.f32.mrb[0].mxu0
  %496 = vmatprep.mubr.bf16.mxu0 0
  %497 = vmatmul.mubr.bf16.gmra.mrb[0].mxu0 %v329
  %v498 = vpop.f32.mrb[0].mxu0
  %v499 = vadd.f32 %v402, %v498
  %v500 = vpop.f32.mrb[0].mxu0
  %v501 = vpop.f32.mrb[0].mxu0
  %v502 = vadd.f32 %v405, %v501
  %v503 = vpop.f32.mrb[0].mxu0
  %504 = vmatprep.mubr.bf16.mxu0 0
  %505 = vmatmul.mubr.bf16.gmra.mrb[0].mxu0 %v332
  %v506 = vpop.f32.mrb[0].mxu0
  %v507 = vadd.f32 %v410, %v506
  %v508 = vpop.f32.mrb[0].mxu0
  %v509 = vpop.f32.mrb[0].mxu0
  %v510 = vadd.f32 %v413, %v509
  %v511 = vpop.f32.mrb[0].mxu0
  %512 = vmatprep.mubr.bf16.mxu0 0
  %513 = vmatmul.mubr.bf16.gmra.mrb[0].mxu0 %v335
  %v514 = vpop.f32.mrb[0].mxu0
  %v515 = vadd.f32 %v418, %v514
  %v516 = vpop.f32.mrb[0].mxu0
  %v517 = vpop.f32.mrb[0].mxu0
  %v518 = vadd.f32 %v421, %v517
  %v519 = vpop.f32.mrb[0].mxu0
  %520 = vmatprep.mubr.bf16.mxu0 0
  %521 = vmatmul.mubr.bf16.gmra.mrb[0].mxu0 %v338
  %v522 = vpop.f32.mrb[0].mxu0
  %v523 = vadd.f32 %v426, %v522
  %v524 = vpop.f32.mrb[0].mxu0
  %v525 = vpop.f32.mrb[0].mxu0
  %v526 = vadd.f32 %v429, %v525
  %v527 = vpop.f32.mrb[0].mxu0
  %528 = vmatprep.mubr.bf16.mxu0 0
  %529 = vmatmul.mubr.bf16.gmra.mrb[0].mxu0 %v341
  %v530 = vpop.f32.mrb[0].mxu0
  %v531 = vadd.f32 %v434, %v530
  %v532 = vpop.f32.mrb[0].mxu0
  %v533 = vpop.f32.mrb[0].mxu0
  %v534 = vadd.f32 %v437, %v533
  %v535 = vpop.f32.mrb[0].mxu0
  %536 = vdwg.mxu0
  %537 = vst.msk [vmem:[%s3] sm:$0xff] %vm318, %v475
  %538 = vst.msk [vmem:[%s3 + $0x8] sm:$0xff] %vm318, %v478
  %539 = vst.msk [vmem:[%s3 + $0x10] sm:$0xff] %vm318, %v483
  %540 = vst.msk [vmem:[%s3 + $0x18] sm:$0xff] %vm318, %v486
  %541 = vst.msk [vmem:[%s3 + $0x20] sm:$0xff] %vm318, %v491
  %542 = vst.msk [vmem:[%s3 + $0x28] sm:$0xff] %vm318, %v494
  %543 = vst.msk [vmem:[%s3 + $0x30] sm:$0xff] %vm318, %v499
  %544 = vst.msk [vmem:[%s3 + $0x38] sm:$0xff] %vm318, %v502
  %545 = vst.msk [vmem:[%s3 + $0x40] sm:$0xff] %vm318, %v507
  %546 = vst.msk [vmem:[%s3 + $0x48] sm:$0xff] %vm318, %v510
  %547 = vst.msk [vmem:[%s3 + $0x50] sm:$0xff] %vm318, %v515
  %548 = vst.msk [vmem:[%s3 + $0x58] sm:$0xff] %vm318, %v518
  %549 = vst.msk [vmem:[%s3 + $0x60] sm:$0xff] %vm318, %v523
  %550 = vst.msk [vmem:[%s3 + $0x68] sm:$0xff] %vm318, %v526
  %551 = vst.msk [vmem:[%s3 + $0x70] sm:$0xff] %vm318, %v531
  %552 = vst.msk [vmem:[%s3 + $0x78] sm:$0xff] %vm318, %v534
  // Predicated region
  $region14: #{speech_model_forward.17} parent=0 // pred_check
    _
  $region15: #{speech_model_forward.17} parent=0 // pred_check_branch
    %554 = sbr.rel (0) target = $region17
  $region16: #{speech_model_forward.17} parent=0 // pred_region
    _
  $region17: #{speech_model_forward.17} parent=0 // pred_fallthru
    _
  // Predicated region
  $region18: #{speech_model_forward.17} parent=0 // pred_check
    _
  $region19: #{speech_model_forward.17} parent=0 // pred_check_branch
    %556 = sbr.rel (0) target = $region21
  $region20: #{speech_model_forward.17} parent=0 // pred_region
    _
  $region21: #{speech_model_forward.17} parent=0 // pred_fallthru
    _

// kernel: speech_model_forward.24
$region0: #{speech_model_forward.24}
  #allocation0 [shape = 'u32[]', space=smem, size = 0x4, offset = 0x4, fixed_abs, tag = 'smem constant byte address 0x4 - core index']
  #allocation1 [shape = 'u32[144,128]{1,0:T(1,128)}', space=vmem, size = 0x12000, scoped, tag = 'internal scratch']
  %s0 = inlined_call_operand.vmem [shape: f32[16,256], index: 0, kind: input, shape index: {}]
  %s1 = inlined_call_operand.vmem [shape: bf16[256,128], index: 1, kind: input, shape index: {}]
  %s2 = inlined_call_operand.vmem [shape: f32[1,128], index: 2, kind: input, shape index: {}]
  %s3 = inlined_call_operand.vmem [shape: f32[16,128], index: 3, kind: output, shape index: {}]
  %s4 = sld [smem:[#allocation0]]
  $region22: #{speech_model_forward.24} parent=0
    _
  %s6 = ssub.s32 1, %s4
  %s7 = scalar_select 0, %s6, %s4
  // Predicated region
  $region2: #{speech_model_forward.24} parent=0 // pred_check
    _
  $region3: #{speech_model_forward.24} parent=0 // pred_check_branch
    %9 = sbr.rel (0) target = $region5
  $region4: #{speech_model_forward.24} parent=0 // pred_region
    _
  $region5: #{speech_model_forward.24} parent=0 // pred_fallthru
    _
  // Predicated region
  $region6: #{speech_model_forward.24} parent=0 // pred_check
    _
  $region7: #{speech_model_forward.24} parent=0 // pred_check_branch
    %11 = sbr.rel (0) target = $region9
  $region8: #{speech_model_forward.24} parent=0 // pred_region
    _
  $region9: #{speech_model_forward.24} parent=0 // pred_fallthru
    _
  // Predicated region
  $region10: #{speech_model_forward.24} parent=0 // pred_check
    _
  $region11: #{speech_model_forward.24} parent=0 // pred_check_branch
    %13 = sbr.rel (0) target = $region13
  $region12: #{speech_model_forward.24} parent=0 // pred_region
    _
  $region13: #{speech_model_forward.24} parent=0 // pred_fallthru
    _
  %v15 = vld [vmem:[%s0] sm:$0xff]
  %v16 = vld [vmem:[%s0 + $0x8] sm:$0xff]
  %v17 = vld [vmem:[%s0 + $0x10] sm:$0xff]
  %v18 = vld [vmem:[%s0 + $0x18] sm:$0xff]
  %v19 = vpack.c.bf16 %v17, %v15
  %v20 = vpack.c.bf16 %v18, %v16
  %v21 = vld [vmem:[%s1] sm:$0xf]
  %v22 = vld [vmem:[%s1 + $0x4] sm:$0xf]
  %v23 = vld [vmem:[%s1 + $0x8] sm:$0xf]
  %v24 = vld [vmem:[%s1 + $0xc] sm:$0xf]
  %v25 = vld [vmem:[%s1 + $0x10] sm:$0xf]
  %v26 = vld [vmem:[%s1 + $0x14] sm:$0xf]
  %v27 = vld [vmem:[%s1 + $0x18] sm:$0xf]
  %v28 = vld [vmem:[%s1 + $0x1c] sm:$0xf]
  %v29 = vld [vmem:[%s1 + $0x20] sm:$0xf]
  %v30 = vld [vmem:[%s1 + $0x24] sm:$0xf]
  %v31 = vld [vmem:[%s1 + $0x28] sm:$0xf]
  %v32 = vld [vmem:[%s1 + $0x2c] sm:$0xf]
  %v33 = vld [vmem:[%s1 + $0x30] sm:$0xf]
  %v34 = vld [vmem:[%s1 + $0x34] sm:$0xf]
  %v35 = vld [vmem:[%s1 + $0x38] sm:$0xf]
  %v36 = vld [vmem:[%s1 + $0x3c] sm:$0xf]
  %v37 = vld [vmem:[%s1 + $0x40] sm:$0xf]
  %v38 = vld [vmem:[%s1 + $0x44] sm:$0xf]
  %v39 = vld [vmem:[%s1 + $0x48] sm:$0xf]
  %v40 = vld [vmem:[%s1 + $0x4c] sm:$0xf]
  %v41 = vld [vmem:[%s1 + $0x50] sm:$0xf]
  %v42 = vld [vmem:[%s1 + $0x54] sm:$0xf]
  %v43 = vld [vmem:[%s1 + $0x58] sm:$0xf]
  %v44 = vld [vmem:[%s1 + $0x5c] sm:$0xf]
  %v45 = vld [vmem:[%s1 + $0x60] sm:$0xf]
  %v46 = vld [vmem:[%s1 + $0x64] sm:$0xf]
  %v47 = vld [vmem:[%s1 + $0x68] sm:$0xf]
  %v48 = vld [vmem:[%s1 + $0x6c] sm:$0xf]
  %v49 = vld [vmem:[%s1 + $0x70] sm:$0xf]
  %v50 = vld [vmem:[%s1 + $0x74] sm:$0xf]
  %v51 = vld [vmem:[%s1 + $0x78] sm:$0xf]
  %v52 = vld [vmem:[%s1 + $0x7c] sm:$0xf]
  %v53 = vld [vmem:[%s2] sm:$0x1]
  %v55 = vlaneseq
  %v56 = vshrl.u32 %v55, 7
  %v57 = vsub.s32 0, %v56
  %v58 = vrot.slane %v53, %v57
  %v92 = vunpack.c.l.b16 %v21
  %v93 = vunpack.c.l.b16 %v22
  %v94 = vunpack.c.l.b16 %v23
  %v95 = vunpack.c.l.b16 %v24
  %v96 = vunpack.c.l.b16 %v25
  %v97 = vunpack.c.l.b16 %v26
  %v98 = vunpack.c.l.b16 %v27
  %v99 = vunpack.c.l.b16 %v28
  %v100 = vunpack.c.l.b16 %v29
  %v101 = vunpack.c.l.b16 %v30
  %v102 = vunpack.c.l.b16 %v31
  %v103 = vunpack.c.l.b16 %v32
  %v104 = vunpack.c.l.b16 %v33
  %v105 = vunpack.c.l.b16 %v34
  %v106 = vunpack.c.l.b16 %v35
  %v107 = vunpack.c.l.b16 %v36
  %v108 = vunpack.c.l.b16 %v37
  %v109 = vunpack.c.l.b16 %v38
  %v110 = vunpack.c.l.b16 %v39
  %v111 = vunpack.c.l.b16 %v40
  %v112 = vunpack.c.l.b16 %v41
  %v113 = vunpack.c.l.b16 %v42
  %v114 = vunpack.c.l.b16 %v43
  %v115 = vunpack.c.l.b16 %v44
  %v116 = vunpack.c.l.b16 %v45
  %v117 = vunpack.c.l.b16 %v46
  %v118 = vunpack.c.l.b16 %v47
  %v119 = vunpack.c.l.b16 %v48
  %v120 = vunpack.c.l.b16 %v49
  %v121 = vunpack.c.l.b16 %v50
  %v122 = vunpack.c.l.b16 %v51
  %v123 = vunpack.c.l.b16 %v52
  %v124 = vpack.c.b16 %v93, %v92
  %v125 = vpack.c.b16 %v95, %v94
  %v126 = vpack.c.b16 %v97, %v96
  %v127 = vpack.c.b16 %v99, %v98
  %v128 = vpack.c.b16 %v101, %v100
  %v129 = vpack.c.b16 %v103, %v102
  %v130 = vpack.c.b16 %v105, %v104
  %v131 = vpack.c.b16 %v107, %v106
  %v132 = vpack.c.b16 %v109, %v108
  %v133 = vpack.c.b16 %v111, %v110
  %v134 = vpack.c.b16 %v113, %v112
  %v135 = vpack.c.b16 %v115, %v114
  %v136 = vpack.c.b16 %v117, %v116
  %v137 = vpack.c.b16 %v119, %v118
  %v138 = vpack.c.b16 %v121, %v120
  %v139 = vpack.c.b16 %v123, %v122
  %156 = vmatprep.subr.bf16.mxu0 0
  %157 = vmatpush1.bf16.msra.mxu0 %v124
  %158 = vmatprep.subr.bf16.mxu0 0
  %159 = vmatpush1.bf16.msra.mxu0 %v125
  %160 = vmatprep.subr.bf16.mxu0 0
  %161 = vmatpush1.bf16.msra.mxu0 %v126
  %162 = vmatprep.subr.bf16.mxu0 0
  %163 = vmatpush1.bf16.msra.mxu0 %v127
  %164 = vmatprep.subr.bf16.mxu0 0
  %165 = vmatpush1.bf16.msra.mxu0 %v128
  %166 = vmatprep.subr.bf16.mxu0 0
  %167 = vmatpush1.bf16.msra.mxu0 %v129
  %168 = vmatprep.subr.bf16.mxu0 0
  %169 = vmatpush1.bf16.msra.mxu0 %v130
  %170 = vmatprep.subr.bf16.mxu0 0
  %171 = vmatpush1.bf16.msra.mxu0 %v131
  %172 = vmatprep.subr.bf16.mxu0 0
  %173 = vmatpush1.bf16.msra.mxu0 %v132
  %174 = vmatprep.subr.bf16.mxu0 0
  %175 = vmatpush1.bf16.msra.mxu0 %v133
  %176 = vmatprep.subr.bf16.mxu0 0
  %177 = vmatpush1.bf16.msra.mxu0 %v134
  %178 = vmatprep.subr.bf16.mxu0 0
  %179 = vmatpush1.bf16.msra.mxu0 %v135
  %180 = vmatprep.subr.bf16.mxu0 0
  %181 = vmatpush1.bf16.msra.mxu0 %v136
  %182 = vmatprep.subr.bf16.mxu0 0
  %183 = vmatpush1.bf16.msra.mxu0 %v137
  %184 = vmatprep.subr.bf16.mxu0 0
  %185 = vmatpush1.bf16.msra.mxu0 %v138
  %186 = vmatprep.subr.bf16.mxu0 0
  %187 = vmatpush1.bf16.msra.mxu0 %v139
  %188 = vmatprep.mubr.bf16.mxu0 %v20
  %189 = vmatmul.mubr.bf16.gmra.mrb[0].mxu0 %v19
  %v190 = vpop.f32.mrb[0].mxu0
  %v191 = vadd.f32 %v58, %v190
  %v192 = vpop.f32.mrb[0].mxu0
  %v193 = vpop.f32.mrb[0].mxu0
  %v194 = vadd.f32 %v58, %v193
  %v195 = vpop.f32.mrb[0].mxu0
  %196 = vdwg.mxu0
  %197 = vst [vmem:[%s3] sm:$0xff] %v191
  %198 = vst [vmem:[%s3 + $0x8] sm:$0xff] %v194
  // Predicated region
  $region14: #{speech_model_forward.24} parent=0 // pred_check
    _
  $region15: #{speech_model_forward.24} parent=0 // pred_check_branch
    %200 = sbr.rel (0) target = $region17
  $region16: #{speech_model_forward.24} parent=0 // pred_region
    _
  $region17: #{speech_model_forward.24} parent=0 // pred_fallthru
    _
  // Predicated region
  $region18: #{speech_model_forward.24} parent=0 // pred_check
    _
  $region19: #{speech_model_forward.24} parent=0 // pred_check_branch
    %202 = sbr.rel (0) target = $region21
  $region20: #{speech_model_forward.24} parent=0 // pred_region
    _
  $region21: #{speech_model_forward.24} parent=0 // pred_fallthru
    _

// kernel: speech_model_forward.25
$region0: #{speech_model_forward.25}
  #allocation0 [shape = 'u32[]', space=smem, size = 0x4, offset = 0x4, fixed_abs, tag = 'smem constant byte address 0x4 - core index']
  #allocation1 [shape = 'u32[144,128]{1,0:T(1,128)}', space=vmem, size = 0x12000, scoped, tag = 'internal scratch']
  %s0 = inlined_call_operand.vmem [shape: f32[16,128], index: 0, kind: input, shape index: {}]
  %s1 = inlined_call_operand.vmem [shape: f32[1,128], index: 1, kind: input, shape index: {}]
  %s2 = inlined_call_operand.vmem [shape: f32[1,128], index: 2, kind: input, shape index: {}]
  %s3 = inlined_call_operand.vmem [shape: bf16[128,768], index: 3, kind: input, shape index: {}]
  %s4 = inlined_call_operand.vmem [shape: f32[1,768], index: 4, kind: input, shape index: {}]
  %s5 = inlined_call_operand.vmem [shape: bf16[16,768], index: 5, kind: output, shape index: {}]
  %s6 = sld [smem:[#allocation0]]
  $region30: #{speech_model_forward.25} parent=0
    _
  %s8 = ssub.s32 1, %s6
  %s9 = scalar_select 0, %s8, %s6
  // Predicated region
  $region2: #{speech_model_forward.25} parent=0 // pred_check
    _
  $region3: #{speech_model_forward.25} parent=0 // pred_check_branch
    %11 = sbr.rel (0) target = $region5
  $region4: #{speech_model_forward.25} parent=0 // pred_region
    _
  $region5: #{speech_model_forward.25} parent=0 // pred_fallthru
    _
  // Predicated region
  $region6: #{speech_model_forward.25} parent=0 // pred_check
    _
  $region7: #{speech_model_forward.25} parent=0 // pred_check_branch
    %13 = sbr.rel (0) target = $region9
  $region8: #{speech_model_forward.25} parent=0 // pred_region
    _
  $region9: #{speech_model_forward.25} parent=0 // pred_fallthru
    _
  // Predicated region
  $region10: #{speech_model_forward.25} parent=0 // pred_check
    _
  $region11: #{speech_model_forward.25} parent=0 // pred_check_branch
    %15 = sbr.rel (0) target = $region13
  $region12: #{speech_model_forward.25} parent=0 // pred_region
    _
  $region13: #{speech_model_forward.25} parent=0 // pred_fallthru
    _
  // Predicated region
  $region14: #{speech_model_forward.25} parent=0 // pred_check
    _
  $region15: #{speech_model_forward.25} parent=0 // pred_check_branch
    %17 = sbr.rel (0) target = $region17
  $region16: #{speech_model_forward.25} parent=0 // pred_region
    _
  $region17: #{speech_model_forward.25} parent=0 // pred_fallthru
    _
  // Predicated region
  $region18: #{speech_model_forward.25} parent=0 // pred_check
    _
  $region19: #{speech_model_forward.25} parent=0 // pred_check_branch
    %19 = sbr.rel (0) target = $region21
  $region20: #{speech_model_forward.25} parent=0 // pred_region
    _
  $region21: #{speech_model_forward.25} parent=0 // pred_fallthru
    _
  %v21 = vld [vmem:[%s0] sm:$0xff]
  %v22 = vld [vmem:[%s0 + $0x8] sm:$0xff]
  %23 = vadd.xlane.f32.xlu0 %v21
  %v24 = vpop.xlane.xlu0 %23
  %25 = vadd.xlane.f32.xlu0 %v22
  %v26 = vpop.xlane.xlu0 %25
  %v27 = vrcp.pop 128.0
  %v28 = vmul.f32 %v24, %v27
  %v29 = vmul.f32 %v26, %v27
  %v30 = vsub.f32 %v21, %v28
  %v31 = vsub.f32 %v22, %v29
  %v32 = vmul.f32 %v30, %v30
  %v33 = vmul.f32 %v31, %v31
  %34 = vadd.xlane.f32.xlu0 %v32
  %v35 = vpop.xlane.xlu0 %34
  %36 = vadd.xlane.f32.xlu0 %v33
  %v37 = vpop.xlane.xlu0 %36
  %v38 = vmul.f32 %v35, %v27
  %v39 = vmul.f32 %v37, %v27
  %v40 = vadd.f32 %v38, 1e-05
  %v41 = vadd.f32 %v39, 1e-05
  %v42 = vrsqrt.pop %v40
  %v43 = vrsqrt.pop %v41
  %v44 = vmul.f32 %v30, %v42
  %v45 = vmul.f32 %v31, %v43
  %v46 = vld [vmem:[%s1] sm:$0x1]
  %v48 = vlaneseq
  %v49 = vshrl.u32 %v48, 7
  %v50 = vsub.s32 0, %v49
  %v51 = vrot.slane %v46, %v50
  %v53 = vmul.f32 %v44, %v51
  %v54 = vmul.f32 %v45, %v51
  %v55 = vld [vmem:[%s2] sm:$0x1]
  %v57 = vlaneseq
  %v58 = vshrl.u32 %v57, 7
  %v59 = vsub.s32 0, %v58
  %v60 = vrot.slane %v55, %v59
  %v62 = vadd.f32 %v53, %v60
  %v63 = vadd.f32 %v54, %v60
  %v64 = vmul.f32 %v62, 0.5
  %v65 = vmul.f32 %v63, 0.5
  %v66 = vmul.f32 %v62, 0.044715
  %v67 = vmul.f32 %v63, 0.044715
  %v68 = vmul.f32 %v66, %v62
  %v69 = vmul.f32 %v67, %v63
  %v70 = vmul.f32 %v68, %v62
  %v71 = vmul.f32 %v69, %v63
  %v72 = vadd.f32 %v62, %v70
  %v73 = vadd.f32 %v63, %v71
  %v74 = vmul.f32 %v72, 0.7978846
  %v75 = vmul.f32 %v73, 0.7978846
  %v76 = vtanh.pop %v74
  %v77 = vtanh.pop %v75
  %v78 = vadd.f32 %v76, 1.0
  %v79 = vadd.f32 %v77, 1.0
  %v80 = vmul.f32 %v64, %v78
  %v81 = vmul.f32 %v65, %v79
  %v82 = vpack.c.bf16 %v81, %v80
  %v83 = vld [vmem:[%s3] sm:$0xff]
  %v84 = vld [vmem:[%s3 + $0x8] sm:$0xff]
  %v85 = vld [vmem:[%s3 + $0x10] sm:$0xff]
  %v86 = vld [vmem:[%s3 + $0x18] sm:$0xff]
  %v87 = vld [vmem:[%s3 + $0x20] sm:$0xff]
  %v88 = vld [vmem:[%s3 + $0x28] sm:$0xff]
  %v89 = vld [vmem:[%s3 + $0x30] sm:$0xff]
  %v90 = vld [vmem:[%s3 + $0x38] sm:$0xff]
  %v91 = vld [vmem:[%s3 + $0x40] sm:$0xff]
  %v92 = vld [vmem:[%s3 + $0x48] sm:$0xff]
  %v93 = vld [vmem:[%s3 + $0x50] sm:$0xff]
  %v94 = vld [vmem:[%s3 + $0x58] sm:$0xff]
  %v95 = vld [vmem:[%s3 + $0x60] sm:$0xff]
  %v96 = vld [vmem:[%s3 + $0x68] sm:$0xff]
  %v97 = vld [vmem:[%s3 + $0x70] sm:$0xff]
  %v98 = vld [vmem:[%s3 + $0x78] sm:$0xff]
  %v99 = vld [vmem:[%s3 + $0x80] sm:$0xff]
  %v100 = vld [vmem:[%s3 + $0x88] sm:$0xff]
  %v101 = vld [vmem:[%s3 + $0x90] sm:$0xff]
  %v102 = vld [vmem:[%s3 + $0x98] sm:$0xff]
  %v103 = vld [vmem:[%s3 + $0xa0] sm:$0xff]
  %v104 = vld [vmem:[%s3 + $0xa8] sm:$0xff]
  %v105 = vld [vmem:[%s3 + $0xb0] sm:$0xff]
  %v106 = vld [vmem:[%s3 + $0xb8] sm:$0xff]
  %v107 = vld [vmem:[%s3 + $0xc0] sm:$0xff]
  %v108 = vld [vmem:[%s3 + $0xc8] sm:$0xff]
  %v109 = vld [vmem:[%s3 + $0xd0] sm:$0xff]
  %v110 = vld [vmem:[%s3 + $0xd8] sm:$0xff]
  %v111 = vld [vmem:[%s3 + $0xe0] sm:$0xff]
  %v112 = vld [vmem:[%s3 + $0xe8] sm:$0xff]
  %v113 = vld [vmem:[%s3 + $0xf0] sm:$0xff]
  %v114 = vld [vmem:[%s3 + $0xf8] sm:$0xff]
  %v115 = vld [vmem:[%s3 + $0x100] sm:$0xff]
  %v116 = vld [vmem:[%s3 + $0x108] sm:$0xff]
  %v117 = vld [vmem:[%s3 + $0x110] sm:$0xff]
  %v118 = vld [vmem:[%s3 + $0x118] sm:$0xff]
  %v119 = vld [vmem:[%s3 + $0x120] sm:$0xff]
  %v120 = vld [vmem:[%s3 + $0x128] sm:$0xff]
  %v121 = vld [vmem:[%s3 + $0x130] sm:$0xff]
  %v122 = vld [vmem:[%s3 + $0x138] sm:$0xff]
  %v123 = vld [vmem:[%s3 + $0x140] sm:$0xff]
  %v124 = vld [vmem:[%s3 + $0x148] sm:$0xff]
  %v125 = vld [vmem:[%s3 + $0x150] sm:$0xff]
  %v126 = vld [vmem:[%s3 + $0x158] sm:$0xff]
  %v127 = vld [vmem:[%s3 + $0x160] sm:$0xff]
  %v128 = vld [vmem:[%s3 + $0x168] sm:$0xff]
  %v129 = vld [vmem:[%s3 + $0x170] sm:$0xff]
  %v130 = vld [vmem:[%s3 + $0x178] sm:$0xff]
  %v131 = vld [vmem:[%s4] sm:$0x3f]
  %v133 = vlaneseq
  %v134 = vshrl.u32 %v133, 7
  %v135 = vsub.s32 0, %v134
  %v136 = vrot.slane %v131, %v135
  %v137 = vlaneseq
  %v138 = vshrl.u32 %v137, 7
  %v139 = vsub.s32 1, %v138
  %v140 = vrot.slane %v131, %v139
  %v141 = vlaneseq
  %v142 = vshrl.u32 %v141, 7
  %v143 = vsub.s32 2, %v142
  %v144 = vrot.slane %v131, %v143
  %v145 = vlaneseq
  %v146 = vshrl.u32 %v145, 7
  %v147 = vsub.s32 3, %v146
  %v148 = vrot.slane %v131, %v147
  %v149 = vlaneseq
  %v150 = vshrl.u32 %v149, 7
  %v151 = vsub.s32 4, %v150
  %v152 = vrot.slane %v131, %v151
  %v153 = vlaneseq
  %v154 = vshrl.u32 %v153, 7
  %v155 = vsub.s32 5, %v154
  %v156 = vrot.slane %v131, %v155
  %v211 = vunpack.c.l.b16 %v83
  %v212 = vunpack.c.h.b16 %v83
  %v213 = vunpack.c.l.b16 %v84
  %v214 = vunpack.c.h.b16 %v84
  %v215 = vunpack.c.l.b16 %v85
  %v216 = vunpack.c.h.b16 %v85
  %v217 = vunpack.c.l.b16 %v86
  %v218 = vunpack.c.h.b16 %v86
  %v219 = vunpack.c.l.b16 %v87
  %v220 = vunpack.c.h.b16 %v87
  %v221 = vunpack.c.l.b16 %v88
  %v222 = vunpack.c.h.b16 %v88
  %v223 = vunpack.c.l.b16 %v89
  %v224 = vunpack.c.h.b16 %v89
  %v225 = vunpack.c.l.b16 %v90
  %v226 = vunpack.c.h.b16 %v90
  %v227 = vunpack.c.l.b16 %v91
  %v228 = vunpack.c.h.b16 %v91
  %v229 = vunpack.c.l.b16 %v92
  %v230 = vunpack.c.h.b16 %v92
  %v231 = vunpack.c.l.b16 %v93
  %v232 = vunpack.c.h.b16 %v93
  %v233 = vunpack.c.l.b16 %v94
  %v234 = vunpack.c.h.b16 %v94
  %v235 = vunpack.c.l.b16 %v95
  %v236 = vunpack.c.h.b16 %v95
  %v237 = vunpack.c.l.b16 %v96
  %v238 = vunpack.c.h.b16 %v96
  %v239 = vunpack.c.l.b16 %v97
  %v240 = vunpack.c.h.b16 %v97
  %v241 = vunpack.c.l.b16 %v98
  %v242 = vunpack.c.h.b16 %v98
  %v243 = vunpack.c.l.b16 %v99
  %v244 = vunpack.c.h.b16 %v99
  %v245 = vunpack.c.l.b16 %v100
  %v246 = vunpack.c.h.b16 %v100
  %v247 = vunpack.c.l.b16 %v101
  %v248 = vunpack.c.h.b16 %v101
  %v249 = vunpack.c.l.b16 %v102
  %v250 = vunpack.c.h.b16 %v102
  %v251 = vunpack.c.l.b16 %v103
  %v252 = vunpack.c.h.b16 %v103
  %v253 = vunpack.c.l.b16 %v104
  %v254 = vunpack.c.h.b16 %v104
  %v255 = vunpack.c.l.b16 %v105
  %v256 = vunpack.c.h.b16 %v105
  %v257 = vunpack.c.l.b16 %v106
  %v258 = vunpack.c.h.b16 %v106
  %v259 = vunpack.c.l.b16 %v107
  %v260 = vunpack.c.h.b16 %v107
  %v261 = vunpack.c.l.b16 %v108
  %v262 = vunpack.c.h.b16 %v108
  %v263 = vunpack.c.l.b16 %v109
  %v264 = vunpack.c.h.b16 %v109
  %v265 = vunpack.c.l.b16 %v110
  %v266 = vunpack.c.h.b16 %v110
  %v267 = vunpack.c.l.b16 %v111
  %v268 = vunpack.c.h.b16 %v111
  %v269 = vunpack.c.l.b16 %v112
  %v270 = vunpack.c.h.b16 %v112
  %v271 = vunpack.c.l.b16 %v113
  %v272 = vunpack.c.h.b16 %v113
  %v273 = vunpack.c.l.b16 %v114
  %v274 = vunpack.c.h.b16 %v114
  %v275 = vunpack.c.l.b16 %v115
  %v276 = vunpack.c.h.b16 %v115
  %v277 = vunpack.c.l.b16 %v116
  %v278 = vunpack.c.h.b16 %v116
  %v279 = vunpack.c.l.b16 %v117
  %v280 = vunpack.c.h.b16 %v117
  %v281 = vunpack.c.l.b16 %v118
  %v282 = vunpack.c.h.b16 %v118
  %v283 = vunpack.c.l.b16 %v119
  %v284 = vunpack.c.h.b16 %v119
  %v285 = vunpack.c.l.b16 %v120
  %v286 = vunpack.c.h.b16 %v120
  %v287 = vunpack.c.l.b16 %v121
  %v288 = vunpack.c.h.b16 %v121
  %v289 = vunpack.c.l.b16 %v122
  %v290 = vunpack.c.h.b16 %v122
  %v291 = vunpack.c.l.b16 %v123
  %v292 = vunpack.c.h.b16 %v123
  %v293 = vunpack.c.l.b16 %v124
  %v294 = vunpack.c.h.b16 %v124
  %v295 = vunpack.c.l.b16 %v125
  %v296 = vunpack.c.h.b16 %v125
  %v297 = vunpack.c.l.b16 %v126
  %v298 = vunpack.c.h.b16 %v126
  %v299 = vunpack.c.l.b16 %v127
  %v300 = vunpack.c.h.b16 %v127
  %v301 = vunpack.c.l.b16 %v128
  %v302 = vunpack.c.h.b16 %v128
  %v303 = vunpack.c.l.b16 %v129
  %v304 = vunpack.c.h.b16 %v129
  %v305 = vunpack.c.l.b16 %v130
  %v306 = vunpack.c.h.b16 %v130
  %v307 = vpack.c.b16 %v217, %v211
  %v308 = vpack.c.b16 %v218, %v212
  %v309 = vpack.c.b16 %v219, %v213
  %v310 = vpack.c.b16 %v220, %v214
  %v311 = vpack.c.b16 %v221, %v215
  %v312 = vpack.c.b16 %v222, %v216
  %v313 = vpack.c.b16 %v229, %v223
  %v314 = vpack.c.b16 %v230, %v224
  %v315 = vpack.c.b16 %v231, %v225
  %v316 = vpack.c.b16 %v232, %v226
  %v317 = vpack.c.b16 %v233, %v227
  %v318 = vpack.c.b16 %v234, %v228
  %v319 = vpack.c.b16 %v241, %v235
  %v320 = vpack.c.b16 %v242, %v236
  %v321 = vpack.c.b16 %v243, %v237
  %v322 = vpack.c.b16 %v244, %v238
  %v323 = vpack.c.b16 %v245, %v239
  %v324 = vpack.c.b16 %v246, %v240
  %v325 = vpack.c.b16 %v253, %v247
  %v326 = vpack.c.b16 %v254, %v248
  %v327 = vpack.c.b16 %v255, %v249
  %v328 = vpack.c.b16 %v256, %v250
  %v329 = vpack.c.b16 %v257, %v251
  %v330 = vpack.c.b16 %v258, %v252
  %v331 = vpack.c.b16 %v265, %v259
  %v332 = vpack.c.b16 %v266, %v260
  %v333 = vpack.c.b16 %v267, %v261
  %v334 = vpack.c.b16 %v268, %v262
  %v335 = vpack.c.b16 %v269, %v263
  %v336 = vpack.c.b16 %v270, %v264
  %v337 = vpack.c.b16 %v277, %v271
  %v338 = vpack.c.b16 %v278, %v272
  %v339 = vpack.c.b16 %v279, %v273
  %v340 = vpack.c.b16 %v280, %v274
  %v341 = vpack.c.b16 %v281, %v275
  %v342 = vpack.c.b16 %v282, %v276
  %v343 = vpack.c.b16 %v289, %v283
  %v344 = vpack.c.b16 %v290, %v284
  %v345 = vpack.c.b16 %v291, %v285
  %v346 = vpack.c.b16 %v292, %v286
  %v347 = vpack.c.b16 %v293, %v287
  %v348 = vpack.c.b16 %v294, %v288
  %v349 = vpack.c.b16 %v301, %v295
  %v350 = vpack.c.b16 %v302, %v296
  %v351 = vpack.c.b16 %v303, %v297
  %v352 = vpack.c.b16 %v304, %v298
  %v353 = vpack.c.b16 %v305, %v299
  %v354 = vpack.c.b16 %v306, %v300
  %403 = vmatprep.subr.bf16.mxu0 %v308
  %404 = vmatpush1.bf16.msra.mxu0 %v307
  %405 = vmatprep.subr.bf16.mxu0 %v314
  %406 = vmatpush1.bf16.msra.mxu0 %v313
  %407 = vmatprep.subr.bf16.mxu0 %v320
  %408 = vmatpush1.bf16.msra.mxu0 %v319
  %409 = vmatprep.subr.bf16.mxu0 %v326
  %410 = vmatpush1.bf16.msra.mxu0 %v325
  %411 = vmatprep.subr.bf16.mxu0 %v332
  %412 = vmatpush1.bf16.msra.mxu0 %v331
  %413 = vmatprep.subr.bf16.mxu0 %v338
  %414 = vmatpush1.bf16.msra.mxu0 %v337
  %415 = vmatprep.subr.bf16.mxu0 %v344
  %416 = vmatpush1.bf16.msra.mxu0 %v343
  %417 = vmatprep.subr.bf16.mxu0 %v350
  %418 = vmatpush1.bf16.msra.mxu0 %v349
  %419 = vmatprep.subr.bf16.mxu0 0
  %420 = vmatpush1.bf16.msra.mxu0 0
  %421 = vmatprep.subr.bf16.mxu0 0
  %422 = vmatpush1.bf16.msra.mxu0 0
  %423 = vmatprep.subr.bf16.mxu0 0
  %424 = vmatpush1.bf16.msra.mxu0 0
  %425 = vmatprep.subr.bf16.mxu0 0
  %426 = vmatpush1.bf16.msra.mxu0 0
  %427 = vmatprep.subr.bf16.mxu0 0
  %428 = vmatpush1.bf16.msra.mxu0 0
  %429 = vmatprep.subr.bf16.mxu0 0
  %430 = vmatpush1.bf16.msra.mxu0 0
  %431 = vmatprep.subr.bf16.mxu0 0
  %432 = vmatpush1.bf16.msra.mxu0 0
  %433 = vmatprep.subr.bf16.mxu0 0
  %434 = vmatpush1.bf16.msra.mxu0 0
  %435 = vmatprep.mubr.bf16.mxu0 0
  %436 = vmatmul.mubr.bf16.gmra.mrb[0].mxu0 %v82
  %v437 = vpop.f32.mrb[0].mxu0
  %v438 = vadd.f32 %v136, %v437
  %v439 = vpop.f32.mrb[0].mxu0
  %v440 = vadd.f32 %v140, %v439
  %v441 = vpop.f32.mrb[0].mxu0
  %v442 = vadd.f32 %v136, %v441
  %v443 = vpop.f32.mrb[0].mxu0
  %v444 = vadd.f32 %v140, %v443
  %445 = vdwg.mxu0
  %446 = vmatprep.subr.bf16.mxu0 %v310
  %447 = vmatpush1.bf16.msra.mxu0 %v309
  %448 = vmatprep.subr.bf16.mxu0 %v316
  %449 = vmatpush1.bf16.msra.mxu0 %v315
  %450 = vmatprep.subr.bf16.mxu0 %v322
  %451 = vmatpush1.bf16.msra.mxu0 %v321
  %452 = vmatprep.subr.bf16.mxu0 %v328
  %453 = vmatpush1.bf16.msra.mxu0 %v327
  %454 = vmatprep.subr.bf16.mxu0 %v334
  %455 = vmatpush1.bf16.msra.mxu0 %v333
  %456 = vmatprep.subr.bf16.mxu0 %v340
  %457 = vmatpush1.bf16.msra.mxu0 %v339
  %458 = vmatprep.subr.bf16.mxu0 %v346
  %459 = vmatpush1.bf16.msra.mxu0 %v345
  %460 = vmatprep.subr.bf16.mxu0 %v352
  %461 = vmatpush1.bf16.msra.mxu0 %v351
  %462 = vmatprep.subr.bf16.mxu0 0
  %463 = vmatpush1.bf16.msra.mxu0 0
  %464 = vmatprep.subr.bf16.mxu0 0
  %465 = vmatpush1.bf16.msra.mxu0 0
  %466 = vmatprep.subr.bf16.mxu0 0
  %467 = vmatpush1.bf16.msra.mxu0 0
  %468 = vmatprep.subr.bf16.mxu0 0
  %469 = vmatpush1.bf16.msra.mxu0 0
  %470 = vmatprep.subr.bf16.mxu0 0
  %471 = vmatpush1.bf16.msra.mxu0 0
  %472 = vmatprep.subr.bf16.mxu0 0
  %473 = vmatpush1.bf16.msra.mxu0 0
  %474 = vmatprep.subr.bf16.mxu0 0
  %475 = vmatpush1.bf16.msra.mxu0 0
  %476 = vmatprep.subr.bf16.mxu0 0
  %477 = vmatpush1.bf16.msra.mxu0 0
  %478 = vmatprep.mubr.bf16.mxu0 0
  %479 = vmatmul.mubr.bf16.gmra.mrb[0].mxu0 %v82
  %v480 = vpop.f32.mrb[0].mxu0
  %v481 = vadd.f32 %v144, %v480
  %v482 = vpop.f32.mrb[0].mxu0
  %v483 = vadd.f32 %v148, %v482
  %v484 = vpop.f32.mrb[0].mxu0
  %v485 = vadd.f32 %v144, %v484
  %v486 = vpop.f32.mrb[0].mxu0
  %v487 = vadd.f32 %v148, %v486
  %488 = vdwg.mxu0
  %489 = vmatprep.subr.bf16.mxu0 %v312
  %490 = vmatpush1.bf16.msra.mxu0 %v311
  %491 = vmatprep.subr.bf16.mxu0 %v318
  %492 = vmatpush1.bf16.msra.mxu0 %v317
  %493 = vmatprep.subr.bf16.mxu0 %v324
  %494 = vmatpush1.bf16.msra.mxu0 %v323
  %495 = vmatprep.subr.bf16.mxu0 %v330
  %496 = vmatpush1.bf16.msra.mxu0 %v329
  %497 = vmatprep.subr.bf16.mxu0 %v336
  %498 = vmatpush1.bf16.msra.mxu0 %v335
  %499 = vmatprep.subr.bf16.mxu0 %v342
  %500 = vmatpush1.bf16.msra.mxu0 %v341
  %501 = vmatprep.subr.bf16.mxu0 %v348
  %502 = vmatpush1.bf16.msra.mxu0 %v347
  %503 = vmatprep.subr.bf16.mxu0 %v354
  %504 = vmatpush1.bf16.msra.mxu0 %v353
  %505 = vmatprep.subr.bf16.mxu0 0
  %506 = vmatpush1.bf16.msra.mxu0 0
  %507 = vmatprep.subr.bf16.mxu0 0
  %508 = vmatpush1.bf16.msra.mxu0 0
  %509 = vmatprep.subr.bf16.mxu0 0
  %510 = vmatpush1.bf16.msra.mxu0 0
  %511 = vmatprep.subr.bf16.mxu0 0
  %512 = vmatpush1.bf16.msra.mxu0 0
  %513 = vmatprep.subr.bf16.mxu0 0
  %514 = vmatpush1.bf16.msra.mxu0 0
  %515 = vmatprep.subr.bf16.mxu0 0
  %516 = vmatpush1.bf16.msra.mxu0 0
  %517 = vmatprep.subr.bf16.mxu0 0
  %518 = vmatpush1.bf16.msra.mxu0 0
  %519 = vmatprep.subr.bf16.mxu0 0
  %520 = vmatpush1.bf16.msra.mxu0 0
  %521 = vmatprep.mubr.bf16.mxu0 0
  %522 = vmatmul.mubr.bf16.gmra.mrb[0].mxu0 %v82
  %v523 = vpop.f32.mrb[0].mxu0
  %v524 = vadd.f32 %v152, %v523
  %v525 = vpop.f32.mrb[0].mxu0
  %v526 = vadd.f32 %v156, %v525
  %v527 = vpop.f32.mrb[0].mxu0
  %v528 = vadd.f32 %v152, %v527
  %v529 = vpop.f32.mrb[0].mxu0
  %v530 = vadd.f32 %v156, %v529
  %531 = vdwg.mxu0
  %v532 = vpack.c.bf16 %v442, %v438
  %v533 = vpack.c.bf16 %v444, %v440
  %v534 = vpack.c.bf16 %v485, %v481
  %v535 = vpack.c.bf16 %v487, %v483
  %v536 = vpack.c.bf16 %v528, %v524
  %v537 = vpack.c.bf16 %v530, %v526
  %v544 = vunpack.c.l.b16 %v532
  %v545 = vunpack.c.l.b16 %v533
  %v546 = vunpack.c.l.b16 %v534
  %v547 = vunpack.c.l.b16 %v535
  %v548 = vunpack.c.l.b16 %v536
  %v549 = vunpack.c.l.b16 %v537
  %v550 = vunpack.c.h.b16 %v532
  %v551 = vunpack.c.h.b16 %v533
  %v552 = vunpack.c.h.b16 %v534
  %v553 = vunpack.c.h.b16 %v535
  %v554 = vunpack.c.h.b16 %v536
  %v555 = vunpack.c.h.b16 %v537
  %v556 = vpack.c.b16 %v545, %v544
  %v557 = vpack.c.b16 %v547, %v546
  %v558 = vpack.c.b16 %v549, %v548
  %v559 = vpack.c.b16 %v551, %v550
  %v560 = vpack.c.b16 %v553, %v552
  %v561 = vpack.c.b16 %v555, %v554
  %568 = vst [vmem:[%s5] sm:$0xff] %v556
  %569 = vst [vmem:[%s5 + $0x8] sm:$0xff] %v557
  %570 = vst [vmem:[%s5 + $0x10] sm:$0xff] %v558
  %571 = vst [vmem:[%s5 + $0x18] sm:$0xff] %v559
  %572 = vst [vmem:[%s5 + $0x20] sm:$0xff] %v560
  %573 = vst [vmem:[%s5 + $0x28] sm:$0xff] %v561
  // Predicated region
  $region22: #{speech_model_forward.25} parent=0 // pred_check
    _
  $region23: #{speech_model_forward.25} parent=0 // pred_check_branch
    %575 = sbr.rel (0) target = $region25
  $region24: #{speech_model_forward.25} parent=0 // pred_region
    _
  $region25: #{speech_model_forward.25} parent=0 // pred_fallthru
    _
  // Predicated region
  $region26: #{speech_model_forward.25} parent=0 // pred_check
    _
  $region27: #{speech_model_forward.25} parent=0 // pred_check_branch
    %577 = sbr.rel (0) target = $region29
  $region28: #{speech_model_forward.25} parent=0 // pred_region
    _
  $region29: #{speech_model_forward.25} parent=0 // pred_fallthru
    _

// kernel: speech_model_forward.26
$region0: #{speech_model_forward.26}
  #allocation0 [shape = 'u32[]', space=smem, size = 0x4, offset = 0x4, fixed_abs, tag = 'smem constant byte address 0x4 - core index']
  #allocation1 [shape = 'u32[144,128]{1,0:T(1,128)}', space=vmem, size = 0x12000, scoped, tag = 'internal scratch']
  #allocation2 [shape = 'f32[2,128]{1,0:T(2,128)}', space=vmem, size = 0x400, scoped, tag = 'scratch operand']
  %s0 = inlined_call_operand.vmem [shape: bf16[8,2,768], index: 0, kind: input, shape index: {}]
  %s1 = inlined_call_operand.vmem [shape: bf16[2,128,384], index: 1, kind: input, shape index: {}]
  %s2 = inlined_call_operand.vmem [shape: f32[2,1,384], index: 2, kind: input, shape index: {}]
  %s3 = inlined_call_operand.vmem [shape: f32[8,2,256], index: 3, kind: output, shape index: {}]
  %s4 = sld [smem:[#allocation0]]
  $region134: #{speech_model_forward.26} parent=0
    _
  %s6 = ssub.s32 1, %s4
  %s7 = scalar_select 0, %s6, %s4
  $region1: #{speech_model_forward.26} parent=0
    #allocation3 [shape = 'u8[24576]{0}', space=vmem, size = 0x6000, scoped, tag = 'input window, operand 0']
    #allocation4 [shape = 'u8[16384]{0}', space=vmem, size = 0x4000, scoped, tag = 'output window, operand 0']
    loop: start=0, step=1, limit=4
    $region2: #{speech_model_forward.26} parent=1 // loop_pre_header
      _
    $region3: #{speech_model_forward.26} parent=1 // loop_header
      %s9 = sphi 0, %s13
      %p10 = scmp.ge.s32.totalorder %s9, 4
      %s16 = sphi 0, %s28
      %s17 = sphi 0, %s24
      %s18 = sphi 0, %s16
      %s19 = sphi 0, %s17
      %s20 = sphi 0, %s18
      %s21 = sphi 0, %s19
      %s43 = sphi 0, %s45
      %s46 = sphi 0, %s43
      %s47 = sphi 0, %s46
      %s63 = sphi 0, %s47
      %s69 = sphi 0, %s71
      %s72 = sphi 0, %s69
      %s73 = sphi 0, %s72
      %s89 = sphi 0, %s73
      %s95 = sphi 0, %s97
      %s98 = sphi 0, %s95
      %s99 = sphi 0, %s98
      %s115 = sphi 0, %s99
      %s133 = sphi 0, %s135
      %s136 = sphi 0, %s133
      %s137 = sphi 0, %s136
      %s153 = sphi 0, %s137
    $region4: #{speech_model_forward.26} parent=1 // loop_header_branch
      %12 = sbr.rel (%p10) target = $region8
    $region5: #{speech_model_forward.26} parent=1 // loop_body
      %s14 = ssub.s32 %s9, 1
      %s15 = ssub.s32 %s9, 2
      %s22 = sadd.s32 1, %s17
      %p23 = scmp.ge.s32.totalorder %s22, 1
      %s24 = scalar_select %p23, 0, %s22
      %s25 = sadd.s32 1, %s16
      %s26 = scalar_select %p23, %s25, %s16
      %p27 = scmp.ge.s32.totalorder %s26, 2
      %s28 = scalar_select %p27, 0, %s26
      %s29 = ssub.s32 1, %s16
      %s30 = smul.u32 %s17, %s29
      %s31 = ssub.s32 0, %s17
      %s32 = smul.u32 %s31, %s16
      %s33 = sadd.s32 %s30, %s32
      %s34 = ssub.s32 1, %s28
      %s35 = smul.u32 %s24, %s34
      %s36 = ssub.s32 0, %s24
      %s37 = smul.u32 %s36, %s28
      %s38 = sadd.s32 %s35, %s37
      %s39 = ssub.s32 %s33, %s38
      %s40 = ssub.s32 %s16, %s28
      %s41 = sor.u32 %s39, %s40
      %p42 = scmp.eq.s32.totalorder %s41, 0
      %s44 = sadd.s32 %s43, 1
      %s45 = scalar_select %p42, %s43, %s44
      %p48 = pneg %p42
      %p49 = scmp.eq.s32.totalorder %s9, 1
      %p50 = por %p48, %p49
      %p51 = scmp.ne.s32.totalorder %s43, %s46
      %p52 = scmp.eq.s32.totalorder %s9, 0
      %p53 = por %p51, %p52
      %p54 = scmp.ne.s32.totalorder %s43, %s46
      %p55 = scmp.eq.s32.totalorder %s14, 1
      %p56 = por %p54, %p55
      %p57 = scmp.ne.s32.totalorder %s46, %s47
      %p58 = scmp.eq.s32.totalorder %s14, 0
      %p59 = por %p57, %p58
      %p60 = scmp.ne.s32.totalorder %s46, %s47
      %p61 = scmp.eq.s32.totalorder %s15, 1
      %p62 = por %p60, %p61
      %p64 = scmp.ne.s32.totalorder %s47, %s63
      %p65 = scmp.eq.s32.totalorder %s15, 0
      %p66 = por %p64, %p65
      %s67 = ssub.s32 %s16, %s28
      %p68 = scmp.eq.s32.totalorder %s67, 0
      %s70 = sadd.s32 %s69, 1
      %s71 = scalar_select %p68, %s69, %s70
      %p74 = pneg %p68
      %p75 = scmp.eq.s32.totalorder %s9, 1
      %p76 = por %p74, %p75
      %p77 = scmp.ne.s32.totalorder %s69, %s72
      %p78 = scmp.eq.s32.totalorder %s9, 0
      %p79 = por %p77, %p78
      %p80 = scmp.ne.s32.totalorder %s69, %s72
      %p81 = scmp.eq.s32.totalorder %s14, 1
      %p82 = por %p80, %p81
      %p83 = scmp.ne.s32.totalorder %s72, %s73
      %p84 = scmp.eq.s32.totalorder %s14, 0
      %p85 = por %p83, %p84
      %p86 = scmp.ne.s32.totalorder %s72, %s73
      %p87 = scmp.eq.s32.totalorder %s15, 1
      %p88 = por %p86, %p87
      %p90 = scmp.ne.s32.totalorder %s73, %s89
      %p91 = scmp.eq.s32.totalorder %s15, 0
      %p92 = por %p90, %p91
      %s93 = ssub.s32 %s16, %s28
      %p94 = scmp.eq.s32.totalorder %s93, 0
      %s96 = sadd.s32 %s95, 1
      %s97 = scalar_select %p94, %s95, %s96
      %p100 = pneg %p94
      %p101 = scmp.eq.s32.totalorder %s9, 1
      %p102 = por %p100, %p101
      %p103 = scmp.ne.s32.totalorder %s95, %s98
      %p104 = scmp.eq.s32.totalorder %s9, 0
      %p105 = por %p103, %p104
      %p106 = scmp.ne.s32.totalorder %s95, %s98
      %p107 = scmp.eq.s32.totalorder %s14, 1
      %p108 = por %p106, %p107
      %p109 = scmp.ne.s32.totalorder %s98, %s99
      %p110 = scmp.eq.s32.totalorder %s14, 0
      %p111 = por %p109, %p110
      %p112 = scmp.ne.s32.totalorder %s98, %s99
      %p113 = scmp.eq.s32.totalorder %s15, 1
      %p114 = por %p112, %p113
      %p116 = scmp.ne.s32.totalorder %s99, %s115
      %p117 = scmp.eq.s32.totalorder %s15, 0
      %p118 = por %p116, %p117
      %s119 = ssub.s32 1, %s16
      %s120 = smul.u32 %s17, %s119
      %s121 = ssub.s32 0, %s17
      %s122 = smul.u32 %s121, %s16
      %s123 = sadd.s32 %s120, %s122
      %s124 = ssub.s32 1, %s28
      %s125 = smul.u32 %s24, %s124
      %s126 = ssub.s32 0, %s24
      %s127 = smul.u32 %s126, %s28
      %s128 = sadd.s32 %s125, %s127
      %s129 = ssub.s32 %s123, %s128
      %s130 = ssub.s32 %s16, %s28
      %s131 = sor.u32 %s129, %s130
      %p132 = scmp.eq.s32.totalorder %s131, 0
      %s134 = sadd.s32 %s133, 1
      %s135 = scalar_select %p132, %s133, %s134
      %p138 = pneg %p132
      %p139 = scmp.eq.s32.totalorder %s9, 1
      %p140 = por %p138, %p139
      %p141 = scmp.ne.s32.totalorder %s133, %s136
      %p142 = scmp.eq.s32.totalorder %s9, 0
      %p143 = por %p141, %p142
      %p144 = scmp.ne.s32.totalorder %s133, %s136
      %p145 = scmp.eq.s32.totalorder %s14, 1
      %p146 = por %p144, %p145
      %p147 = scmp.ne.s32.totalorder %s136, %s137
      %p148 = scmp.eq.s32.totalorder %s14, 0
      %p149 = por %p147, %p148
      %p150 = scmp.ne.s32.totalorder %s136, %s137
      %p151 = scmp.eq.s32.totalorder %s15, 1
      %p152 = por %p150, %p151
      %p154 = scmp.ne.s32.totalorder %s137, %s153
      %p155 = scmp.eq.s32.totalorder %s15, 0
      %p156 = por %p154, %p155
      %p157 = scmp.le.s32.totalorder 1, %s9
      %p158 = scmp.lt.s32.totalorder %s9, 3
      %p159 = pnand %p157, %p158
      %p160 = pneg %p159
      // Predicated region
      $region9: #{speech_model_forward.26} parent=5 // pred_check
        _
      $region10: #{speech_model_forward.26} parent=5 // pred_check_branch
        %162 = sbr.rel (%p159) target = $region12
      $region11: #{speech_model_forward.26} parent=5 // pred_region
        %s163 = ssub.s32 %s9, 1
      $region12: #{speech_model_forward.26} parent=5 // pred_fallthru
        _
      %p164 = scmp.lt.s32.totalorder %s9, 2
      // Predicated region
      $region13: #{speech_model_forward.26} parent=5 // pred_check
        %p165 = pneg %p164
      $region14: #{speech_model_forward.26} parent=5 // pred_check_branch
        %167 = sbr.rel (%p165) target = $region16
      $region15: #{speech_model_forward.26} parent=5 // pred_region
        // Predicated region
        $region17: #{speech_model_forward.26} parent=15 // pred_check
          %p168 = pneg %p53
        $region18: #{speech_model_forward.26} parent=15 // pred_check_branch
          %170 = sbr.rel (%p168) target = $region20
        $region19: #{speech_model_forward.26} parent=15 // pred_region
          %s171 = sand.u32 %s43, 1
          %s172 = sand.u32 %s43, 1
          %s173 = smul.addr %s172, 24
          %s174 = scalar_lea.vmem [#allocation3], %s173
          %s175 = ssub.s32 1, %s16
          %s176 = smul.u32 %s17, %s175
          %s177 = ssub.s32 0, %s17
          %s178 = smul.u32 %s177, %s16
          %s179 = sadd.s32 %s176, %s178
          %s180 = smul.u32 8, %s179
          %s181 = smul.u32 3, %s16
          %s182 = smul.addr %s180, 6
          %s183 = sadd.s32 %s181, %s182
          %s184 = scalar_lea.vmem %s0, %s183
          // Predicated region
          $region21: #{speech_model_forward.26} parent=19 // pred_check
            _
          $region22: #{speech_model_forward.26} parent=19 // pred_check_branch
            %186 = sbr.rel (0) target = $region24
          $region23: #{speech_model_forward.26} parent=19 // pred_region
            // Predicated region
            $region25: #{speech_model_forward.26} parent=23 // pred_check
              _
            $region26: #{speech_model_forward.26} parent=23 // pred_check_branch
              %188 = sbr.rel target = $region28
            $region27: #{speech_model_forward.26} parent=23 // pred_region
              // Predicated region
              $region40: #{speech_model_forward.26} parent=27 // pred_check
                _
              $region41: #{speech_model_forward.26} parent=27 // pred_check_branch
                %217 = sbr.rel (0) target = $region43
              $region42: #{speech_model_forward.26} parent=27 // pred_region
                loop: start=0, step=1, limit=1
                $region44: #{speech_model_forward.26} parent=42 // loop_pre_header
                  _
                $region45: #{speech_model_forward.26} parent=42 // loop_header
                  %s219 = sphi 0, %s223
                  %p220 = scmp.ge.s32.totalorder %s219, 1
                  %s224 = sphi %s184, %s184
                  %s225 = sphi %s174, %s174
                $region46: #{speech_model_forward.26} parent=42 // loop_header_branch
                  %222 = sbr.rel (%p220) target = $region50
                $region47: #{speech_model_forward.26} parent=42 // loop_body
                  _
                $region48: #{speech_model_forward.26} parent=42 // loop_footer
                  %s223 = sadd.s32 1, %s219
                $region49: #{speech_model_forward.26} parent=42 // loop_footer_branch
                  %218 = sbr.rel target = $region45
                $region50: #{speech_model_forward.26} parent=42 // loop_exit
                  _
                loop: start=0, step=1, limit=1
                $region51: #{speech_model_forward.26} parent=42 // loop_pre_header
                  _
                $region52: #{speech_model_forward.26} parent=42 // loop_header
                  %s228 = sphi 0, %s232
                  %p229 = scmp.ge.s32.totalorder %s228, 1
                  %s233 = sphi %s184, %s184
                  %s234 = sphi %s174, %s174
                $region53: #{speech_model_forward.26} parent=42 // loop_header_branch
                  %231 = sbr.rel (%p229) target = $region57
                $region54: #{speech_model_forward.26} parent=42 // loop_body
                  %v235 = vld [vmem:[%s233] sm:$0x7]
                  %236 = vst [vmem:[%s234] sm:$0x7] %v235
                  %v237 = vld [vmem:[%s233 + $0x6] sm:$0x7]
                  %238 = vst [vmem:[%s234 + $0x3] sm:$0x7] %v237
                  %v239 = vld [vmem:[%s233 + $0xc] sm:$0x7]
                  %240 = vst [vmem:[%s234 + $0x6] sm:$0x7] %v239
                  %v241 = vld [vmem:[%s233 + $0x12] sm:$0x7]
                  %242 = vst [vmem:[%s234 + $0x9] sm:$0x7] %v241
                  %v243 = vld [vmem:[%s233 + $0x18] sm:$0x7]
                  %244 = vst [vmem:[%s234 + $0xc] sm:$0x7] %v243
                  %v245 = vld [vmem:[%s233 + $0x1e] sm:$0x7]
                  %246 = vst [vmem:[%s234 + $0xf] sm:$0x7] %v245
                  %v247 = vld [vmem:[%s233 + $0x24] sm:$0x7]
                  %248 = vst [vmem:[%s234 + $0x12] sm:$0x7] %v247
                  %v249 = vld [vmem:[%s233 + $0x2a] sm:$0x7]
                  %250 = vst [vmem:[%s234 + $0x15] sm:$0x7] %v249
                $region55: #{speech_model_forward.26} parent=42 // loop_footer
                  %s232 = sadd.s32 1, %s228
                $region56: #{speech_model_forward.26} parent=42 // loop_footer_branch
                  %227 = sbr.rel target = $region52
                $region57: #{speech_model_forward.26} parent=42 // loop_exit
                  _
              $region43: #{speech_model_forward.26} parent=27 // pred_fallthru
                _
            $region28: #{speech_model_forward.26} parent=23 // pred_fallthru
              _
            // Predicated region
            $region29: #{speech_model_forward.26} parent=23 // pred_check
              _
            $region30: #{speech_model_forward.26} parent=23 // pred_check_branch
              %190 = sbr.rel (0) target = $region32
            $region31: #{speech_model_forward.26} parent=23 // pred_region
              loop: start=0, step=1, limit=1
              $region33: #{speech_model_forward.26} parent=31 // loop_pre_header
                _
              $region34: #{speech_model_forward.26} parent=31 // loop_header
                %s193 = sphi 0, %s197
                %p194 = scmp.ge.s32.totalorder %s193, 1
                %s198 = sphi %s184, %s184
                %s199 = sphi %s174, %s174
              $region35: #{speech_model_forward.26} parent=31 // loop_header_branch
                %196 = sbr.rel (%p194) target = $region39
              $region36: #{speech_model_forward.26} parent=31 // loop_body
                %v200 = vld [vmem:[%s198] sm:$0x7]
                %201 = vst [vmem:[%s199] sm:$0x7] %v200
                %v202 = vld [vmem:[%s198 + $0x6] sm:$0x7]
                %203 = vst [vmem:[%s199 + $0x3] sm:$0x7] %v202
                %v204 = vld [vmem:[%s198 + $0xc] sm:$0x7]
                %205 = vst [vmem:[%s199 + $0x6] sm:$0x7] %v204
                %v206 = vld [vmem:[%s198 + $0x12] sm:$0x7]
                %207 = vst [vmem:[%s199 + $0x9] sm:$0x7] %v206
                %v208 = vld [vmem:[%s198 + $0x18] sm:$0x7]
                %209 = vst [vmem:[%s199 + $0xc] sm:$0x7] %v208
                %v210 = vld [vmem:[%s198 + $0x1e] sm:$0x7]
                %211 = vst [vmem:[%s199 + $0xf] sm:$0x7] %v210
                %v212 = vld [vmem:[%s198 + $0x24] sm:$0x7]
                %213 = vst [vmem:[%s199 + $0x12] sm:$0x7] %v212
                %v214 = vld [vmem:[%s198 + $0x2a] sm:$0x7]
                %215 = vst [vmem:[%s199 + $0x15] sm:$0x7] %v214
              $region37: #{speech_model_forward.26} parent=31 // loop_footer
                %s197 = sadd.s32 1, %s193
              $region38: #{speech_model_forward.26} parent=31 // loop_footer_branch
                %192 = sbr.rel target = $region34
              $region39: #{speech_model_forward.26} parent=31 // loop_exit
                _
            $region32: #{speech_model_forward.26} parent=23 // pred_fallthru
              _
          $region24: #{speech_model_forward.26} parent=19 // pred_fallthru
            _
          %251 = vnop
        $region20: #{speech_model_forward.26} parent=15 // pred_fallthru
          _
        // Predicated region
        $region58: #{speech_model_forward.26} parent=15 // pred_check
          %p252 = pneg %p79
        $region59: #{speech_model_forward.26} parent=15 // pred_check_branch
          %254 = sbr.rel (%p252) target = $region61
        $region60: #{speech_model_forward.26} parent=15 // pred_region
          %p255 = scmp.lt.s32.totalorder %s16, 1
          %s256 = scalar_select %p255, %s16, 1
          %s257 = smul.addr %s256, 48
          %s258 = smul.addr %s257, 4
          %s259 = scalar_lea.vmem %s1, %s258
        $region61: #{speech_model_forward.26} parent=15 // pred_fallthru
          _
        // Predicated region
        $region62: #{speech_model_forward.26} parent=15 // pred_check
          %p260 = pneg %p105
        $region63: #{speech_model_forward.26} parent=15 // pred_check_branch
          %262 = sbr.rel (%p260) target = $region65
        $region64: #{speech_model_forward.26} parent=15 // pred_region
          %p263 = scmp.lt.s32.totalorder %s16, 1
          %s264 = scalar_select %p263, %s16, 1
          %s265 = smul.addr %s264, 3
          %s266 = scalar_lea.vmem %s2, %s265
        $region65: #{speech_model_forward.26} parent=15 // pred_fallthru
          _
      $region16: #{speech_model_forward.26} parent=5 // pred_fallthru
        _
      %p267 = scmp.le.s32.totalorder 1, %s9
      %p268 = scmp.lt.s32.totalorder %s9, 3
      %p269 = pnand %p267, %p268
      %p270 = pneg %p269
      // Predicated region
      $region66: #{speech_model_forward.26} parent=5 // pred_check
        _
      $region67: #{speech_model_forward.26} parent=5 // pred_check_branch
        %272 = sbr.rel (%p269) target = $region69
      $region68: #{speech_model_forward.26} parent=5 // pred_region
        %s273 = ssub.s32 %s9, 1
        %s274 = sand.u32 %s46, 1
        %s275 = sand.u32 %s46, 1
        %s276 = smul.addr %s275, 24
        %s277 = scalar_lea.vmem [#allocation3], %s276
        // Predicated region
        $region70: #{speech_model_forward.26} parent=68 // pred_check
          %p278 = pneg %p59
        $region71: #{speech_model_forward.26} parent=68 // pred_check_branch
          %280 = sbr.rel (%p278) target = $region73
        $region72: #{speech_model_forward.26} parent=68 // pred_region
          _
        $region73: #{speech_model_forward.26} parent=68 // pred_fallthru
          _
        %s281 = sand.u32 %s46, 1
        %s282 = sand.u32 %s46, 1
        %s283 = smul.addr %s282, 24
        %s284 = scalar_lea.vmem [#allocation3], %s283
        %p285 = pneg %p59
        %p286 = pneg %p56
        %p287 = scmp.lt.s32.totalorder %s18, 1
        %s288 = scalar_select %p287, %s18, 1
        %s289 = smul.addr %s288, 48
        %s290 = smul.addr %s289, 4
        %s291 = scalar_lea.vmem %s1, %s290
        %p292 = pneg %p85
        %p293 = pneg %p82
        %p294 = scmp.lt.s32.totalorder %s18, 1
        %s295 = scalar_select %p294, %s18, 1
        %s296 = smul.addr %s295, 3
        %s297 = scalar_lea.vmem %s2, %s296
        %p298 = pneg %p111
        %p299 = pneg %p108
        %p300 = pneg %p149
        %p301 = pneg %p146
        %s302 = sand.u32 %s136, 1
        %s303 = sand.u32 %s136, 1
        %s304 = smul.addr %s303, 16
        %s305 = scalar_lea.vmem [#allocation4], %s304
        %s306 = ssub.s32 1, %s18
        %s307 = smul.u32 %s19, %s306
        %s308 = ssub.s32 0, %s19
        %s309 = smul.u32 %s308, %s18
        %s310 = sadd.s32 %s307, %s309
        %s311 = smul.u32 8, %s310
        %s312 = smul.u32 3, %s18
        %p313 = scmp.lt.s32.totalorder %s18, 1
        %s314 = scalar_select %p313, %s18, 1
        %s315 = smul.addr %s314, 48
        %s316 = smul.addr %s315, 4
        %s317 = scalar_lea.vmem %s1, %s316
        %p318 = scmp.lt.s32.totalorder %s18, 1
        %s319 = scalar_select %p318, %s18, 1
        %s320 = smul.addr %s319, 3
        %s321 = scalar_lea.vmem %s2, %s320
        %s322 = ssub.s32 1, %s18
        %s323 = smul.u32 %s19, %s322
        %s324 = ssub.s32 0, %s19
        %s325 = smul.u32 %s324, %s18
        %s326 = sadd.s32 %s323, %s325
        %s327 = smul.u32 8, %s326
        %p329 = scmp.eq.s32.totalorder %s19, 0
        // Predicated region
        $region74: #{speech_model_forward.26} parent=68 // pred_check
          %p330 = pneg %p329
        $region75: #{speech_model_forward.26} parent=68 // pred_check_branch
          %332 = sbr.rel (%p330) target = $region77
        $region76: #{speech_model_forward.26} parent=68 // pred_region
          %333 = vst [vmem:[#allocation2] sm:$0x3] 0.0
        $region77: #{speech_model_forward.26} parent=68 // pred_fallthru
          _
        %v334 = vld [vmem:[%s317] sm:$0xff]
        %v335 = vld [vmem:[%s317 + $0x8] sm:$0xf]
        %v336 = vld [vmem:[%s317 + $0xc] sm:$0xff]
        %v337 = vld [vmem:[%s317 + $0x14] sm:$0xf]
        %v338 = vld [vmem:[%s317 + $0x18] sm:$0xff]
        %v339 = vld [vmem:[%s317 + $0x20] sm:$0xf]
        %v340 = vld [vmem:[%s317 + $0x24] sm:$0xff]
        %v341 = vld [vmem:[%s317 + $0x2c] sm:$0xf]
        %v342 = vld [vmem:[%s317 + $0x30] sm:$0xff]
        %v343 = vld [vmem:[%s317 + $0x38] sm:$0xf]
        %v344 = vld [vmem:[%s317 + $0x3c] sm:$0xff]
        %v345 = vld [vmem:[%s317 + $0x44] sm:$0xf]
        %v346 = vld [vmem:[%s317 + $0x48] sm:$0xff]
        %v347 = vld [vmem:[%s317 + $0x50] sm:$0xf]
        %v348 = vld [vmem:[%s317 + $0x54] sm:$0xff]
        %v349 = vld [vmem:[%s317 + $0x5c] sm:$0xf]
        %v350 = vld [vmem:[%s317 + $0x60] sm:$0xff]
        %v351 = vld [vmem:[%s317 + $0x68] sm:$0xf]
        %v352 = vld [vmem:[%s317 + $0x6c] sm:$0xff]
        %v353 = vld [vmem:[%s317 + $0x74] sm:$0xf]
        %v354 = vld [vmem:[%s317 + $0x78] sm:$0xff]
        %v355 = vld [vmem:[%s317 + $0x80] sm:$0xf]
        %v356 = vld [vmem:[%s317 + $0x84] sm:$0xff]
        %v357 = vld [vmem:[%s317 + $0x8c] sm:$0xf]
        %v358 = vld [vmem:[%s317 + $0x90] sm:$0xff]
        %v359 = vld [vmem:[%s317 + $0x98] sm:$0xf]
        %v360 = vld [vmem:[%s317 + $0x9c] sm:$0xff]
        %v361 = vld [vmem:[%s317 + $0xa4] sm:$0xf]
        %v362 = vld [vmem:[%s317 + $0xa8] sm:$0xff]
        %v363 = vld [vmem:[%s317 + $0xb0] sm:$0xf]
        %v364 = vld [vmem:[%s317 + $0xb4] sm:$0xff]
        %v365 = vld [vmem:[%s317 + $0xbc] sm:$0xf]
        %v366 = vld [vmem:[%s321] sm:$0x7]
        %v367 = vld [vmem:[#allocation2] sm:$0x3]
        loop: start=0, step=1, limit=8
        $region78: #{speech_model_forward.26} parent=68 // loop_pre_header
          _
        $region79: #{speech_model_forward.26} parent=68 // loop_header
          %s369 = sphi 0, %s373
          %p370 = scmp.ge.s32.totalorder %s369, 8
          %v374 = vphi %v367, %v635
        $region80: #{speech_model_forward.26} parent=68 // loop_header_branch
          %372 = sbr.rel (%p370) target = $region84
        $region81: #{speech_model_forward.26} parent=68 // loop_body
          %s375 = ssub.s32 1, %s18
          %s376 = smul.u32 %s369, %s375
          %s377 = ssub.s32 7, %s369
          %s378 = smul.u32 %s377, %s18
          %s379 = sadd.s32 %s376, %s378
          %s380 = smul.u32 %s379, 3
          %s381 = scalar_lea.vmem %s277, %s380 [#allocation3]
          %v382 = vld [vmem:[%s381] sm:$0x7]
          %v383 = vunpack.c.l.bf16 %v382
          %v384 = vpack.c.bf16 %v374, %v374
          %v386 = vlaneseq
          %v387 = vshrl.u32 %v386, 7
          %v388 = vsub.s32 0, %v387
          %v389 = vrot.slane %v366, %v388
          %v390 = vlaneseq
          %v391 = vshrl.u32 %v390, 7
          %v392 = vsub.s32 1, %v391
          %v393 = vrot.slane %v366, %v392
          %v394 = vlaneseq
          %v395 = vshrl.u32 %v394, 7
          %v396 = vsub.s32 2, %v395
          %v397 = vrot.slane %v366, %v396
          %v433 = vunpack.c.l.b16 %v334
          %v434 = vunpack.c.h.b16 %v334
          %v435 = vunpack.c.l.b16 %v335
          %v436 = vunpack.c.l.b16 %v336
          %v437 = vunpack.c.h.b16 %v336
          %v438 = vunpack.c.l.b16 %v337
          %v439 = vunpack.c.l.b16 %v338
          %v440 = vunpack.c.h.b16 %v338
          %v441 = vunpack.c.l.b16 %v339
          %v442 = vunpack.c.l.b16 %v340
          %v443 = vunpack.c.h.b16 %v340
          %v444 = vunpack.c.l.b16 %v341
          %v445 = vunpack.c.l.b16 %v342
          %v446 = vunpack.c.h.b16 %v342
          %v447 = vunpack.c.l.b16 %v343
          %v448 = vunpack.c.l.b16 %v344
          %v449 = vunpack.c.h.b16 %v344
          %v450 = vunpack.c.l.b16 %v345
          %v451 = vunpack.c.l.b16 %v346
          %v452 = vunpack.c.h.b16 %v346
          %v453 = vunpack.c.l.b16 %v347
          %v454 = vunpack.c.l.b16 %v348
          %v455 = vunpack.c.h.b16 %v348
          %v456 = vunpack.c.l.b16 %v349
          %v457 = vunpack.c.l.b16 %v350
          %v458 = vunpack.c.h.b16 %v350
          %v459 = vunpack.c.l.b16 %v351
          %v460 = vunpack.c.l.b16 %v352
          %v461 = vunpack.c.h.b16 %v352
          %v462 = vunpack.c.l.b16 %v353
          %v463 = vunpack.c.l.b16 %v354
          %v464 = vunpack.c.h.b16 %v354
          %v465 = vunpack.c.l.b16 %v355
          %v466 = vunpack.c.l.b16 %v356
          %v467 = vunpack.c.h.b16 %v356
          %v468 = vunpack.c.l.b16 %v357
          %v469 = vunpack.c.l.b16 %v358
          %v470 = vunpack.c.h.b16 %v358
          %v471 = vunpack.c.l.b16 %v359
          %v472 = vunpack.c.l.b16 %v360
          %v473 = vunpack.c.h.b16 %v360
          %v474 = vunpack.c.l.b16 %v361
          %v475 = vunpack.c.l.b16 %v362
          %v476 = vunpack.c.h.b16 %v362
          %v477 = vunpack.c.l.b16 %v363
          %v478 = vunpack.c.l.b16 %v364
          %v479 = vunpack.c.h.b16 %v364
          %v480 = vunpack.c.l.b16 %v365
          %v481 = vpack.c.b16 %v436, %v433
          %v482 = vpack.c.b16 %v437, %v434
          %v483 = vpack.c.b16 %v438, %v435
          %v484 = vpack.c.b16 %v442, %v439
          %v485 = vpack.c.b16 %v443, %v440
          %v486 = vpack.c.b16 %v444, %v441
          %v487 = vpack.c.b16 %v448, %v445
          %v488 = vpack.c.b16 %v449, %v446
          %v489 = vpack.c.b16 %v450, %v447
          %v490 = vpack.c.b16 %v454, %v451
          %v491 = vpack.c.b16 %v455, %v452
          %v492 = vpack.c.b16 %v456, %v453
          %v493 = vpack.c.b16 %v460, %v457
          %v494 = vpack.c.b16 %v461, %v458
          %v495 = vpack.c.b16 %v462, %v459
          %v496 = vpack.c.b16 %v466, %v463
          %v497 = vpack.c.b16 %v467, %v464
          %v498 = vpack.c.b16 %v468, %v465
          %v499 = vpack.c.b16 %v472, %v469
          %v500 = vpack.c.b16 %v473, %v470
          %v501 = vpack.c.b16 %v474, %v471
          %v502 = vpack.c.b16 %v478, %v475
          %v503 = vpack.c.b16 %v479, %v476
          %v504 = vpack.c.b16 %v480, %v477
          %529 = vmatprep.subr.bf16.mxu0 %v482
          %530 = vmatpush1.bf16.msra.mxu0 %v481
          %531 = vmatprep.subr.bf16.mxu0 %v485
          %532 = vmatpush1.bf16.msra.mxu0 %v484
          %533 = vmatprep.subr.bf16.mxu0 %v488
          %534 = vmatpush1.bf16.msra.mxu0 %v487
          %535 = vmatprep.subr.bf16.mxu0 %v491
          %536 = vmatpush1.bf16.msra.mxu0 %v490
          %537 = vmatprep.subr.bf16.mxu0 %v494
          %538 = vmatpush1.bf16.msra.mxu0 %v493
          %539 = vmatprep.subr.bf16.mxu0 %v497
          %540 = vmatpush1.bf16.msra.mxu0 %v496
          %541 = vmatprep.subr.bf16.mxu0 %v500
          %542 = vmatpush1.bf16.msra.mxu0 %v499
          %543 = vmatprep.subr.bf16.mxu0 %v503
          %544 = vmatpush1.bf16.msra.mxu0 %v502
          %545 = vmatprep.subr.bf16.mxu0 0
          %546 = vmatpush1.bf16.msra.mxu0 0
          %547 = vmatprep.subr.bf16.mxu0 0
          %548 = vmatpush1.bf16.msra.mxu0 0
          %549 = vmatprep.subr.bf16.mxu0 0
          %550 = vmatpush1.bf16.msra.mxu0 0
          %551 = vmatprep.subr.bf16.mxu0 0
          %552 = vmatpush1.bf16.msra.mxu0 0
          %553 = vmatprep.subr.bf16.mxu0 0
          %554 = vmatpush1.bf16.msra.mxu0 0
          %555 = vmatprep.subr.bf16.mxu0 0
          %556 = vmatpush1.bf16.msra.mxu0 0
          %557 = vmatprep.subr.bf16.mxu0 0
          %558 = vmatpush1.bf16.msra.mxu0 0
          %559 = vmatprep.subr.bf16.mxu0 0
          %560 = vmatpush1.bf16.msra.mxu0 0
          %561 = vmatprep.mubr.bf16.mxu0 0
          %562 = vmatmul.mubr.bf16.gmra.mrb[0].mxu0 %v384
          %v563 = vpop.f32.mrb[0].mxu0
          %v564 = vadd.f32 %v389, %v563
          %v565 = vpop.f32.mrb[0].mxu0
          %v566 = vadd.f32 %v393, %v565
          %v567 = vpop.f32.mrb[0].mxu0
          %v568 = vpop.f32.mrb[0].mxu0
          %569 = vdwg.mxu0
          %570 = vmatprep.subr.bf16.mxu0 0
          %571 = vmatpush1.bf16.msra.mxu0 %v483
          %572 = vmatprep.subr.bf16.mxu0 0
          %573 = vmatpush1.bf16.msra.mxu0 %v486
          %574 = vmatprep.subr.bf16.mxu0 0
          %575 = vmatpush1.bf16.msra.mxu0 %v489
          %576 = vmatprep.subr.bf16.mxu0 0
          %577 = vmatpush1.bf16.msra.mxu0 %v492
          %578 = vmatprep.subr.bf16.mxu0 0
          %579 = vmatpush1.bf16.msra.mxu0 %v495
          %580 = vmatprep.subr.bf16.mxu0 0
          %581 = vmatpush1.bf16.msra.mxu0 %v498
          %582 = vmatprep.subr.bf16.mxu0 0
          %583 = vmatpush1.bf16.msra.mxu0 %v501
          %584 = vmatprep.subr.bf16.mxu0 0
          %585 = vmatpush1.bf16.msra.mxu0 %v504
          %586 = vmatprep.subr.bf16.mxu0 0
          %587 = vmatpush1.bf16.msra.mxu0 0
          %588 = vmatprep.subr.bf16.mxu0 0
          %589 = vmatpush1.bf16.msra.mxu0 0
          %590 = vmatprep.subr.bf16.mxu0 0
          %591 = vmatpush1.bf16.msra.mxu0 0
          %592 = vmatprep.subr.bf16.mxu0 0
          %593 = vmatpush1.bf16.msra.mxu0 0
          %594 = vmatprep.subr.bf16.mxu0 0
          %595 = vmatpush1.bf16.msra.mxu0 0
          %596 = vmatprep.subr.bf16.mxu0 0
          %597 = vmatpush1.bf16.msra.mxu0 0
          %598 = vmatprep.subr.bf16.mxu0 0
          %599 = vmatpush1.bf16.msra.mxu0 0
          %600 = vmatprep.subr.bf16.mxu0 0
          %601 = vmatpush1.bf16.msra.mxu0 0
          %602 = vmatprep.mubr.bf16.mxu0 0
          %603 = vmatmul.mubr.bf16.gmra.mrb[0].mxu0 %v384
          %v604 = vpop.f32.mrb[0].mxu0
          %v605 = vadd.f32 %v397, %v604
          %v606 = vpop.f32.mrb[0].mxu0
          %v607 = vpop.f32.mrb[0].mxu0
          %v608 = vpop.f32.mrb[0].mxu0
          %609 = vdwg.mxu0
          %v610 = vadd.f32 %v383, %v564
          %v611 = vxor.u32 %v610, 2147483648
          %v612 = vmul.f32 %v611, 1.442695
          %v613 = vpow.pop %v612
          %v614 = vadd.f32 %v613, 1.0
          %v615 = vrcp.pop %v614
          %v616 = vmul.f32 1.0, %v615
          %v618 = vrot.slane %v383, 2
          %v620 = vadd.f32 %v618, %v566
          %v621 = vxor.u32 %v620, 2147483648
          %v622 = vmul.f32 %v621, 1.442695
          %v623 = vpow.pop %v622
          %v624 = vadd.f32 %v623, 1.0
          %v625 = vrcp.pop %v624
          %v626 = vmul.f32 1.0, %v625
          %v627 = vmul.f32 %v616, %v605
          %v628 = vrot.slane %v383, 4
          %v630 = vadd.f32 %v628, %v627
          %v631 = vtanh.pop %v630
          %v632 = vsub.f32 1.0, %v626
          %v633 = vmul.f32 %v632, %v631
          %v634 = vmul.f32 %v626, %v374
          %v635 = vadd.f32 %v633, %v634
          %s636 = smul.u32 %s379, 2
          %s637 = scalar_lea.vmem %s305, %s636 [#allocation4]
          %638 = vst [vmem:[%s637] sm:$0x3] %v635
        $region82: #{speech_model_forward.26} parent=68 // loop_footer
          %s373 = sadd.s32 1, %s369
        $region83: #{speech_model_forward.26} parent=68 // loop_footer_branch
          %368 = sbr.rel target = $region79
        $region84: #{speech_model_forward.26} parent=68 // loop_exit
          _
        %639 = vst [vmem:[#allocation2] sm:$0x3] %v374
        %s640 = sand.u32 %s136, 1
        %s641 = sand.u32 %s136, 1
        %s642 = smul.addr %s641, 16
        %s643 = scalar_lea.vmem [#allocation4], %s642
        // Predicated region
        $region85: #{speech_model_forward.26} parent=68 // pred_check
          %p644 = pneg %p146
        $region86: #{speech_model_forward.26} parent=68 // pred_check_branch
          %646 = sbr.rel (%p644) target = $region88
        $region87: #{speech_model_forward.26} parent=68 // pred_region
          %s647 = ssub.s32 1, %s18
          %s648 = smul.u32 %s19, %s647
          %s649 = ssub.s32 0, %s19
          %s650 = smul.u32 %s649, %s18
          %s651 = sadd.s32 %s648, %s650
          %s652 = smul.u32 8, %s651
          %s653 = smul.addr %s652, 2
          %s654 = sadd.s32 %s18, %s653
          %s655 = smul.addr %s654, 2
          %s656 = scalar_lea.vmem %s3, %s655
          // Predicated region
          $region89: #{speech_model_forward.26} parent=87 // pred_check
            _
          $region90: #{speech_model_forward.26} parent=87 // pred_check_branch
            %658 = sbr.rel (0) target = $region92
          $region91: #{speech_model_forward.26} parent=87 // pred_region
            // Predicated region
            $region93: #{speech_model_forward.26} parent=91 // pred_check
              _
            $region94: #{speech_model_forward.26} parent=91 // pred_check_branch
              %660 = sbr.rel target = $region96
            $region95: #{speech_model_forward.26} parent=91 // pred_region
              // Predicated region
              $region108: #{speech_model_forward.26} parent=95 // pred_check
                _
              $region109: #{speech_model_forward.26} parent=95 // pred_check_branch
                %689 = sbr.rel (0) target = $region111
              $region110: #{speech_model_forward.26} parent=95 // pred_region
                loop: start=0, step=1, limit=1
                $region112: #{speech_model_forward.26} parent=110 // loop_pre_header
                  _
                $region113: #{speech_model_forward.26} parent=110 // loop_header
                  %s691 = sphi 0, %s695
                  %p692 = scmp.ge.s32.totalorder %s691, 1
                  %s696 = sphi %s643, %s643
                  %s697 = sphi %s656, %s656
                $region114: #{speech_model_forward.26} parent=110 // loop_header_branch
                  %694 = sbr.rel (%p692) target = $region118
                $region115: #{speech_model_forward.26} parent=110 // loop_body
                  _
                $region116: #{speech_model_forward.26} parent=110 // loop_footer
                  %s695 = sadd.s32 1, %s691
                $region117: #{speech_model_forward.26} parent=110 // loop_footer_branch
                  %690 = sbr.rel target = $region113
                $region118: #{speech_model_forward.26} parent=110 // loop_exit
                  _
                loop: start=0, step=1, limit=1
                $region119: #{speech_model_forward.26} parent=110 // loop_pre_header
                  _
                $region120: #{speech_model_forward.26} parent=110 // loop_header
                  %s700 = sphi 0, %s704
                  %p701 = scmp.ge.s32.totalorder %s700, 1
                  %s705 = sphi %s643, %s643
                  %s706 = sphi %s656, %s656
                $region121: #{speech_model_forward.26} parent=110 // loop_header_branch
                  %703 = sbr.rel (%p701) target = $region125
                $region122: #{speech_model_forward.26} parent=110 // loop_body
                  %v707 = vld [vmem:[%s705] sm:$0x3]
                  %708 = vst [vmem:[%s706] sm:$0x3] %v707
                  %v709 = vld [vmem:[%s705 + $0x2] sm:$0x3]
                  %710 = vst [vmem:[%s706 + $0x4] sm:$0x3] %v709
                  %v711 = vld [vmem:[%s705 + $0x4] sm:$0x3]
                  %712 = vst [vmem:[%s706 + $0x8] sm:$0x3] %v711
                  %v713 = vld [vmem:[%s705 + $0x6] sm:$0x3]
                  %714 = vst [vmem:[%s706 + $0xc] sm:$0x3] %v713
                  %v715 = vld [vmem:[%s705 + $0x8] sm:$0x3]
                  %716 = vst [vmem:[%s706 + $0x10] sm:$0x3] %v715
                  %v717 = vld [vmem:[%s705 + $0xa] sm:$0x3]
                  %718 = vst [vmem:[%s706 + $0x14] sm:$0x3] %v717
                  %v719 = vld [vmem:[%s705 + $0xc] sm:$0x3]
                  %720 = vst [vmem:[%s706 + $0x18] sm:$0x3] %v719
                  %v721 = vld [vmem:[%s705 + $0xe] sm:$0x3]
                  %722 = vst [vmem:[%s706 + $0x1c] sm:$0x3] %v721
                $region123: #{speech_model_forward.26} parent=110 // loop_footer
                  %s704 = sadd.s32 1, %s700
                $region124: #{speech_model_forward.26} parent=110 // loop_footer_branch
                  %699 = sbr.rel target = $region120
                $region125: #{speech_model_forward.26} parent=110 // loop_exit
                  _
              $region111: #{speech_model_forward.26} parent=95 // pred_fallthru
                _
            $region96: #{speech_model_forward.26} parent=91 // pred_fallthru
              _
            // Predicated region
            $region97: #{speech_model_forward.26} parent=91 // pred_check
              _
            $region98: #{speech_model_forward.26} parent=91 // pred_check_branch
              %662 = sbr.rel (0) target = $region100
            $region99: #{speech_model_forward.26} parent=91 // pred_region
              loop: start=0, step=1, limit=1
              $region101: #{speech_model_forward.26} parent=99 // loop_pre_header
                _
              $region102: #{speech_model_forward.26} parent=99 // loop_header
                %s665 = sphi 0, %s669
                %p666 = scmp.ge.s32.totalorder %s665, 1
                %s670 = sphi %s643, %s643
                %s671 = sphi %s656, %s656
              $region103: #{speech_model_forward.26} parent=99 // loop_header_branch
                %668 = sbr.rel (%p666) target = $region107
              $region104: #{speech_model_forward.26} parent=99 // loop_body
                %v672 = vld [vmem:[%s670] sm:$0x3]
                %673 = vst [vmem:[%s671] sm:$0x3] %v672
                %v674 = vld [vmem:[%s670 + $0x2] sm:$0x3]
                %675 = vst [vmem:[%s671 + $0x4] sm:$0x3] %v674
                %v676 = vld [vmem:[%s670 + $0x4] sm:$0x3]
                %677 = vst [vmem:[%s671 + $0x8] sm:$0x3] %v676
                %v678 = vld [vmem:[%s670 + $0x6] sm:$0x3]
                %679 = vst [vmem:[%s671 + $0xc] sm:$0x3] %v678
                %v680 = vld [vmem:[%s670 + $0x8] sm:$0x3]
                %681 = vst [vmem:[%s671 + $0x10] sm:$0x3] %v680
                %v682 = vld [vmem:[%s670 + $0xa] sm:$0x3]
                %683 = vst [vmem:[%s671 + $0x14] sm:$0x3] %v682
                %v684 = vld [vmem:[%s670 + $0xc] sm:$0x3]
                %685 = vst [vmem:[%s671 + $0x18] sm:$0x3] %v684
                %v686 = vld [vmem:[%s670 + $0xe] sm:$0x3]
                %687 = vst [vmem:[%s671 + $0x1c] sm:$0x3] %v686
              $region105: #{speech_model_forward.26} parent=99 // loop_footer
                %s669 = sadd.s32 1, %s665
              $region106: #{speech_model_forward.26} parent=99 // loop_footer_branch
                %664 = sbr.rel target = $region102
              $region107: #{speech_model_forward.26} parent=99 // loop_exit
                _
            $region100: #{speech_model_forward.26} parent=91 // pred_fallthru
              _
          $region92: #{speech_model_forward.26} parent=87 // pred_fallthru
            _
          %723 = vnop
        $region88: #{speech_model_forward.26} parent=68 // pred_fallthru
          _
      $region69: #{speech_model_forward.26} parent=5 // pred_fallthru
        _
      %p724 = scmp.le.s32.totalorder 2, %s9
      // Predicated region
      $region126: #{speech_model_forward.26} parent=5 // pred_check
        %p725 = pneg %p724
      $region127: #{speech_model_forward.26} parent=5 // pred_check_branch
        %727 = sbr.rel (%p725) target = $region129
      $region128: #{speech_model_forward.26} parent=5 // pred_region
        %s728 = ssub.s32 %s9, 2
        // Predicated region
        $region130: #{speech_model_forward.26} parent=128 // pred_check
          %p729 = pneg %p152
        $region131: #{speech_model_forward.26} parent=128 // pred_check_branch
          %731 = sbr.rel (%p729) target = $region133
        $region132: #{speech_model_forward.26} parent=128 // pred_region
          %s732 = sand.u32 %s137, 1
          %s733 = sand.u32 %s137, 1
          %s734 = smul.addr %s733, 16
          %s735 = scalar_lea.vmem [#allocation4], %s734
        $region133: #{speech_model_forward.26} parent=128 // pred_fallthru
          _
      $region129: #{speech_model_forward.26} parent=5 // pred_fallthru
        _
    $region6: #{speech_model_forward.26} parent=1 // loop_footer
      %s13 = sadd.s32 1, %s9
    $region7: #{speech_model_forward.26} parent=1 // loop_footer_branch
      %8 = sbr.rel target = $region3
    $region8: #{speech_model_forward.26} parent=1 // loop_exit
      _

// kernel: speech_model_forward.28
$region0: #{speech_model_forward.28}
  #allocation0 [shape = 'u32[]', space=smem, size = 0x4, offset = 0x4, fixed_abs, tag = 'smem constant byte address 0x4 - core index']
  #allocation1 [shape = 'u32[144,128]{1,0:T(1,128)}', space=vmem, size = 0x12000, scoped, tag = 'internal scratch']
  #allocation2 [shape = 'f32[8,128]{1,0:T(8,128)}', space=vmem, size = 0x1000, scoped, tag = 'scratch operand']
  %s0 = inlined_call_operand.vmem [shape: bf16[2,8,768], index: 0, kind: input, shape index: {}]
  %s1 = inlined_call_operand.vmem [shape: bf16[2,128,384], index: 1, kind: input, shape index: {}]
  %s2 = inlined_call_operand.vmem [shape: f32[2,1,384], index: 2, kind: input, shape index: {}]
  %s3 = inlined_call_operand.vmem [shape: f32[2,8,256], index: 3, kind: output, shape index: {}]
  %s4 = sld [smem:[#allocation0]]
  $region116: #{speech_model_forward.28} parent=0
    _
  %s6 = ssub.s32 1, %s4
  %s7 = scalar_select 0, %s6, %s4
  $region1: #{speech_model_forward.28} parent=0
    #allocation3 [shape = 'u8[24576]{0}', space=vmem, size = 0x6000, scoped, tag = 'input window, operand 0']
    #allocation4 [shape = 'u8[16384]{0}', space=vmem, size = 0x4000, scoped, tag = 'output window, operand 0']
    loop: start=0, step=1, limit=4
    $region2: #{speech_model_forward.28} parent=1 // loop_pre_header
      _
    $region3: #{speech_model_forward.28} parent=1 // loop_header
      %s9 = sphi 0, %s13
      %p10 = scmp.ge.s32.totalorder %s9, 4
      %s16 = sphi 0, %s28
      %s17 = sphi 0, %s24
      %s18 = sphi 0, %s16
      %s19 = sphi 0, %s17
      %s20 = sphi 0, %s18
      %s21 = sphi 0, %s19
      %s43 = sphi 0, %s45
      %s46 = sphi 0, %s43
      %s47 = sphi 0, %s46
      %s63 = sphi 0, %s47
      %s69 = sphi 0, %s71
      %s72 = sphi 0, %s69
      %s73 = sphi 0, %s72
      %s89 = sphi 0, %s73
      %s95 = sphi 0, %s97
      %s98 = sphi 0, %s95
      %s99 = sphi 0, %s98
      %s115 = sphi 0, %s99
      %s133 = sphi 0, %s135
      %s136 = sphi 0, %s133
      %s137 = sphi 0, %s136
      %s153 = sphi 0, %s137
    $region4: #{speech_model_forward.28} parent=1 // loop_header_branch
      %12 = sbr.rel (%p10) target = $region8
    $region5: #{speech_model_forward.28} parent=1 // loop_body
      %s14 = ssub.s32 %s9, 1
      %s15 = ssub.s32 %s9, 2
      %s22 = sadd.s32 1, %s17
      %p23 = scmp.ge.s32.totalorder %s22, 1
      %s24 = scalar_select %p23, 0, %s22
      %s25 = sadd.s32 1, %s16
      %s26 = scalar_select %p23, %s25, %s16
      %p27 = scmp.ge.s32.totalorder %s26, 2
      %s28 = scalar_select %p27, 0, %s26
      %s29 = ssub.s32 1, %s16
      %s30 = smul.u32 %s17, %s29
      %s31 = ssub.s32 0, %s17
      %s32 = smul.u32 %s31, %s16
      %s33 = sadd.s32 %s30, %s32
      %s34 = ssub.s32 1, %s28
      %s35 = smul.u32 %s24, %s34
      %s36 = ssub.s32 0, %s24
      %s37 = smul.u32 %s36, %s28
      %s38 = sadd.s32 %s35, %s37
      %s39 = ssub.s32 %s33, %s38
      %s40 = ssub.s32 %s16, %s28
      %s41 = sor.u32 %s39, %s40
      %p42 = scmp.eq.s32.totalorder %s41, 0
      %s44 = sadd.s32 %s43, 1
      %s45 = scalar_select %p42, %s43, %s44
      %p48 = pneg %p42
      %p49 = scmp.eq.s32.totalorder %s9, 1
      %p50 = por %p48, %p49
      %p51 = scmp.ne.s32.totalorder %s43, %s46
      %p52 = scmp.eq.s32.totalorder %s9, 0
      %p53 = por %p51, %p52
      %p54 = scmp.ne.s32.totalorder %s43, %s46
      %p55 = scmp.eq.s32.totalorder %s14, 1
      %p56 = por %p54, %p55
      %p57 = scmp.ne.s32.totalorder %s46, %s47
      %p58 = scmp.eq.s32.totalorder %s14, 0
      %p59 = por %p57, %p58
      %p60 = scmp.ne.s32.totalorder %s46, %s47
      %p61 = scmp.eq.s32.totalorder %s15, 1
      %p62 = por %p60, %p61
      %p64 = scmp.ne.s32.totalorder %s47, %s63
      %p65 = scmp.eq.s32.totalorder %s15, 0
      %p66 = por %p64, %p65
      %s67 = ssub.s32 %s16, %s28
      %p68 = scmp.eq.s32.totalorder %s67, 0
      %s70 = sadd.s32 %s69, 1
      %s71 = scalar_select %p68, %s69, %s70
      %p74 = pneg %p68
      %p75 = scmp.eq.s32.totalorder %s9, 1
      %p76 = por %p74, %p75
      %p77 = scmp.ne.s32.totalorder %s69, %s72
      %p78 = scmp.eq.s32.totalorder %s9, 0
      %p79 = por %p77, %p78
      %p80 = scmp.ne.s32.totalorder %s69, %s72
      %p81 = scmp.eq.s32.totalorder %s14, 1
      %p82 = por %p80, %p81
      %p83 = scmp.ne.s32.totalorder %s72, %s73
      %p84 = scmp.eq.s32.totalorder %s14, 0
      %p85 = por %p83, %p84
      %p86 = scmp.ne.s32.totalorder %s72, %s73
      %p87 = scmp.eq.s32.totalorder %s15, 1
      %p88 = por %p86, %p87
      %p90 = scmp.ne.s32.totalorder %s73, %s89
      %p91 = scmp.eq.s32.totalorder %s15, 0
      %p92 = por %p90, %p91
      %s93 = ssub.s32 %s16, %s28
      %p94 = scmp.eq.s32.totalorder %s93, 0
      %s96 = sadd.s32 %s95, 1
      %s97 = scalar_select %p94, %s95, %s96
      %p100 = pneg %p94
      %p101 = scmp.eq.s32.totalorder %s9, 1
      %p102 = por %p100, %p101
      %p103 = scmp.ne.s32.totalorder %s95, %s98
      %p104 = scmp.eq.s32.totalorder %s9, 0
      %p105 = por %p103, %p104
      %p106 = scmp.ne.s32.totalorder %s95, %s98
      %p107 = scmp.eq.s32.totalorder %s14, 1
      %p108 = por %p106, %p107
      %p109 = scmp.ne.s32.totalorder %s98, %s99
      %p110 = scmp.eq.s32.totalorder %s14, 0
      %p111 = por %p109, %p110
      %p112 = scmp.ne.s32.totalorder %s98, %s99
      %p113 = scmp.eq.s32.totalorder %s15, 1
      %p114 = por %p112, %p113
      %p116 = scmp.ne.s32.totalorder %s99, %s115
      %p117 = scmp.eq.s32.totalorder %s15, 0
      %p118 = por %p116, %p117
      %s119 = ssub.s32 1, %s16
      %s120 = smul.u32 %s17, %s119
      %s121 = ssub.s32 0, %s17
      %s122 = smul.u32 %s121, %s16
      %s123 = sadd.s32 %s120, %s122
      %s124 = ssub.s32 1, %s28
      %s125 = smul.u32 %s24, %s124
      %s126 = ssub.s32 0, %s24
      %s127 = smul.u32 %s126, %s28
      %s128 = sadd.s32 %s125, %s127
      %s129 = ssub.s32 %s123, %s128
      %s130 = ssub.s32 %s16, %s28
      %s131 = sor.u32 %s129, %s130
      %p132 = scmp.eq.s32.totalorder %s131, 0
      %s134 = sadd.s32 %s133, 1
      %s135 = scalar_select %p132, %s133, %s134
      %p138 = pneg %p132
      %p139 = scmp.eq.s32.totalorder %s9, 1
      %p140 = por %p138, %p139
      %p141 = scmp.ne.s32.totalorder %s133, %s136
      %p142 = scmp.eq.s32.totalorder %s9, 0
      %p143 = por %p141, %p142
      %p144 = scmp.ne.s32.totalorder %s133, %s136
      %p145 = scmp.eq.s32.totalorder %s14, 1
      %p146 = por %p144, %p145
      %p147 = scmp.ne.s32.totalorder %s136, %s137
      %p148 = scmp.eq.s32.totalorder %s14, 0
      %p149 = por %p147, %p148
      %p150 = scmp.ne.s32.totalorder %s136, %s137
      %p151 = scmp.eq.s32.totalorder %s15, 1
      %p152 = por %p150, %p151
      %p154 = scmp.ne.s32.totalorder %s137, %s153
      %p155 = scmp.eq.s32.totalorder %s15, 0
      %p156 = por %p154, %p155
      %p157 = scmp.le.s32.totalorder 1, %s9
      %p158 = scmp.lt.s32.totalorder %s9, 3
      %p159 = pnand %p157, %p158
      %p160 = pneg %p159
      // Predicated region
      $region9: #{speech_model_forward.28} parent=5 // pred_check
        _
      $region10: #{speech_model_forward.28} parent=5 // pred_check_branch
        %162 = sbr.rel (%p159) target = $region12
      $region11: #{speech_model_forward.28} parent=5 // pred_region
        %s163 = ssub.s32 %s9, 1
      $region12: #{speech_model_forward.28} parent=5 // pred_fallthru
        _
      %p164 = scmp.lt.s32.totalorder %s9, 2
      // Predicated region
      $region13: #{speech_model_forward.28} parent=5 // pred_check
        %p165 = pneg %p164
      $region14: #{speech_model_forward.28} parent=5 // pred_check_branch
        %167 = sbr.rel (%p165) target = $region16
      $region15: #{speech_model_forward.28} parent=5 // pred_region
        // Predicated region
        $region17: #{speech_model_forward.28} parent=15 // pred_check
          %p168 = pneg %p53
        $region18: #{speech_model_forward.28} parent=15 // pred_check_branch
          %170 = sbr.rel (%p168) target = $region20
        $region19: #{speech_model_forward.28} parent=15 // pred_region
          %s171 = sand.u32 %s43, 1
          %s172 = sand.u32 %s43, 1
          %s173 = smul.addr %s172, 24
          %s174 = scalar_lea.vmem [#allocation3], %s173
          %s175 = ssub.s32 1, %s16
          %s176 = smul.u32 %s17, %s175
          %s177 = ssub.s32 0, %s17
          %s178 = smul.u32 %s177, %s16
          %s179 = sadd.s32 %s176, %s178
          %s180 = smul.u32 2, %s179
          %s181 = smul.u32 3, %s16
          %s182 = smul.addr %s180, 6
          %s183 = sadd.s32 %s181, %s182
          %s184 = smul.addr %s183, 4
          %s185 = scalar_lea.vmem %s0, %s184
          // Predicated region
          $region21: #{speech_model_forward.28} parent=19 // pred_check
            _
          $region22: #{speech_model_forward.28} parent=19 // pred_check_branch
            %187 = sbr.rel (0) target = $region24
          $region23: #{speech_model_forward.28} parent=19 // pred_region
            // Predicated region
            $region25: #{speech_model_forward.28} parent=23 // pred_check
              _
            $region26: #{speech_model_forward.28} parent=23 // pred_check_branch
              %189 = sbr.rel (0) target = $region28
            $region27: #{speech_model_forward.28} parent=23 // pred_region
              %s190 = scalar_lea.vmem %s185, 8
              %s191 = scalar_lea.vmem %s174, 8 [#allocation3]
              loop: start=0, step=1, limit=1
              $region29: #{speech_model_forward.28} parent=27 // loop_pre_header
                _
              $region30: #{speech_model_forward.28} parent=27 // loop_header
                %s193 = sphi 0, %s197
                %p194 = scmp.ge.s32.totalorder %s193, 1
                %s198 = sphi %s185, %s185
                %s199 = sphi %s174, %s174
              $region31: #{speech_model_forward.28} parent=27 // loop_header_branch
                %196 = sbr.rel (%p194) target = $region35
              $region32: #{speech_model_forward.28} parent=27 // loop_body
                %v200 = vld [vmem:[%s198] sm:$0xff]
                %201 = vst [vmem:[%s199] sm:$0xff] %v200
                %v202 = vld [vmem:[%s198 + $0x18] sm:$0xff]
                %203 = vst [vmem:[%s199 + $0xc] sm:$0xff] %v202
              $region33: #{speech_model_forward.28} parent=27 // loop_footer
                %s197 = sadd.s32 1, %s193
              $region34: #{speech_model_forward.28} parent=27 // loop_footer_branch
                %192 = sbr.rel target = $region30
              $region35: #{speech_model_forward.28} parent=27 // loop_exit
                _
              loop: start=0, step=1, limit=1
              $region36: #{speech_model_forward.28} parent=27 // loop_pre_header
                _
              $region37: #{speech_model_forward.28} parent=27 // loop_header
                %s206 = sphi 0, %s210
                %p207 = scmp.ge.s32.totalorder %s206, 1
                %s211 = sphi %s190, %s190
                %s212 = sphi %s191, %s191
              $region38: #{speech_model_forward.28} parent=27 // loop_header_branch
                %209 = sbr.rel (%p207) target = $region42
              $region39: #{speech_model_forward.28} parent=27 // loop_body
                %v213 = vld [vmem:[%s211] sm:$0xf]
                %214 = vst [vmem:[%s212] sm:$0xf] %v213
                %v215 = vld [vmem:[%s211 + $0x18] sm:$0xf]
                %216 = vst [vmem:[%s212 + $0xc] sm:$0xf] %v215
              $region40: #{speech_model_forward.28} parent=27 // loop_footer
                %s210 = sadd.s32 1, %s206
              $region41: #{speech_model_forward.28} parent=27 // loop_footer_branch
                %205 = sbr.rel target = $region37
              $region42: #{speech_model_forward.28} parent=27 // loop_exit
                _
            $region28: #{speech_model_forward.28} parent=23 // pred_fallthru
              _
          $region24: #{speech_model_forward.28} parent=19 // pred_fallthru
            _
          %217 = vnop
        $region20: #{speech_model_forward.28} parent=15 // pred_fallthru
          _
        // Predicated region
        $region43: #{speech_model_forward.28} parent=15 // pred_check
          %p218 = pneg %p79
        $region44: #{speech_model_forward.28} parent=15 // pred_check_branch
          %220 = sbr.rel (%p218) target = $region46
        $region45: #{speech_model_forward.28} parent=15 // pred_region
          %p221 = scmp.lt.s32.totalorder %s16, 1
          %s222 = scalar_select %p221, %s16, 1
          %s223 = smul.addr %s222, 48
          %s224 = smul.addr %s223, 4
          %s225 = scalar_lea.vmem %s1, %s224
        $region46: #{speech_model_forward.28} parent=15 // pred_fallthru
          _
        // Predicated region
        $region47: #{speech_model_forward.28} parent=15 // pred_check
          %p226 = pneg %p105
        $region48: #{speech_model_forward.28} parent=15 // pred_check_branch
          %228 = sbr.rel (%p226) target = $region50
        $region49: #{speech_model_forward.28} parent=15 // pred_region
          %p229 = scmp.lt.s32.totalorder %s16, 1
          %s230 = scalar_select %p229, %s16, 1
          %s231 = smul.addr %s230, 3
          %s232 = scalar_lea.vmem %s2, %s231
        $region50: #{speech_model_forward.28} parent=15 // pred_fallthru
          _
      $region16: #{speech_model_forward.28} parent=5 // pred_fallthru
        _
      %p233 = scmp.le.s32.totalorder 1, %s9
      %p234 = scmp.lt.s32.totalorder %s9, 3
      %p235 = pnand %p233, %p234
      %p236 = pneg %p235
      // Predicated region
      $region51: #{speech_model_forward.28} parent=5 // pred_check
        _
      $region52: #{speech_model_forward.28} parent=5 // pred_check_branch
        %238 = sbr.rel (%p235) target = $region54
      $region53: #{speech_model_forward.28} parent=5 // pred_region
        %s239 = ssub.s32 %s9, 1
        %s240 = sand.u32 %s46, 1
        %s241 = sand.u32 %s46, 1
        %s242 = smul.addr %s241, 24
        %s243 = scalar_lea.vmem [#allocation3], %s242
        // Predicated region
        $region55: #{speech_model_forward.28} parent=53 // pred_check
          %p244 = pneg %p59
        $region56: #{speech_model_forward.28} parent=53 // pred_check_branch
          %246 = sbr.rel (%p244) target = $region58
        $region57: #{speech_model_forward.28} parent=53 // pred_region
          _
        $region58: #{speech_model_forward.28} parent=53 // pred_fallthru
          _
        %s247 = sand.u32 %s46, 1
        %s248 = sand.u32 %s46, 1
        %s249 = smul.addr %s248, 24
        %s250 = scalar_lea.vmem [#allocation3], %s249
        %p251 = pneg %p59
        %p252 = pneg %p56
        %p253 = scmp.lt.s32.totalorder %s18, 1
        %s254 = scalar_select %p253, %s18, 1
        %s255 = smul.addr %s254, 48
        %s256 = smul.addr %s255, 4
        %s257 = scalar_lea.vmem %s1, %s256
        %p258 = pneg %p85
        %p259 = pneg %p82
        %p260 = scmp.lt.s32.totalorder %s18, 1
        %s261 = scalar_select %p260, %s18, 1
        %s262 = smul.addr %s261, 3
        %s263 = scalar_lea.vmem %s2, %s262
        %p264 = pneg %p111
        %p265 = pneg %p108
        %p266 = pneg %p149
        %p267 = pneg %p146
        %s268 = sand.u32 %s136, 1
        %s269 = sand.u32 %s136, 1
        %s270 = smul.addr %s269, 16
        %s271 = scalar_lea.vmem [#allocation4], %s270
        %s272 = ssub.s32 1, %s18
        %s273 = smul.u32 %s19, %s272
        %s274 = ssub.s32 0, %s19
        %s275 = smul.u32 %s274, %s18
        %s276 = sadd.s32 %s273, %s275
        %s277 = smul.u32 2, %s276
        %s278 = smul.u32 3, %s18
        %p279 = scmp.lt.s32.totalorder %s18, 1
        %s280 = scalar_select %p279, %s18, 1
        %s281 = smul.addr %s280, 48
        %s282 = smul.addr %s281, 4
        %s283 = scalar_lea.vmem %s1, %s282
        %p284 = scmp.lt.s32.totalorder %s18, 1
        %s285 = scalar_select %p284, %s18, 1
        %s286 = smul.addr %s285, 3
        %s287 = scalar_lea.vmem %s2, %s286
        %s288 = ssub.s32 1, %s18
        %s289 = smul.u32 %s19, %s288
        %s290 = ssub.s32 0, %s19
        %s291 = smul.u32 %s290, %s18
        %s292 = sadd.s32 %s289, %s291
        %s293 = smul.u32 2, %s292
        %p295 = scmp.eq.s32.totalorder %s19, 0
        // Predicated region
        $region59: #{speech_model_forward.28} parent=53 // pred_check
          %p296 = pneg %p295
        $region60: #{speech_model_forward.28} parent=53 // pred_check_branch
          %298 = sbr.rel (%p296) target = $region62
        $region61: #{speech_model_forward.28} parent=53 // pred_region
          %299 = vst [vmem:[#allocation2] sm:$0xff] 0.0
        $region62: #{speech_model_forward.28} parent=53 // pred_fallthru
          _
        %v300 = vld [vmem:[%s283] sm:$0xff]
        %v301 = vld [vmem:[%s283 + $0x8] sm:$0xf]
        %v302 = vld [vmem:[%s283 + $0xc] sm:$0xff]
        %v303 = vld [vmem:[%s283 + $0x14] sm:$0xf]
        %v304 = vld [vmem:[%s283 + $0x18] sm:$0xff]
        %v305 = vld [vmem:[%s283 + $0x20] sm:$0xf]
        %v306 = vld [vmem:[%s283 + $0x24] sm:$0xff]
        %v307 = vld [vmem:[%s283 + $0x2c] sm:$0xf]
        %v308 = vld [vmem:[%s283 + $0x30] sm:$0xff]
        %v309 = vld [vmem:[%s283 + $0x38] sm:$0xf]
        %v310 = vld [vmem:[%s283 + $0x3c] sm:$0xff]
        %v311 = vld [vmem:[%s283 + $0x44] sm:$0xf]
        %v312 = vld [vmem:[%s283 + $0x48] sm:$0xff]
        %v313 = vld [vmem:[%s283 + $0x50] sm:$0xf]
        %v314 = vld [vmem:[%s283 + $0x54] sm:$0xff]
        %v315 = vld [vmem:[%s283 + $0x5c] sm:$0xf]
        %v316 = vld [vmem:[%s283 + $0x60] sm:$0xff]
        %v317 = vld [vmem:[%s283 + $0x68] sm:$0xf]
        %v318 = vld [vmem:[%s283 + $0x6c] sm:$0xff]
        %v319 = vld [vmem:[%s283 + $0x74] sm:$0xf]
        %v320 = vld [vmem:[%s283 + $0x78] sm:$0xff]
        %v321 = vld [vmem:[%s283 + $0x80] sm:$0xf]
        %v322 = vld [vmem:[%s283 + $0x84] sm:$0xff]
        %v323 = vld [vmem:[%s283 + $0x8c] sm:$0xf]
        %v324 = vld [vmem:[%s283 + $0x90] sm:$0xff]
        %v325 = vld [vmem:[%s283 + $0x98] sm:$0xf]
        %v326 = vld [vmem:[%s283 + $0x9c] sm:$0xff]
        %v327 = vld [vmem:[%s283 + $0xa4] sm:$0xf]
        %v328 = vld [vmem:[%s283 + $0xa8] sm:$0xff]
        %v329 = vld [vmem:[%s283 + $0xb0] sm:$0xf]
        %v330 = vld [vmem:[%s283 + $0xb4] sm:$0xff]
        %v331 = vld [vmem:[%s283 + $0xbc] sm:$0xf]
        %v332 = vld [vmem:[%s287] sm:$0x7]
        %v333 = vld [vmem:[#allocation2] sm:$0xff]
        loop: start=0, step=1, limit=2
        $region63: #{speech_model_forward.28} parent=53 // loop_pre_header
          _
        $region64: #{speech_model_forward.28} parent=53 // loop_header
          %s335 = sphi 0, %s339
          %p336 = scmp.ge.s32.totalorder %s335, 2
          %v340 = vphi %v333, %v600
        $region65: #{speech_model_forward.28} parent=53 // loop_header_branch
          %338 = sbr.rel (%p336) target = $region69
        $region66: #{speech_model_forward.28} parent=53 // loop_body
          %s341 = ssub.s32 1, %s18
          %s342 = smul.u32 %s335, %s341
          %s343 = ssub.s32 1, %s335
          %s344 = smul.u32 %s343, %s18
          %s345 = sadd.s32 %s342, %s344
          %s346 = smul.u32 %s345, 3
          %s347 = smul.addr %s346, 4
          %s348 = scalar_lea.vmem %s243, %s347 [#allocation3]
          %v349 = vld [vmem:[%s348] sm:$0xff]
          %v350 = vld [vmem:[%s348 + $0x8] sm:$0xf]
          %v351 = vunpack.c.l.bf16 %v349
          %v352 = vunpack.c.h.bf16 %v349
          %v353 = vunpack.c.l.bf16 %v350
          %v354 = vpack.c.bf16 %v340, %v340
          %v356 = vlaneseq
          %v357 = vshrl.u32 %v356, 7
          %v358 = vsub.s32 0, %v357
          %v359 = vrot.slane %v332, %v358
          %v360 = vlaneseq
          %v361 = vshrl.u32 %v360, 7
          %v362 = vsub.s32 1, %v361
          %v363 = vrot.slane %v332, %v362
          %v364 = vlaneseq
          %v365 = vshrl.u32 %v364, 7
          %v366 = vsub.s32 2, %v365
          %v367 = vrot.slane %v332, %v366
          %v403 = vunpack.c.l.b16 %v300
          %v404 = vunpack.c.h.b16 %v300
          %v405 = vunpack.c.l.b16 %v301
          %v406 = vunpack.c.l.b16 %v302
          %v407 = vunpack.c.h.b16 %v302
          %v408 = vunpack.c.l.b16 %v303
          %v409 = vunpack.c.l.b16 %v304
          %v410 = vunpack.c.h.b16 %v304
          %v411 = vunpack.c.l.b16 %v305
          %v412 = vunpack.c.l.b16 %v306
          %v413 = vunpack.c.h.b16 %v306
          %v414 = vunpack.c.l.b16 %v307
          %v415 = vunpack.c.l.b16 %v308
          %v416 = vunpack.c.h.b16 %v308
          %v417 = vunpack.c.l.b16 %v309
          %v418 = vunpack.c.l.b16 %v310
          %v419 = vunpack.c.h.b16 %v310
          %v420 = vunpack.c.l.b16 %v311
          %v421 = vunpack.c.l.b16 %v312
          %v422 = vunpack.c.h.b16 %v312
          %v423 = vunpack.c.l.b16 %v313
          %v424 = vunpack.c.l.b16 %v314
          %v425 = vunpack.c.h.b16 %v314
          %v426 = vunpack.c.l.b16 %v315
          %v427 = vunpack.c.l.b16 %v316
          %v428 = vunpack.c.h.b16 %v316
          %v429 = vunpack.c.l.b16 %v317
          %v430 = vunpack.c.l.b16 %v318
          %v431 = vunpack.c.h.b16 %v318
          %v432 = vunpack.c.l.b16 %v319
          %v433 = vunpack.c.l.b16 %v320
          %v434 = vunpack.c.h.b16 %v320
          %v435 = vunpack.c.l.b16 %v321
          %v436 = vunpack.c.l.b16 %v322
          %v437 = vunpack.c.h.b16 %v322
          %v438 = vunpack.c.l.b16 %v323
          %v439 = vunpack.c.l.b16 %v324
          %v440 = vunpack.c.h.b16 %v324
          %v441 = vunpack.c.l.b16 %v325
          %v442 = vunpack.c.l.b16 %v326
          %v443 = vunpack.c.h.b16 %v326
          %v444 = vunpack.c.l.b16 %v327
          %v445 = vunpack.c.l.b16 %v328
          %v446 = vunpack.c.h.b16 %v328
          %v447 = vunpack.c.l.b16 %v329
          %v448 = vunpack.c.l.b16 %v330
          %v449 = vunpack.c.h.b16 %v330
          %v450 = vunpack.c.l.b16 %v331
          %v451 = vpack.c.b16 %v406, %v403
          %v452 = vpack.c.b16 %v407, %v404
          %v453 = vpack.c.b16 %v408, %v405
          %v454 = vpack.c.b16 %v412, %v409
          %v455 = vpack.c.b16 %v413, %v410
          %v456 = vpack.c.b16 %v414, %v411
          %v457 = vpack.c.b16 %v418, %v415
          %v458 = vpack.c.b16 %v419, %v416
          %v459 = vpack.c.b16 %v420, %v417
          %v460 = vpack.c.b16 %v424, %v421
          %v461 = vpack.c.b16 %v425, %v422
          %v462 = vpack.c.b16 %v426, %v423
          %v463 = vpack.c.b16 %v430, %v427
          %v464 = vpack.c.b16 %v431, %v428
          %v465 = vpack.c.b16 %v432, %v429
          %v466 = vpack.c.b16 %v436, %v433
          %v467 = vpack.c.b16 %v437, %v434
          %v468 = vpack.c.b16 %v438, %v435
          %v469 = vpack.c.b16 %v442, %v439
          %v470 = vpack.c.b16 %v443, %v440
          %v471 = vpack.c.b16 %v444, %v441
          %v472 = vpack.c.b16 %v448, %v445
          %v473 = vpack.c.b16 %v449, %v446
          %v474 = vpack.c.b16 %v450, %v447
          %499 = vmatprep.subr.bf16.mxu0 %v452
          %500 = vmatpush1.bf16.msra.mxu0 %v451
          %501 = vmatprep.subr.bf16.mxu0 %v455
          %502 = vmatpush1.bf16.msra.mxu0 %v454
          %503 = vmatprep.subr.bf16.mxu0 %v458
          %504 = vmatpush1.bf16.msra.mxu0 %v457
          %505 = vmatprep.subr.bf16.mxu0 %v461
          %506 = vmatpush1.bf16.msra.mxu0 %v460
          %507 = vmatprep.subr.bf16.mxu0 %v464
          %508 = vmatpush1.bf16.msra.mxu0 %v463
          %509 = vmatprep.subr.bf16.mxu0 %v467
          %510 = vmatpush1.bf16.msra.mxu0 %v466
          %511 = vmatprep.subr.bf16.mxu0 %v470
          %512 = vmatpush1.bf16.msra.mxu0 %v469
          %513 = vmatprep.subr.bf16.mxu0 %v473
          %514 = vmatpush1.bf16.msra.mxu0 %v472
          %515 = vmatprep.subr.bf16.mxu0 0
          %516 = vmatpush1.bf16.msra.mxu0 0
          %517 = vmatprep.subr.bf16.mxu0 0
          %518 = vmatpush1.bf16.msra.mxu0 0
          %519 = vmatprep.subr.bf16.mxu0 0
          %520 = vmatpush1.bf16.msra.mxu0 0
          %521 = vmatprep.subr.bf16.mxu0 0
          %522 = vmatpush1.bf16.msra.mxu0 0
          %523 = vmatprep.subr.bf16.mxu0 0
          %524 = vmatpush1.bf16.msra.mxu0 0
          %525 = vmatprep.subr.bf16.mxu0 0
          %526 = vmatpush1.bf16.msra.mxu0 0
          %527 = vmatprep.subr.bf16.mxu0 0
          %528 = vmatpush1.bf16.msra.mxu0 0
          %529 = vmatprep.subr.bf16.mxu0 0
          %530 = vmatpush1.bf16.msra.mxu0 0
          %531 = vmatprep.mubr.bf16.mxu0 0
          %532 = vmatmul.mubr.bf16.gmra.mrb[0].mxu0 %v354
          %v533 = vpop.f32.mrb[0].mxu0
          %v534 = vadd.f32 %v359, %v533
          %v535 = vpop.f32.mrb[0].mxu0
          %v536 = vadd.f32 %v363, %v535
          %v537 = vpop.f32.mrb[0].mxu0
          %v538 = vpop.f32.mrb[0].mxu0
          %539 = vdwg.mxu0
          %540 = vmatprep.subr.bf16.mxu0 0
          %541 = vmatpush1.bf16.msra.mxu0 %v453
          %542 = vmatprep.subr.bf16.mxu0 0
          %543 = vmatpush1.bf16.msra.mxu0 %v456
          %544 = vmatprep.subr.bf16.mxu0 0
          %545 = vmatpush1.bf16.msra.mxu0 %v459
          %546 = vmatprep.subr.bf16.mxu0 0
          %547 = vmatpush1.bf16.msra.mxu0 %v462
          %548 = vmatprep.subr.bf16.mxu0 0
          %549 = vmatpush1.bf16.msra.mxu0 %v465
          %550 = vmatprep.subr.bf16.mxu0 0
          %551 = vmatpush1.bf16.msra.mxu0 %v468
          %552 = vmatprep.subr.bf16.mxu0 0
          %553 = vmatpush1.bf16.msra.mxu0 %v471
          %554 = vmatprep.subr.bf16.mxu0 0
          %555 = vmatpush1.bf16.msra.mxu0 %v474
          %556 = vmatprep.subr.bf16.mxu0 0
          %557 = vmatpush1.bf16.msra.mxu0 0
          %558 = vmatprep.subr.bf16.mxu0 0
          %559 = vmatpush1.bf16.msra.mxu0 0
          %560 = vmatprep.subr.bf16.mxu0 0
          %561 = vmatpush1.bf16.msra.mxu0 0
          %562 = vmatprep.subr.bf16.mxu0 0
          %563 = vmatpush1.bf16.msra.mxu0 0
          %564 = vmatprep.subr.bf16.mxu0 0
          %565 = vmatpush1.bf16.msra.mxu0 0
          %566 = vmatprep.subr.bf16.mxu0 0
          %567 = vmatpush1.bf16.msra.mxu0 0
          %568 = vmatprep.subr.bf16.mxu0 0
          %569 = vmatpush1.bf16.msra.mxu0 0
          %570 = vmatprep.subr.bf16.mxu0 0
          %571 = vmatpush1.bf16.msra.mxu0 0
          %572 = vmatprep.mubr.bf16.mxu0 0
          %573 = vmatmul.mubr.bf16.gmra.mrb[0].mxu0 %v354
          %v574 = vpop.f32.mrb[0].mxu0
          %v575 = vadd.f32 %v367, %v574
          %v576 = vpop.f32.mrb[0].mxu0
          %v577 = vpop.f32.mrb[0].mxu0
          %v578 = vpop.f32.mrb[0].mxu0
          %579 = vdwg.mxu0
          %v580 = vadd.f32 %v351, %v534
          %v581 = vxor.u32 %v580, 2147483648
          %v582 = vmul.f32 %v581, 1.442695
          %v583 = vpow.pop %v582
          %v584 = vadd.f32 %v583, 1.0
          %v585 = vrcp.pop %v584
          %v586 = vmul.f32 1.0, %v585
          %v587 = vadd.f32 %v352, %v536
          %v588 = vxor.u32 %v587, 2147483648
          %v589 = vmul.f32 %v588, 1.442695
          %v590 = vpow.pop %v589
          %v591 = vadd.f32 %v590, 1.0
          %v592 = vrcp.pop %v591
          %v593 = vmul.f32 1.0, %v592
          %v594 = vmul.f32 %v586, %v575
          %v595 = vadd.f32 %v353, %v594
          %v596 = vtanh.pop %v595
          %v597 = vsub.f32 1.0, %v593
          %v598 = vmul.f32 %v597, %v596
          %v599 = vmul.f32 %v593, %v340
          %v600 = vadd.f32 %v598, %v599
          %s601 = smul.u32 %s345, 8
          %s602 = scalar_lea.vmem %s271, %s601 [#allocation4]
          %603 = vst [vmem:[%s602] sm:$0xff] %v600
        $region67: #{speech_model_forward.28} parent=53 // loop_footer
          %s339 = sadd.s32 1, %s335
        $region68: #{speech_model_forward.28} parent=53 // loop_footer_branch
          %334 = sbr.rel target = $region64
        $region69: #{speech_model_forward.28} parent=53 // loop_exit
          _
        %604 = vst [vmem:[#allocation2] sm:$0xff] %v340
        %s605 = sand.u32 %s136, 1
        %s606 = sand.u32 %s136, 1
        %s607 = smul.addr %s606, 16
        %s608 = scalar_lea.vmem [#allocation4], %s607
        // Predicated region
        $region70: #{speech_model_forward.28} parent=53 // pred_check
          %p609 = pneg %p146
        $region71: #{speech_model_forward.28} parent=53 // pred_check_branch
          %611 = sbr.rel (%p609) target = $region73
        $region72: #{speech_model_forward.28} parent=53 // pred_region
          %s612 = ssub.s32 1, %s18
          %s613 = smul.u32 %s19, %s612
          %s614 = ssub.s32 0, %s19
          %s615 = smul.u32 %s614, %s18
          %s616 = sadd.s32 %s613, %s615
          %s617 = smul.u32 2, %s616
          %s618 = smul.addr %s617, 2
          %s619 = sadd.s32 %s18, %s618
          %s620 = smul.addr %s619, 8
          %s621 = scalar_lea.vmem %s3, %s620
          // Predicated region
          $region74: #{speech_model_forward.28} parent=72 // pred_check
            _
          $region75: #{speech_model_forward.28} parent=72 // pred_check_branch
            %623 = sbr.rel (0) target = $region77
          $region76: #{speech_model_forward.28} parent=72 // pred_region
            // Predicated region
            $region78: #{speech_model_forward.28} parent=76 // pred_check
              _
            $region79: #{speech_model_forward.28} parent=76 // pred_check_branch
              %625 = sbr.rel (0) target = $region81
            $region80: #{speech_model_forward.28} parent=76 // pred_region
              // Predicated region
              $region93: #{speech_model_forward.28} parent=80 // pred_check
                _
              $region94: #{speech_model_forward.28} parent=80 // pred_check_branch
                %642 = sbr.rel (0) target = $region96
              $region95: #{speech_model_forward.28} parent=80 // pred_region
                loop: start=0, step=1, limit=1
                $region97: #{speech_model_forward.28} parent=95 // loop_pre_header
                  _
                $region98: #{speech_model_forward.28} parent=95 // loop_header
                  %s644 = sphi 0, %s648
                  %p645 = scmp.ge.s32.totalorder %s644, 1
                  %s649 = sphi %s608, %s608
                  %s650 = sphi %s621, %s621
                $region99: #{speech_model_forward.28} parent=95 // loop_header_branch
                  %647 = sbr.rel (%p645) target = $region103
                $region100: #{speech_model_forward.28} parent=95 // loop_body
                  %v651 = vld [vmem:[%s649] sm:$0xff]
                  %652 = vst [vmem:[%s650] sm:$0xff] %v651
                  %v653 = vld [vmem:[%s649 + $0x8] sm:$0xff]
                  %654 = vst [vmem:[%s650 + $0x10] sm:$0xff] %v653
                $region101: #{speech_model_forward.28} parent=95 // loop_footer
                  %s648 = sadd.s32 1, %s644
                $region102: #{speech_model_forward.28} parent=95 // loop_footer_branch
                  %643 = sbr.rel target = $region98
                $region103: #{speech_model_forward.28} parent=95 // loop_exit
                  _
              $region96: #{speech_model_forward.28} parent=80 // pred_fallthru
                _
              // Predicated region
              $region104: #{speech_model_forward.28} parent=80 // pred_check
                _
              $region105: #{speech_model_forward.28} parent=80 // pred_check_branch
                %656 = sbr.rel target = $region107
              $region106: #{speech_model_forward.28} parent=80 // pred_region
                _
              $region107: #{speech_model_forward.28} parent=80 // pred_fallthru
                _
            $region81: #{speech_model_forward.28} parent=76 // pred_fallthru
              _
            // Predicated region
            $region82: #{speech_model_forward.28} parent=76 // pred_check
              _
            $region83: #{speech_model_forward.28} parent=76 // pred_check_branch
              %627 = sbr.rel target = $region85
            $region84: #{speech_model_forward.28} parent=76 // pred_region
              loop: start=0, step=1, limit=1
              $region86: #{speech_model_forward.28} parent=84 // loop_pre_header
                _
              $region87: #{speech_model_forward.28} parent=84 // loop_header
                %s630 = sphi 0, %s634
                %p631 = scmp.ge.s32.totalorder %s630, 1
                %s635 = sphi %s608, %s608
                %s636 = sphi %s621, %s621
              $region88: #{speech_model_forward.28} parent=84 // loop_header_branch
                %633 = sbr.rel (%p631) target = $region92
              $region89: #{speech_model_forward.28} parent=84 // loop_body
                %v637 = vld [vmem:[%s635] sm:$0xff]
                %638 = vst [vmem:[%s636] sm:$0xff] %v637
                %v639 = vld [vmem:[%s635 + $0x8] sm:$0xff]
                %640 = vst [vmem:[%s636 + $0x10] sm:$0xff] %v639
              $region90: #{speech_model_forward.28} parent=84 // loop_footer
                %s634 = sadd.s32 1, %s630
              $region91: #{speech_model_forward.28} parent=84 // loop_footer_branch
                %629 = sbr.rel target = $region87
              $region92: #{speech_model_forward.28} parent=84 // loop_exit
                _
            $region85: #{speech_model_forward.28} parent=76 // pred_fallthru
              _
          $region77: #{speech_model_forward.28} parent=72 // pred_fallthru
            _
          %657 = vnop
        $region73: #{speech_model_forward.28} parent=53 // pred_fallthru
          _
      $region54: #{speech_model_forward.28} parent=5 // pred_fallthru
        _
      %p658 = scmp.le.s32.totalorder 2, %s9
      // Predicated region
      $region108: #{speech_model_forward.28} parent=5 // pred_check
        %p659 = pneg %p658
      $region109: #{speech_model_forward.28} parent=5 // pred_check_branch
        %661 = sbr.rel (%p659) target = $region111
      $region110: #{speech_model_forward.28} parent=5 // pred_region
        %s662 = ssub.s32 %s9, 2
        // Predicated region
        $region112: #{speech_model_forward.28} parent=110 // pred_check
          %p663 = pneg %p152
        $region113: #{speech_model_forward.28} parent=110 // pred_check_branch
          %665 = sbr.rel (%p663) target = $region115
        $region114: #{speech_model_forward.28} parent=110 // pred_region
          %s666 = sand.u32 %s137, 1
          %s667 = sand.u32 %s137, 1
          %s668 = smul.addr %s667, 16
          %s669 = scalar_lea.vmem [#allocation4], %s668
        $region115: #{speech_model_forward.28} parent=110 // pred_fallthru
          _
      $region111: #{speech_model_forward.28} parent=5 // pred_fallthru
        _
    $region6: #{speech_model_forward.28} parent=1 // loop_footer
      %s13 = sadd.s32 1, %s9
    $region7: #{speech_model_forward.28} parent=1 // loop_footer_branch
      %8 = sbr.rel target = $region3
    $region8: #{speech_model_forward.28} parent=1 // loop_exit
      _

// kernel: speech_model_forward.29
$region0: #{speech_model_forward.29}
  #allocation0 [shape = 'u32[]', space=smem, size = 0x4, offset = 0x4, fixed_abs, tag = 'smem constant byte address 0x4 - core index']
  #allocation1 [shape = 'u32[144,128]{1,0:T(1,128)}', space=vmem, size = 0x12000, scoped, tag = 'internal scratch']
  %s0 = inlined_call_operand.vmem [shape: f32[16,256], index: 0, kind: input, shape index: {}]
  %s1 = inlined_call_operand.vmem [shape: bf16[256,128], index: 1, kind: input, shape index: {}]
  %s2 = inlined_call_operand.vmem [shape: f32[1,128], index: 2, kind: input, shape index: {}]
  %s3 = inlined_call_operand.vmem [shape: bf16[128,128], index: 3, kind: input, shape index: {}]
  %s4 = inlined_call_operand.vmem [shape: f32[1,128], index: 4, kind: input, shape index: {}]
  %s5 = inlined_call_operand.vmem [shape: f32[16,128], index: 5, kind: output, shape index: {}]
  %s6 = sld [smem:[#allocation0]]
  $region30: #{speech_model_forward.29} parent=0
    _
  %s8 = ssub.s32 1, %s6
  %s9 = scalar_select 0, %s8, %s6
  // Predicated region
  $region2: #{speech_model_forward.29} parent=0 // pred_check
    _
  $region3: #{speech_model_forward.29} parent=0 // pred_check_branch
    %11 = sbr.rel (0) target = $region5
  $region4: #{speech_model_forward.29} parent=0 // pred_region
    _
  $region5: #{speech_model_forward.29} parent=0 // pred_fallthru
    _
  // Predicated region
  $region6: #{speech_model_forward.29} parent=0 // pred_check
    _
  $region7: #{speech_model_forward.29} parent=0 // pred_check_branch
    %13 = sbr.rel (0) target = $region9
  $region8: #{speech_model_forward.29} parent=0 // pred_region
    _
  $region9: #{speech_model_forward.29} parent=0 // pred_fallthru
    _
  // Predicated region
  $region10: #{speech_model_forward.29} parent=0 // pred_check
    _
  $region11: #{speech_model_forward.29} parent=0 // pred_check_branch
    %15 = sbr.rel (0) target = $region13
  $region12: #{speech_model_forward.29} parent=0 // pred_region
    _
  $region13: #{speech_model_forward.29} parent=0 // pred_fallthru
    _
  // Predicated region
  $region14: #{speech_model_forward.29} parent=0 // pred_check
    _
  $region15: #{speech_model_forward.29} parent=0 // pred_check_branch
    %17 = sbr.rel (0) target = $region17
  $region16: #{speech_model_forward.29} parent=0 // pred_region
    _
  $region17: #{speech_model_forward.29} parent=0 // pred_fallthru
    _
  // Predicated region
  $region18: #{speech_model_forward.29} parent=0 // pred_check
    _
  $region19: #{speech_model_forward.29} parent=0 // pred_check_branch
    %19 = sbr.rel (0) target = $region21
  $region20: #{speech_model_forward.29} parent=0 // pred_region
    _
  $region21: #{speech_model_forward.29} parent=0 // pred_fallthru
    _
  %v21 = vld [vmem:[%s0] sm:$0xff]
  %v22 = vld [vmem:[%s0 + $0x8] sm:$0xff]
  %v23 = vld [vmem:[%s0 + $0x10] sm:$0xff]
  %v24 = vld [vmem:[%s0 + $0x18] sm:$0xff]
  %v25 = vpack.c.bf16 %v23, %v21
  %v26 = vpack.c.bf16 %v24, %v22
  %v27 = vld [vmem:[%s1] sm:$0xf]
  %v28 = vld [vmem:[%s1 + $0x4] sm:$0xf]
  %v29 = vld [vmem:[%s1 + $0x8] sm:$0xf]
  %v30 = vld [vmem:[%s1 + $0xc] sm:$0xf]
  %v31 = vld [vmem:[%s1 + $0x10] sm:$0xf]
  %v32 = vld [vmem:[%s1 + $0x14] sm:$0xf]
  %v33 = vld [vmem:[%s1 + $0x18] sm:$0xf]
  %v34 = vld [vmem:[%s1 + $0x1c] sm:$0xf]
  %v35 = vld [vmem:[%s1 + $0x20] sm:$0xf]
  %v36 = vld [vmem:[%s1 + $0x24] sm:$0xf]
  %v37 = vld [vmem:[%s1 + $0x28] sm:$0xf]
  %v38 = vld [vmem:[%s1 + $0x2c] sm:$0xf]
  %v39 = vld [vmem:[%s1 + $0x30] sm:$0xf]
  %v40 = vld [vmem:[%s1 + $0x34] sm:$0xf]
  %v41 = vld [vmem:[%s1 + $0x38] sm:$0xf]
  %v42 = vld [vmem:[%s1 + $0x3c] sm:$0xf]
  %v43 = vld [vmem:[%s1 + $0x40] sm:$0xf]
  %v44 = vld [vmem:[%s1 + $0x44] sm:$0xf]
  %v45 = vld [vmem:[%s1 + $0x48] sm:$0xf]
  %v46 = vld [vmem:[%s1 + $0x4c] sm:$0xf]
  %v47 = vld [vmem:[%s1 + $0x50] sm:$0xf]
  %v48 = vld [vmem:[%s1 + $0x54] sm:$0xf]
  %v49 = vld [vmem:[%s1 + $0x58] sm:$0xf]
  %v50 = vld [vmem:[%s1 + $0x5c] sm:$0xf]
  %v51 = vld [vmem:[%s1 + $0x60] sm:$0xf]
  %v52 = vld [vmem:[%s1 + $0x64] sm:$0xf]
  %v53 = vld [vmem:[%s1 + $0x68] sm:$0xf]
  %v54 = vld [vmem:[%s1 + $0x6c] sm:$0xf]
  %v55 = vld [vmem:[%s1 + $0x70] sm:$0xf]
  %v56 = vld [vmem:[%s1 + $0x74] sm:$0xf]
  %v57 = vld [vmem:[%s1 + $0x78] sm:$0xf]
  %v58 = vld [vmem:[%s1 + $0x7c] sm:$0xf]
  %v59 = vld [vmem:[%s2] sm:$0x1]
  %v61 = vlaneseq
  %v62 = vshrl.u32 %v61, 7
  %v63 = vsub.s32 0, %v62
  %v64 = vrot.slane %v59, %v63
  %v98 = vunpack.c.l.b16 %v27
  %v99 = vunpack.c.l.b16 %v28
  %v100 = vunpack.c.l.b16 %v29
  %v101 = vunpack.c.l.b16 %v30
  %v102 = vunpack.c.l.b16 %v31
  %v103 = vunpack.c.l.b16 %v32
  %v104 = vunpack.c.l.b16 %v33
  %v105 = vunpack.c.l.b16 %v34
  %v106 = vunpack.c.l.b16 %v35
  %v107 = vunpack.c.l.b16 %v36
  %v108 = vunpack.c.l.b16 %v37
  %v109 = vunpack.c.l.b16 %v38
  %v110 = vunpack.c.l.b16 %v39
  %v111 = vunpack.c.l.b16 %v40
  %v112 = vunpack.c.l.b16 %v41
  %v113 = vunpack.c.l.b16 %v42
  %v114 = vunpack.c.l.b16 %v43
  %v115 = vunpack.c.l.b16 %v44
  %v116 = vunpack.c.l.b16 %v45
  %v117 = vunpack.c.l.b16 %v46
  %v118 = vunpack.c.l.b16 %v47
  %v119 = vunpack.c.l.b16 %v48
  %v120 = vunpack.c.l.b16 %v49
  %v121 = vunpack.c.l.b16 %v50
  %v122 = vunpack.c.l.b16 %v51
  %v123 = vunpack.c.l.b16 %v52
  %v124 = vunpack.c.l.b16 %v53
  %v125 = vunpack.c.l.b16 %v54
  %v126 = vunpack.c.l.b16 %v55
  %v127 = vunpack.c.l.b16 %v56
  %v128 = vunpack.c.l.b16 %v57
  %v129 = vunpack.c.l.b16 %v58
  %v130 = vpack.c.b16 %v99, %v98
  %v131 = vpack.c.b16 %v101, %v100
  %v132 = vpack.c.b16 %v103, %v102
  %v133 = vpack.c.b16 %v105, %v104
  %v134 = vpack.c.b16 %v107, %v106
  %v135 = vpack.c.b16 %v109, %v108
  %v136 = vpack.c.b16 %v111, %v110
  %v137 = vpack.c.b16 %v113, %v112
  %v138 = vpack.c.b16 %v115, %v114
  %v139 = vpack.c.b16 %v117, %v116
  %v140 = vpack.c.b16 %v119, %v118
  %v141 = vpack.c.b16 %v121, %v120
  %v142 = vpack.c.b16 %v123, %v122
  %v143 = vpack.c.b16 %v125, %v124
  %v144 = vpack.c.b16 %v127, %v126
  %v145 = vpack.c.b16 %v129, %v128
  %162 = vmatprep.subr.bf16.mxu0 0
  %163 = vmatpush1.bf16.msra.mxu0 %v130
  %164 = vmatprep.subr.bf16.mxu0 0
  %165 = vmatpush1.bf16.msra.mxu0 %v131
  %166 = vmatprep.subr.bf16.mxu0 0
  %167 = vmatpush1.bf16.msra.mxu0 %v132
  %168 = vmatprep.subr.bf16.mxu0 0
  %169 = vmatpush1.bf16.msra.mxu0 %v133
  %170 = vmatprep.subr.bf16.mxu0 0
  %171 = vmatpush1.bf16.msra.mxu0 %v134
  %172 = vmatprep.subr.bf16.mxu0 0
  %173 = vmatpush1.bf16.msra.mxu0 %v135
  %174 = vmatprep.subr.bf16.mxu0 0
  %175 = vmatpush1.bf16.msra.mxu0 %v136
  %176 = vmatprep.subr.bf16.mxu0 0
  %177 = vmatpush1.bf16.msra.mxu0 %v137
  %178 = vmatprep.subr.bf16.mxu0 0
  %179 = vmatpush1.bf16.msra.mxu0 %v138
  %180 = vmatprep.subr.bf16.mxu0 0
  %181 = vmatpush1.bf16.msra.mxu0 %v139
  %182 = vmatprep.subr.bf16.mxu0 0
  %183 = vmatpush1.bf16.msra.mxu0 %v140
  %184 = vmatprep.subr.bf16.mxu0 0
  %185 = vmatpush1.bf16.msra.mxu0 %v141
  %186 = vmatprep.subr.bf16.mxu0 0
  %187 = vmatpush1.bf16.msra.mxu0 %v142
  %188 = vmatprep.subr.bf16.mxu0 0
  %189 = vmatpush1.bf16.msra.mxu0 %v143
  %190 = vmatprep.subr.bf16.mxu0 0
  %191 = vmatpush1.bf16.msra.mxu0 %v144
  %192 = vmatprep.subr.bf16.mxu0 0
  %193 = vmatpush1.bf16.msra.mxu0 %v145
  %194 = vmatprep.mubr.bf16.mxu0 %v26
  %195 = vmatmul.mubr.bf16.gmra.mrb[0].mxu0 %v25
  %v196 = vpop.f32.mrb[0].mxu0
  %v197 = vadd.f32 %v64, %v196
  %v198 = vpop.f32.mrb[0].mxu0
  %v199 = vpop.f32.mrb[0].mxu0
  %v200 = vadd.f32 %v64, %v199
  %v201 = vpop.f32.mrb[0].mxu0
  %202 = vdwg.mxu0
  %v203 = vmul.f32 %v197, 0.5
  %v204 = vmul.f32 %v200, 0.5
  %v205 = vmul.f32 %v197, 0.044715
  %v206 = vmul.f32 %v200, 0.044715
  %v207 = vmul.f32 %v205, %v197
  %v208 = vmul.f32 %v206, %v200
  %v209 = vmul.f32 %v207, %v197
  %v210 = vmul.f32 %v208, %v200
  %v211 = vadd.f32 %v197, %v209
  %v212 = vadd.f32 %v200, %v210
  %v213 = vmul.f32 %v211, 0.7978846
  %v214 = vmul.f32 %v212, 0.7978846
  %v215 = vtanh.pop %v213
  %v216 = vtanh.pop %v214
  %v217 = vadd.f32 %v215, 1.0
  %v218 = vadd.f32 %v216, 1.0
  %v219 = vmul.f32 %v203, %v217
  %v220 = vmul.f32 %v204, %v218
  %v221 = vpack.c.bf16 %v220, %v219
  %v222 = vld [vmem:[%s3] sm:$0xf]
  %v223 = vld [vmem:[%s3 + $0x4] sm:$0xf]
  %v224 = vld [vmem:[%s3 + $0x8] sm:$0xf]
  %v225 = vld [vmem:[%s3 + $0xc] sm:$0xf]
  %v226 = vld [vmem:[%s3 + $0x10] sm:$0xf]
  %v227 = vld [vmem:[%s3 + $0x14] sm:$0xf]
  %v228 = vld [vmem:[%s3 + $0x18] sm:$0xf]
  %v229 = vld [vmem:[%s3 + $0x1c] sm:$0xf]
  %v230 = vld [vmem:[%s3 + $0x20] sm:$0xf]
  %v231 = vld [vmem:[%s3 + $0x24] sm:$0xf]
  %v232 = vld [vmem:[%s3 + $0x28] sm:$0xf]
  %v233 = vld [vmem:[%s3 + $0x2c] sm:$0xf]
  %v234 = vld [vmem:[%s3 + $0x30] sm:$0xf]
  %v235 = vld [vmem:[%s3 + $0x34] sm:$0xf]
  %v236 = vld [vmem:[%s3 + $0x38] sm:$0xf]
  %v237 = vld [vmem:[%s3 + $0x3c] sm:$0xf]
  %v238 = vld [vmem:[%s4] sm:$0x1]
  %v240 = vlaneseq
  %v241 = vshrl.u32 %v240, 7
  %v242 = vsub.s32 0, %v241
  %v243 = vrot.slane %v238, %v242
  %v261 = vunpack.c.l.b16 %v222
  %v262 = vunpack.c.l.b16 %v223
  %v263 = vunpack.c.l.b16 %v224
  %v264 = vunpack.c.l.b16 %v225
  %v265 = vunpack.c.l.b16 %v226
  %v266 = vunpack.c.l.b16 %v227
  %v267 = vunpack.c.l.b16 %v228
  %v268 = vunpack.c.l.b16 %v229
  %v269 = vunpack.c.l.b16 %v230
  %v270 = vunpack.c.l.b16 %v231
  %v271 = vunpack.c.l.b16 %v232
  %v272 = vunpack.c.l.b16 %v233
  %v273 = vunpack.c.l.b16 %v234
  %v274 = vunpack.c.l.b16 %v235
  %v275 = vunpack.c.l.b16 %v236
  %v276 = vunpack.c.l.b16 %v237
  %v277 = vpack.c.b16 %v262, %v261
  %v278 = vpack.c.b16 %v264, %v263
  %v279 = vpack.c.b16 %v266, %v265
  %v280 = vpack.c.b16 %v268, %v267
  %v281 = vpack.c.b16 %v270, %v269
  %v282 = vpack.c.b16 %v272, %v271
  %v283 = vpack.c.b16 %v274, %v273
  %v284 = vpack.c.b16 %v276, %v275
  %293 = vmatprep.subr.bf16.mxu0 0
  %294 = vmatpush1.bf16.msra.mxu0 %v277
  %295 = vmatprep.subr.bf16.mxu0 0
  %296 = vmatpush1.bf16.msra.mxu0 %v278
  %297 = vmatprep.subr.bf16.mxu0 0
  %298 = vmatpush1.bf16.msra.mxu0 %v279
  %299 = vmatprep.subr.bf16.mxu0 0
  %300 = vmatpush1.bf16.msra.mxu0 %v280
  %301 = vmatprep.subr.bf16.mxu0 0
  %302 = vmatpush1.bf16.msra.mxu0 %v281
  %303 = vmatprep.subr.bf16.mxu0 0
  %304 = vmatpush1.bf16.msra.mxu0 %v282
  %305 = vmatprep.subr.bf16.mxu0 0
  %306 = vmatpush1.bf16.msra.mxu0 %v283
  %307 = vmatprep.subr.bf16.mxu0 0
  %308 = vmatpush1.bf16.msra.mxu0 %v284
  %309 = vmatprep.subr.bf16.mxu0 0
  %310 = vmatpush1.bf16.msra.mxu0 0
  %311 = vmatprep.subr.bf16.mxu0 0
  %312 = vmatpush1.bf16.msra.mxu0 0
  %313 = vmatprep.subr.bf16.mxu0 0
  %314 = vmatpush1.bf16.msra.mxu0 0
  %315 = vmatprep.subr.bf16.mxu0 0
  %316 = vmatpush1.bf16.msra.mxu0 0
  %317 = vmatprep.subr.bf16.mxu0 0
  %318 = vmatpush1.bf16.msra.mxu0 0
  %319 = vmatprep.subr.bf16.mxu0 0
  %320 = vmatpush1.bf16.msra.mxu0 0
  %321 = vmatprep.subr.bf16.mxu0 0
  %322 = vmatpush1.bf16.msra.mxu0 0
  %323 = vmatprep.subr.bf16.mxu0 0
  %324 = vmatpush1.bf16.msra.mxu0 0
  %325 = vmatprep.mubr.bf16.mxu0 0
  %326 = vmatmul.mubr.bf16.gmra.mrb[0].mxu0 %v221
  %v327 = vpop.f32.mrb[0].mxu0
  %v328 = vadd.f32 %v243, %v327
  %v329 = vpop.f32.mrb[0].mxu0
  %v330 = vpop.f32.mrb[0].mxu0
  %v331 = vadd.f32 %v243, %v330
  %v332 = vpop.f32.mrb[0].mxu0
  %333 = vdwg.mxu0
  %334 = vst [vmem:[%s5] sm:$0xff] %v328
  %335 = vst [vmem:[%s5 + $0x8] sm:$0xff] %v331
  // Predicated region
  $region22: #{speech_model_forward.29} parent=0 // pred_check
    _
  $region23: #{speech_model_forward.29} parent=0 // pred_check_branch
    %337 = sbr.rel (0) target = $region25
  $region24: #{speech_model_forward.29} parent=0 // pred_region
    _
  $region25: #{speech_model_forward.29} parent=0 // pred_fallthru
    _
  // Predicated region
  $region26: #{speech_model_forward.29} parent=0 // pred_check
    _
  $region27: #{speech_model_forward.29} parent=0 // pred_check_branch
    %339 = sbr.rel (0) target = $region29
  $region28: #{speech_model_forward.29} parent=0 // pred_region
    _
  $region29: #{speech_model_forward.29} parent=0 // pred_fallthru
    _

// kernel: speech_model_forward.27
$region0: #{speech_model_forward.27}
  #allocation0 [shape = 'u32[]', space=smem, size = 0x4, offset = 0x4, fixed_abs, tag = 'smem constant byte address 0x4 - core index']
  #allocation1 [shape = 'u32[144,128]{1,0:T(1,128)}', space=vmem, size = 0x12000, scoped, tag = 'internal scratch']
  %s0 = inlined_call_operand.vmem [shape: f32[16,256], index: 0, kind: input, shape index: {}]
  %s1 = inlined_call_operand.vmem [shape: f32[1,256], index: 1, kind: input, shape index: {}]
  %s2 = inlined_call_operand.vmem [shape: f32[1,256], index: 2, kind: input, shape index: {}]
  %s3 = inlined_call_operand.vmem [shape: bf16[256,768], index: 3, kind: input, shape index: {}]
  %s4 = inlined_call_operand.vmem [shape: f32[1,768], index: 4, kind: input, shape index: {}]
  %s5 = inlined_call_operand.vmem [shape: bf16[16,768], index: 5, kind: output, shape index: {}]
  %s6 = sld [smem:[#allocation0]]
  $region30: #{speech_model_forward.27} parent=0
    _
  %s8 = ssub.s32 1, %s6
  %s9 = scalar_select 0, %s8, %s6
  // Predicated region
  $region2: #{speech_model_forward.27} parent=0 // pred_check
    _
  $region3: #{speech_model_forward.27} parent=0 // pred_check_branch
    %11 = sbr.rel (0) target = $region5
  $region4: #{speech_model_forward.27} parent=0 // pred_region
    _
  $region5: #{speech_model_forward.27} parent=0 // pred_fallthru
    _
  // Predicated region
  $region6: #{speech_model_forward.27} parent=0 // pred_check
    _
  $region7: #{speech_model_forward.27} parent=0 // pred_check_branch
    %13 = sbr.rel (0) target = $region9
  $region8: #{speech_model_forward.27} parent=0 // pred_region
    _
  $region9: #{speech_model_forward.27} parent=0 // pred_fallthru
    _
  // Predicated region
  $region10: #{speech_model_forward.27} parent=0 // pred_check
    _
  $region11: #{speech_model_forward.27} parent=0 // pred_check_branch
    %15 = sbr.rel (0) target = $region13
  $region12: #{speech_model_forward.27} parent=0 // pred_region
    _
  $region13: #{speech_model_forward.27} parent=0 // pred_fallthru
    _
  // Predicated region
  $region14: #{speech_model_forward.27} parent=0 // pred_check
    _
  $region15: #{speech_model_forward.27} parent=0 // pred_check_branch
    %17 = sbr.rel (0) target = $region17
  $region16: #{speech_model_forward.27} parent=0 // pred_region
    _
  $region17: #{speech_model_forward.27} parent=0 // pred_fallthru
    _
  // Predicated region
  $region18: #{speech_model_forward.27} parent=0 // pred_check
    _
  $region19: #{speech_model_forward.27} parent=0 // pred_check_branch
    %19 = sbr.rel (0) target = $region21
  $region20: #{speech_model_forward.27} parent=0 // pred_region
    _
  $region21: #{speech_model_forward.27} parent=0 // pred_fallthru
    _
  %v20 = vld [vmem:[%s0] sm:$0xff]
  %v21 = vld [vmem:[%s0 + $0x8] sm:$0xff]
  %v22 = vld [vmem:[%s0 + $0x10] sm:$0xff]
  %v23 = vld [vmem:[%s0 + $0x18] sm:$0xff]
  %v24 = vadd.f32 %v20, %v21
  %25 = vadd.xlane.f32.xlu0 %v24
  %v26 = vpop.xlane.xlu0 %25
  %v27 = vadd.f32 %v22, %v23
  %28 = vadd.xlane.f32.xlu0 %v27
  %v29 = vpop.xlane.xlu0 %28
  %v30 = vrcp.pop 256.0
  %v31 = vmul.f32 %v26, %v30
  %v32 = vmul.f32 %v29, %v30
  %v33 = vsub.f32 %v20, %v31
  %v34 = vsub.f32 %v21, %v31
  %v35 = vsub.f32 %v22, %v32
  %v36 = vsub.f32 %v23, %v32
  %v37 = vmul.f32 %v33, %v33
  %v38 = vmul.f32 %v34, %v34
  %v39 = vmul.f32 %v35, %v35
  %v40 = vmul.f32 %v36, %v36
  %v41 = vadd.f32 %v37, %v38
  %42 = vadd.xlane.f32.xlu0 %v41
  %v43 = vpop.xlane.xlu0 %42
  %v44 = vadd.f32 %v39, %v40
  %45 = vadd.xlane.f32.xlu0 %v44
  %v46 = vpop.xlane.xlu0 %45
  %v47 = vmul.f32 %v43, %v30
  %v48 = vmul.f32 %v46, %v30
  %v49 = vadd.f32 %v47, 1e-05
  %v50 = vadd.f32 %v48, 1e-05
  %v51 = vrsqrt.pop %v49
  %v52 = vrsqrt.pop %v50
  %v53 = vmul.f32 %v33, %v51
  %v54 = vmul.f32 %v34, %v51
  %v55 = vmul.f32 %v35, %v52
  %v56 = vmul.f32 %v36, %v52
  %v57 = vld [vmem:[%s1] sm:$0x3]
  %v59 = vlaneseq
  %v60 = vshrl.u32 %v59, 7
  %v61 = vsub.s32 0, %v60
  %v62 = vrot.slane %v57, %v61
  %v63 = vlaneseq
  %v64 = vshrl.u32 %v63, 7
  %v65 = vsub.s32 1, %v64
  %v66 = vrot.slane %v57, %v65
  %v69 = vmul.f32 %v53, %v62
  %v70 = vmul.f32 %v54, %v66
  %v71 = vmul.f32 %v55, %v62
  %v72 = vmul.f32 %v56, %v66
  %v73 = vld [vmem:[%s2] sm:$0x3]
  %v75 = vlaneseq
  %v76 = vshrl.u32 %v75, 7
  %v77 = vsub.s32 0, %v76
  %v78 = vrot.slane %v73, %v77
  %v79 = vlaneseq
  %v80 = vshrl.u32 %v79, 7
  %v81 = vsub.s32 1, %v80
  %v82 = vrot.slane %v73, %v81
  %v85 = vadd.f32 %v69, %v78
  %v86 = vadd.f32 %v70, %v82
  %v87 = vadd.f32 %v71, %v78
  %v88 = vadd.f32 %v72, %v82
  %v89 = vmul.f32 %v85, 0.5
  %v90 = vmul.f32 %v86, 0.5
  %v91 = vmul.f32 %v87, 0.5
  %v92 = vmul.f32 %v88, 0.5
  %v93 = vmul.f32 %v85, 0.044715
  %v94 = vmul.f32 %v86, 0.044715
  %v95 = vmul.f32 %v87, 0.044715
  %v96 = vmul.f32 %v88, 0.044715
  %v97 = vmul.f32 %v93, %v85
  %v98 = vmul.f32 %v94, %v86
  %v99 = vmul.f32 %v95, %v87
  %v100 = vmul.f32 %v96, %v88
  %v101 = vmul.f32 %v97, %v85
  %v102 = vmul.f32 %v98, %v86
  %v103 = vmul.f32 %v99, %v87
  %v104 = vmul.f32 %v100, %v88
  %v105 = vadd.f32 %v85, %v101
  %v106 = vadd.f32 %v86, %v102
  %v107 = vadd.f32 %v87, %v103
  %v108 = vadd.f32 %v88, %v104
  %v109 = vmul.f32 %v105, 0.7978846
  %v110 = vmul.f32 %v106, 0.7978846
  %v111 = vmul.f32 %v107, 0.7978846
  %v112 = vmul.f32 %v108, 0.7978846
  %v113 = vtanh.pop %v109
  %v114 = vtanh.pop %v110
  %v115 = vtanh.pop %v111
  %v116 = vtanh.pop %v112
  %v117 = vadd.f32 %v113, 1.0
  %v118 = vadd.f32 %v114, 1.0
  %v119 = vadd.f32 %v115, 1.0
  %v120 = vadd.f32 %v116, 1.0
  %v121 = vmul.f32 %v89, %v117
  %v122 = vmul.f32 %v90, %v118
  %v123 = vmul.f32 %v91, %v119
  %v124 = vmul.f32 %v92, %v120
  %v125 = vpack.c.bf16 %v123, %v121
  %v126 = vpack.c.bf16 %v124, %v122
  %v127 = vld [vmem:[%s3] sm:$0xff]
  %v128 = vld [vmem:[%s3 + $0x8] sm:$0xff]
  %v129 = vld [vmem:[%s3 + $0x10] sm:$0xff]
  %v130 = vld [vmem:[%s3 + $0x18] sm:$0xff]
  %v131 = vld [vmem:[%s3 + $0x20] sm:$0xff]
  %v132 = vld [vmem:[%s3 + $0x28] sm:$0xff]
  %v133 = vld [vmem:[%s3 + $0x30] sm:$0xff]
  %v134 = vld [vmem:[%s3 + $0x38] sm:$0xff]
  %v135 = vld [vmem:[%s3 + $0x40] sm:$0xff]
  %v136 = vld [vmem:[%s3 + $0x48] sm:$0xff]
  %v137 = vld [vmem:[%s3 + $0x50] sm:$0xff]
  %v138 = vld [vmem:[%s3 + $0x58] sm:$0xff]
  %v139 = vld [vmem:[%s3 + $0x60] sm:$0xff]
  %v140 = vld [vmem:[%s3 + $0x68] sm:$0xff]
  %v141 = vld [vmem:[%s3 + $0x70] sm:$0xff]
  %v142 = vld [vmem:[%s3 + $0x78] sm:$0xff]
  %v143 = vld [vmem:[%s3 + $0x80] sm:$0xff]
  %v144 = vld [vmem:[%s3 + $0x88] sm:$0xff]
  %v145 = vld [vmem:[%s3 + $0x90] sm:$0xff]
  %v146 = vld [vmem:[%s3 + $0x98] sm:$0xff]
  %v147 = vld [vmem:[%s3 + $0xa0] sm:$0xff]
  %v148 = vld [vmem:[%s3 + $0xa8] sm:$0xff]
  %v149 = vld [vmem:[%s3 + $0xb0] sm:$0xff]
  %v150 = vld [vmem:[%s3 + $0xb8] sm:$0xff]
  %v151 = vld [vmem:[%s3 + $0xc0] sm:$0xff]
  %v152 = vld [vmem:[%s3 + $0xc8] sm:$0xff]
  %v153 = vld [vmem:[%s3 + $0xd0] sm:$0xff]
  %v154 = vld [vmem:[%s3 + $0xd8] sm:$0xff]
  %v155 = vld [vmem:[%s3 + $0xe0] sm:$0xff]
  %v156 = vld [vmem:[%s3 + $0xe8] sm:$0xff]
  %v157 = vld [vmem:[%s3 + $0xf0] sm:$0xff]
  %v158 = vld [vmem:[%s3 + $0xf8] sm:$0xff]
  %v159 = vld [vmem:[%s3 + $0x100] sm:$0xff]
  %v160 = vld [vmem:[%s3 + $0x108] sm:$0xff]
  %v161 = vld [vmem:[%s3 + $0x110] sm:$0xff]
  %v162 = vld [vmem:[%s3 + $0x118] sm:$0xff]
  %v163 = vld [vmem:[%s3 + $0x120] sm:$0xff]
  %v164 = vld [vmem:[%s3 + $0x128] sm:$0xff]
  %v165 = vld [vmem:[%s3 + $0x130] sm:$0xff]
  %v166 = vld [vmem:[%s3 + $0x138] sm:$0xff]
  %v167 = vld [vmem:[%s3 + $0x140] sm:$0xff]
  %v168 = vld [vmem:[%s3 + $0x148] sm:$0xff]
  %v169 = vld [vmem:[%s3 + $0x150] sm:$0xff]
  %v170 = vld [vmem:[%s3 + $0x158] sm:$0xff]
  %v171 = vld [vmem:[%s3 + $0x160] sm:$0xff]
  %v172 = vld [vmem:[%s3 + $0x168] sm:$0xff]
  %v173 = vld [vmem:[%s3 + $0x170] sm:$0xff]
  %v174 = vld [vmem:[%s3 + $0x178] sm:$0xff]
  %v175 = vld [vmem:[%s3 + $0x180] sm:$0xff]
  %v176 = vld [vmem:[%s3 + $0x188] sm:$0xff]
  %v177 = vld [vmem:[%s3 + $0x190] sm:$0xff]
  %v178 = vld [vmem:[%s3 + $0x198] sm:$0xff]
  %v179 = vld [vmem:[%s3 + $0x1a0] sm:$0xff]
  %v180 = vld [vmem:[%s3 + $0x1a8] sm:$0xff]
  %v181 = vld [vmem:[%s3 + $0x1b0] sm:$0xff]
  %v182 = vld [vmem:[%s3 + $0x1b8] sm:$0xff]
  %v183 = vld [vmem:[%s3 + $0x1c0] sm:$0xff]
  %v184 = vld [vmem:[%s3 + $0x1c8] sm:$0xff]
  %v185 = vld [vmem:[%s3 + $0x1d0] sm:$0xff]
  %v186 = vld [vmem:[%s3 + $0x1d8] sm:$0xff]
  %v187 = vld [vmem:[%s3 + $0x1e0] sm:$0xff]
  %v188 = vld [vmem:[%s3 + $0x1e8] sm:$0xff]
  %v189 = vld [vmem:[%s3 + $0x1f0] sm:$0xff]
  %v190 = vld [vmem:[%s3 + $0x1f8] sm:$0xff]
  %v191 = vld [vmem:[%s3 + $0x200] sm:$0xff]
  %v192 = vld [vmem:[%s3 + $0x208] sm:$0xff]
  %v193 = vld [vmem:[%s3 + $0x210] sm:$0xff]
  %v194 = vld [vmem:[%s3 + $0x218] sm:$0xff]
  %v195 = vld [vmem:[%s3 + $0x220] sm:$0xff]
  %v196 = vld [vmem:[%s3 + $0x228] sm:$0xff]
  %v197 = vld [vmem:[%s3 + $0x230] sm:$0xff]
  %v198 = vld [vmem:[%s3 + $0x238] sm:$0xff]
  %v199 = vld [vmem:[%s3 + $0x240] sm:$0xff]
  %v200 = vld [vmem:[%s3 + $0x248] sm:$0xff]
  %v201 = vld [vmem:[%s3 + $0x250] sm:$0xff]
  %v202 = vld [vmem:[%s3 + $0x258] sm:$0xff]
  %v203 = vld [vmem:[%s3 + $0x260] sm:$0xff]
  %v204 = vld [vmem:[%s3 + $0x268] sm:$0xff]
  %v205 = vld [vmem:[%s3 + $0x270] sm:$0xff]
  %v206 = vld [vmem:[%s3 + $0x278] sm:$0xff]
  %v207 = vld [vmem:[%s3 + $0x280] sm:$0xff]
  %v208 = vld [vmem:[%s3 + $0x288] sm:$0xff]
  %v209 = vld [vmem:[%s3 + $0x290] sm:$0xff]
  %v210 = vld [vmem:[%s3 + $0x298] sm:$0xff]
  %v211 = vld [vmem:[%s3 + $0x2a0] sm:$0xff]
  %v212 = vld [vmem:[%s3 + $0x2a8] sm:$0xff]
  %v213 = vld [vmem:[%s3 + $0x2b0] sm:$0xff]
  %v214 = vld [vmem:[%s3 + $0x2b8] sm:$0xff]
  %v215 = vld [vmem:[%s3 + $0x2c0] sm:$0xff]
  %v216 = vld [vmem:[%s3 + $0x2c8] sm:$0xff]
  %v217 = vld [vmem:[%s3 + $0x2d0] sm:$0xff]
  %v218 = vld [vmem:[%s3 + $0x2d8] sm:$0xff]
  %v219 = vld [vmem:[%s3 + $0x2e0] sm:$0xff]
  %v220 = vld [vmem:[%s3 + $0x2e8] sm:$0xff]
  %v221 = vld [vmem:[%s3 + $0x2f0] sm:$0xff]
  %v222 = vld [vmem:[%s3 + $0x2f8] sm:$0xff]
  %v223 = vld [vmem:[%s4] sm:$0x3f]
  %v225 = vlaneseq
  %v226 = vshrl.u32 %v225, 7
  %v227 = vsub.s32 0, %v226
  %v228 = vrot.slane %v223, %v227
  %v229 = vlaneseq
  %v230 = vshrl.u32 %v229, 7
  %v231 = vsub.s32 1, %v230
  %v232 = vrot.slane %v223, %v231
  %v233 = vlaneseq
  %v234 = vshrl.u32 %v233, 7
  %v235 = vsub.s32 2, %v234
  %v236 = vrot.slane %v223, %v235
  %v237 = vlaneseq
  %v238 = vshrl.u32 %v237, 7
  %v239 = vsub.s32 3, %v238
  %v240 = vrot.slane %v223, %v239
  %v241 = vlaneseq
  %v242 = vshrl.u32 %v241, 7
  %v243 = vsub.s32 4, %v242
  %v244 = vrot.slane %v223, %v243
  %v245 = vlaneseq
  %v246 = vshrl.u32 %v245, 7
  %v247 = vsub.s32 5, %v246
  %v248 = vrot.slane %v223, %v247
  %v351 = vunpack.c.l.b16 %v127
  %v352 = vunpack.c.h.b16 %v127
  %v353 = vunpack.c.l.b16 %v128
  %v354 = vunpack.c.h.b16 %v128
  %v355 = vunpack.c.l.b16 %v129
  %v356 = vunpack.c.h.b16 %v129
  %v357 = vunpack.c.l.b16 %v130
  %v358 = vunpack.c.h.b16 %v130
  %v359 = vunpack.c.l.b16 %v131
  %v360 = vunpack.c.h.b16 %v131
  %v361 = vunpack.c.l.b16 %v132
  %v362 = vunpack.c.h.b16 %v132
  %v363 = vunpack.c.l.b16 %v133
  %v364 = vunpack.c.h.b16 %v133
  %v365 = vunpack.c.l.b16 %v134
  %v366 = vunpack.c.h.b16 %v134
  %v367 = vunpack.c.l.b16 %v135
  %v368 = vunpack.c.h.b16 %v135
  %v369 = vunpack.c.l.b16 %v136
  %v370 = vunpack.c.h.b16 %v136
  %v371 = vunpack.c.l.b16 %v137
  %v372 = vunpack.c.h.b16 %v137
  %v373 = vunpack.c.l.b16 %v138
  %v374 = vunpack.c.h.b16 %v138
  %v375 = vunpack.c.l.b16 %v139
  %v376 = vunpack.c.h.b16 %v139
  %v377 = vunpack.c.l.b16 %v140
  %v378 = vunpack.c.h.b16 %v140
  %v379 = vunpack.c.l.b16 %v141
  %v380 = vunpack.c.h.b16 %v141
  %v381 = vunpack.c.l.b16 %v142
  %v382 = vunpack.c.h.b16 %v142
  %v383 = vunpack.c.l.b16 %v143
  %v384 = vunpack.c.h.b16 %v143
  %v385 = vunpack.c.l.b16 %v144
  %v386 = vunpack.c.h.b16 %v144
  %v387 = vunpack.c.l.b16 %v145
  %v388 = vunpack.c.h.b16 %v145
  %v389 = vunpack.c.l.b16 %v146
  %v390 = vunpack.c.h.b16 %v146
  %v391 = vunpack.c.l.b16 %v147
  %v392 = vunpack.c.h.b16 %v147
  %v393 = vunpack.c.l.b16 %v148
  %v394 = vunpack.c.h.b16 %v148
  %v395 = vunpack.c.l.b16 %v149
  %v396 = vunpack.c.h.b16 %v149
  %v397 = vunpack.c.l.b16 %v150
  %v398 = vunpack.c.h.b16 %v150
  %v399 = vunpack.c.l.b16 %v151
  %v400 = vunpack.c.h.b16 %v151
  %v401 = vunpack.c.l.b16 %v152
  %v402 = vunpack.c.h.b16 %v152
  %v403 = vunpack.c.l.b16 %v153
  %v404 = vunpack.c.h.b16 %v153
  %v405 = vunpack.c.l.b16 %v154
  %v406 = vunpack.c.h.b16 %v154
  %v407 = vunpack.c.l.b16 %v155
  %v408 = vunpack.c.h.b16 %v155
  %v409 = vunpack.c.l.b16 %v156
  %v410 = vunpack.c.h.b16 %v156
  %v411 = vunpack.c.l.b16 %v157
  %v412 = vunpack.c.h.b16 %v157
  %v413 = vunpack.c.l.b16 %v158
  %v414 = vunpack.c.h.b16 %v158
  %v415 = vunpack.c.l.b16 %v159
  %v416 = vunpack.c.h.b16 %v159
  %v417 = vunpack.c.l.b16 %v160
  %v418 = vunpack.c.h.b16 %v160
  %v419 = vunpack.c.l.b16 %v161
  %v420 = vunpack.c.h.b16 %v161
  %v421 = vunpack.c.l.b16 %v162
  %v422 = vunpack.c.h.b16 %v162
  %v423 = vunpack.c.l.b16 %v163
  %v424 = vunpack.c.h.b16 %v163
  %v425 = vunpack.c.l.b16 %v164
  %v426 = vunpack.c.h.b16 %v164
  %v427 = vunpack.c.l.b16 %v165
  %v428 = vunpack.c.h.b16 %v165
  %v429 = vunpack.c.l.b16 %v166
  %v430 = vunpack.c.h.b16 %v166
  %v431 = vunpack.c.l.b16 %v167
  %v432 = vunpack.c.h.b16 %v167
  %v433 = vunpack.c.l.b16 %v168
  %v434 = vunpack.c.h.b16 %v168
  %v435 = vunpack.c.l.b16 %v169
  %v436 = vunpack.c.h.b16 %v169
  %v437 = vunpack.c.l.b16 %v170
  %v438 = vunpack.c.h.b16 %v170
  %v439 = vunpack.c.l.b16 %v171
  %v440 = vunpack.c.h.b16 %v171
  %v441 = vunpack.c.l.b16 %v172
  %v442 = vunpack.c.h.b16 %v172
  %v443 = vunpack.c.l.b16 %v173
  %v444 = vunpack.c.h.b16 %v173
  %v445 = vunpack.c.l.b16 %v174
  %v446 = vunpack.c.h.b16 %v174
  %v447 = vunpack.c.l.b16 %v175
  %v448 = vunpack.c.h.b16 %v175
  %v449 = vunpack.c.l.b16 %v176
  %v450 = vunpack.c.h.b16 %v176
  %v451 = vunpack.c.l.b16 %v177
  %v452 = vunpack.c.h.b16 %v177
  %v453 = vunpack.c.l.b16 %v178
  %v454 = vunpack.c.h.b16 %v178
  %v455 = vunpack.c.l.b16 %v179
  %v456 = vunpack.c.h.b16 %v179
  %v457 = vunpack.c.l.b16 %v180
  %v458 = vunpack.c.h.b16 %v180
  %v459 = vunpack.c.l.b16 %v181
  %v460 = vunpack.c.h.b16 %v181
  %v461 = vunpack.c.l.b16 %v182
  %v462 = vunpack.c.h.b16 %v182
  %v463 = vunpack.c.l.b16 %v183
  %v464 = vunpack.c.h.b16 %v183
  %v465 = vunpack.c.l.b16 %v184
  %v466 = vunpack.c.h.b16 %v184
  %v467 = vunpack.c.l.b16 %v185
  %v468 = vunpack.c.h.b16 %v185
  %v469 = vunpack.c.l.b16 %v186
  %v470 = vunpack.c.h.b16 %v186
  %v471 = vunpack.c.l.b16 %v187
  %v472 = vunpack.c.h.b16 %v187
  %v473 = vunpack.c.l.b16 %v188
  %v474 = vunpack.c.h.b16 %v188
  %v475 = vunpack.c.l.b16 %v189
  %v476 = vunpack.c.h.b16 %v189
  %v477 = vunpack.c.l.b16 %v190
  %v478 = vunpack.c.h.b16 %v190
  %v479 = vunpack.c.l.b16 %v191
  %v480 = vunpack.c.h.b16 %v191
  %v481 = vunpack.c.l.b16 %v192
  %v482 = vunpack.c.h.b16 %v192
  %v483 = vunpack.c.l.b16 %v193
  %v484 = vunpack.c.h.b16 %v193
  %v485 = vunpack.c.l.b16 %v194
  %v486 = vunpack.c.h.b16 %v194
  %v487 = vunpack.c.l.b16 %v195
  %v488 = vunpack.c.h.b16 %v195
  %v489 = vunpack.c.l.b16 %v196
  %v490 = vunpack.c.h.b16 %v196
  %v491 = vunpack.c.l.b16 %v197
  %v492 = vunpack.c.h.b16 %v197
  %v493 = vunpack.c.l.b16 %v198
  %v494 = vunpack.c.h.b16 %v198
  %v495 = vunpack.c.l.b16 %v199
  %v496 = vunpack.c.h.b16 %v199
  %v497 = vunpack.c.l.b16 %v200
  %v498 = vunpack.c.h.b16 %v200
  %v499 = vunpack.c.l.b16 %v201
  %v500 = vunpack.c.h.b16 %v201
  %v501 = vunpack.c.l.b16 %v202
  %v502 = vunpack.c.h.b16 %v202
  %v503 = vunpack.c.l.b16 %v203
  %v504 = vunpack.c.h.b16 %v203
  %v505 = vunpack.c.l.b16 %v204
  %v506 = vunpack.c.h.b16 %v204
  %v507 = vunpack.c.l.b16 %v205
  %v508 = vunpack.c.h.b16 %v205
  %v509 = vunpack.c.l.b16 %v206
  %v510 = vunpack.c.h.b16 %v206
  %v511 = vunpack.c.l.b16 %v207
  %v512 = vunpack.c.h.b16 %v207
  %v513 = vunpack.c.l.b16 %v208
  %v514 = vunpack.c.h.b16 %v208
  %v515 = vunpack.c.l.b16 %v209
  %v516 = vunpack.c.h.b16 %v209
  %v517 = vunpack.c.l.b16 %v210
  %v518 = vunpack.c.h.b16 %v210
  %v519 = vunpack.c.l.b16 %v211
  %v520 = vunpack.c.h.b16 %v211
  %v521 = vunpack.c.l.b16 %v212
  %v522 = vunpack.c.h.b16 %v212
  %v523 = vunpack.c.l.b16 %v213
  %v524 = vunpack.c.h.b16 %v213
  %v525 = vunpack.c.l.b16 %v214
  %v526 = vunpack.c.h.b16 %v214
  %v527 = vunpack.c.l.b16 %v215
  %v528 = vunpack.c.h.b16 %v215
  %v529 = vunpack.c.l.b16 %v216
  %v530 = vunpack.c.h.b16 %v216
  %v531 = vunpack.c.l.b16 %v217
  %v532 = vunpack.c.h.b16 %v217
  %v533 = vunpack.c.l.b16 %v218
  %v534 = vunpack.c.h.b16 %v218
  %v535 = vunpack.c.l.b16 %v219
  %v536 = vunpack.c.h.b16 %v219
  %v537 = vunpack.c.l.b16 %v220
  %v538 = vunpack.c.h.b16 %v220
  %v539 = vunpack.c.l.b16 %v221
  %v540 = vunpack.c.h.b16 %v221
  %v541 = vunpack.c.l.b16 %v222
  %v542 = vunpack.c.h.b16 %v222
  %v543 = vpack.c.b16 %v357, %v351
  %v544 = vpack.c.b16 %v358, %v352
  %v545 = vpack.c.b16 %v359, %v353
  %v546 = vpack.c.b16 %v360, %v354
  %v547 = vpack.c.b16 %v361, %v355
  %v548 = vpack.c.b16 %v362, %v356
  %v549 = vpack.c.b16 %v369, %v363
  %v550 = vpack.c.b16 %v370, %v364
  %v551 = vpack.c.b16 %v371, %v365
  %v552 = vpack.c.b16 %v372, %v366
  %v553 = vpack.c.b16 %v373, %v367
  %v554 = vpack.c.b16 %v374, %v368
  %v555 = vpack.c.b16 %v381, %v375
  %v556 = vpack.c.b16 %v382, %v376
  %v557 = vpack.c.b16 %v383, %v377
  %v558 = vpack.c.b16 %v384, %v378
  %v559 = vpack.c.b16 %v385, %v379
  %v560 = vpack.c.b16 %v386, %v380
  %v561 = vpack.c.b16 %v393, %v387
  %v562 = vpack.c.b16 %v394, %v388
  %v563 = vpack.c.b16 %v395, %v389
  %v564 = vpack.c.b16 %v396, %v390
  %v565 = vpack.c.b16 %v397, %v391
  %v566 = vpack.c.b16 %v398, %v392
  %v567 = vpack.c.b16 %v405, %v399
  %v568 = vpack.c.b16 %v406, %v400
  %v569 = vpack.c.b16 %v407, %v401
  %v570 = vpack.c.b16 %v408, %v402
  %v571 = vpack.c.b16 %v409, %v403
  %v572 = vpack.c.b16 %v410, %v404
  %v573 = vpack.c.b16 %v417, %v411
  %v574 = vpack.c.b16 %v418, %v412
  %v575 = vpack.c.b16 %v419, %v413
  %v576 = vpack.c.b16 %v420, %v414
  %v577 = vpack.c.b16 %v421, %v415
  %v578 = vpack.c.b16 %v422, %v416
  %v579 = vpack.c.b16 %v429, %v423
  %v580 = vpack.c.b16 %v430, %v424
  %v581 = vpack.c.b16 %v431, %v425
  %v582 = vpack.c.b16 %v432, %v426
  %v583 = vpack.c.b16 %v433, %v427
  %v584 = vpack.c.b16 %v434, %v428
  %v585 = vpack.c.b16 %v441, %v435
  %v586 = vpack.c.b16 %v442, %v436
  %v587 = vpack.c.b16 %v443, %v437
  %v588 = vpack.c.b16 %v444, %v438
  %v589 = vpack.c.b16 %v445, %v439
  %v590 = vpack.c.b16 %v446, %v440
  %v591 = vpack.c.b16 %v453, %v447
  %v592 = vpack.c.b16 %v454, %v448
  %v593 = vpack.c.b16 %v455, %v449
  %v594 = vpack.c.b16 %v456, %v450
  %v595 = vpack.c.b16 %v457, %v451
  %v596 = vpack.c.b16 %v458, %v452
  %v597 = vpack.c.b16 %v465, %v459
  %v598 = vpack.c.b16 %v466, %v460
  %v599 = vpack.c.b16 %v467, %v461
  %v600 = vpack.c.b16 %v468, %v462
  %v601 = vpack.c.b16 %v469, %v463
  %v602 = vpack.c.b16 %v470, %v464
  %v603 = vpack.c.b16 %v477, %v471
  %v604 = vpack.c.b16 %v478, %v472
  %v605 = vpack.c.b16 %v479, %v473
  %v606 = vpack.c.b16 %v480, %v474
  %v607 = vpack.c.b16 %v481, %v475
  %v608 = vpack.c.b16 %v482, %v476
  %v609 = vpack.c.b16 %v489, %v483
  %v610 = vpack.c.b16 %v490, %v484
  %v611 = vpack.c.b16 %v491, %v485
  %v612 = vpack.c.b16 %v492, %v486
  %v613 = vpack.c.b16 %v493, %v487
  %v614 = vpack.c.b16 %v494, %v488
  %v615 = vpack.c.b16 %v501, %v495
  %v616 = vpack.c.b16 %v502, %v496
  %v617 = vpack.c.b16 %v503, %v497
  %v618 = vpack.c.b16 %v504, %v498
  %v619 = vpack.c.b16 %v505, %v499
  %v620 = vpack.c.b16 %v506, %v500
  %v621 = vpack.c.b16 %v513, %v507
  %v622 = vpack.c.b16 %v514, %v508
  %v623 = vpack.c.b16 %v515, %v509
  %v624 = vpack.c.b16 %v516, %v510
  %v625 = vpack.c.b16 %v517, %v511
  %v626 = vpack.c.b16 %v518, %v512
  %v627 = vpack.c.b16 %v525, %v519
  %v628 = vpack.c.b16 %v526, %v520
  %v629 = vpack.c.b16 %v527, %v521
  %v630 = vpack.c.b16 %v528, %v522
  %v631 = vpack.c.b16 %v529, %v523
  %v632 = vpack.c.b16 %v530, %v524
  %v633 = vpack.c.b16 %v537, %v531
  %v634 = vpack.c.b16 %v538, %v532
  %v635 = vpack.c.b16 %v539, %v533
  %v636 = vpack.c.b16 %v540, %v534
  %v637 = vpack.c.b16 %v541, %v535
  %v638 = vpack.c.b16 %v542, %v536
  %735 = vmatprep.subr.bf16.mxu0 %v544
  %736 = vmatpush1.bf16.msra.mxu0 %v543
  %737 = vmatprep.subr.bf16.mxu0 %v550
  %738 = vmatpush1.bf16.msra.mxu0 %v549
  %739 = vmatprep.subr.bf16.mxu0 %v556
  %740 = vmatpush1.bf16.msra.mxu0 %v555
  %741 = vmatprep.subr.bf16.mxu0 %v562
  %742 = vmatpush1.bf16.msra.mxu0 %v561
  %743 = vmatprep.subr.bf16.mxu0 %v568
  %744 = vmatpush1.bf16.msra.mxu0 %v567
  %745 = vmatprep.subr.bf16.mxu0 %v574
  %746 = vmatpush1.bf16.msra.mxu0 %v573
  %747 = vmatprep.subr.bf16.mxu0 %v580
  %748 = vmatpush1.bf16.msra.mxu0 %v579
  %749 = vmatprep.subr.bf16.mxu0 %v586
  %750 = vmatpush1.bf16.msra.mxu0 %v585
  %751 = vmatprep.subr.bf16.mxu0 %v592
  %752 = vmatpush1.bf16.msra.mxu0 %v591
  %753 = vmatprep.subr.bf16.mxu0 %v598
  %754 = vmatpush1.bf16.msra.mxu0 %v597
  %755 = vmatprep.subr.bf16.mxu0 %v604
  %756 = vmatpush1.bf16.msra.mxu0 %v603
  %757 = vmatprep.subr.bf16.mxu0 %v610
  %758 = vmatpush1.bf16.msra.mxu0 %v609
  %759 = vmatprep.subr.bf16.mxu0 %v616
  %760 = vmatpush1.bf16.msra.mxu0 %v615
  %761 = vmatprep.subr.bf16.mxu0 %v622
  %762 = vmatpush1.bf16.msra.mxu0 %v621
  %763 = vmatprep.subr.bf16.mxu0 %v628
  %764 = vmatpush1.bf16.msra.mxu0 %v627
  %765 = vmatprep.subr.bf16.mxu0 %v634
  %766 = vmatpush1.bf16.msra.mxu0 %v633
  %767 = vmatprep.mubr.bf16.mxu0 %v126
  %768 = vmatmul.mubr.bf16.gmra.mrb[0].mxu0 %v125
  %v769 = vpop.f32.mrb[0].mxu0
  %v770 = vadd.f32 %v228, %v769
  %v771 = vpop.f32.mrb[0].mxu0
  %v772 = vadd.f32 %v232, %v771
  %v773 = vpop.f32.mrb[0].mxu0
  %v774 = vadd.f32 %v228, %v773
  %v775 = vpop.f32.mrb[0].mxu0
  %v776 = vadd.f32 %v232, %v775
  %777 = vdwg.mxu0
  %778 = vmatprep.subr.bf16.mxu0 %v546
  %779 = vmatpush1.bf16.msra.mxu0 %v545
  %780 = vmatprep.subr.bf16.mxu0 %v552
  %781 = vmatpush1.bf16.msra.mxu0 %v551
  %782 = vmatprep.subr.bf16.mxu0 %v558
  %783 = vmatpush1.bf16.msra.mxu0 %v557
  %784 = vmatprep.subr.bf16.mxu0 %v564
  %785 = vmatpush1.bf16.msra.mxu0 %v563
  %786 = vmatprep.subr.bf16.mxu0 %v570
  %787 = vmatpush1.bf16.msra.mxu0 %v569
  %788 = vmatprep.subr.bf16.mxu0 %v576
  %789 = vmatpush1.bf16.msra.mxu0 %v575
  %790 = vmatprep.subr.bf16.mxu0 %v582
  %791 = vmatpush1.bf16.msra.mxu0 %v581
  %792 = vmatprep.subr.bf16.mxu0 %v588
  %793 = vmatpush1.bf16.msra.mxu0 %v587
  %794 = vmatprep.subr.bf16.mxu0 %v594
  %795 = vmatpush1.bf16.msra.mxu0 %v593
  %796 = vmatprep.subr.bf16.mxu0 %v600
  %797 = vmatpush1.bf16.msra.mxu0 %v599
  %798 = vmatprep.subr.bf16.mxu0 %v606
  %799 = vmatpush1.bf16.msra.mxu0 %v605
  %800 = vmatprep.subr.bf16.mxu0 %v612
  %801 = vmatpush1.bf16.msra.mxu0 %v611
  %802 = vmatprep.subr.bf16.mxu0 %v618
  %803 = vmatpush1.bf16.msra.mxu0 %v617
  %804 = vmatprep.subr.bf16.mxu0 %v624
  %805 = vmatpush1.bf16.msra.mxu0 %v623
  %806 = vmatprep.subr.bf16.mxu0 %v630
  %807 = vmatpush1.bf16.msra.mxu0 %v629
  %808 = vmatprep.subr.bf16.mxu0 %v636
  %809 = vmatpush1.bf16.msra.mxu0 %v635
  %810 = vmatprep.mubr.bf16.mxu0 %v126
  %811 = vmatmul.mubr.bf16.gmra.mrb[0].mxu0 %v125
  %v812 = vpop.f32.mrb[0].mxu0
  %v813 = vadd.f32 %v236, %v812
  %v814 = vpop.f32.mrb[0].mxu0
  %v815 = vadd.f32 %v240, %v814
  %v816 = vpop.f32.mrb[0].mxu0
  %v817 = vadd.f32 %v236, %v816
  %v818 = vpop.f32.mrb[0].mxu0
  %v819 = vadd.f32 %v240, %v818
  %820 = vdwg.mxu0
  %821 = vmatprep.subr.bf16.mxu0 %v548
  %822 = vmatpush1.bf16.msra.mxu0 %v547
  %823 = vmatprep.subr.bf16.mxu0 %v554
  %824 = vmatpush1.bf16.msra.mxu0 %v553
  %825 = vmatprep.subr.bf16.mxu0 %v560
  %826 = vmatpush1.bf16.msra.mxu0 %v559
  %827 = vmatprep.subr.bf16.mxu0 %v566
  %828 = vmatpush1.bf16.msra.mxu0 %v565
  %829 = vmatprep.subr.bf16.mxu0 %v572
  %830 = vmatpush1.bf16.msra.mxu0 %v571
  %831 = vmatprep.subr.bf16.mxu0 %v578
  %832 = vmatpush1.bf16.msra.mxu0 %v577
  %833 = vmatprep.subr.bf16.mxu0 %v584
  %834 = vmatpush1.bf16.msra.mxu0 %v583
  %835 = vmatprep.subr.bf16.mxu0 %v590
  %836 = vmatpush1.bf16.msra.mxu0 %v589
  %837 = vmatprep.subr.bf16.mxu0 %v596
  %838 = vmatpush1.bf16.msra.mxu0 %v595
  %839 = vmatprep.subr.bf16.mxu0 %v602
  %840 = vmatpush1.bf16.msra.mxu0 %v601
  %841 = vmatprep.subr.bf16.mxu0 %v608
  %842 = vmatpush1.bf16.msra.mxu0 %v607
  %843 = vmatprep.subr.bf16.mxu0 %v614
  %844 = vmatpush1.bf16.msra.mxu0 %v613
  %845 = vmatprep.subr.bf16.mxu0 %v620
  %846 = vmatpush1.bf16.msra.mxu0 %v619
  %847 = vmatprep.subr.bf16.mxu0 %v626
  %848 = vmatpush1.bf16.msra.mxu0 %v625
  %849 = vmatprep.subr.bf16.mxu0 %v632
  %850 = vmatpush1.bf16.msra.mxu0 %v631
  %851 = vmatprep.subr.bf16.mxu0 %v638
  %852 = vmatpush1.bf16.msra.mxu0 %v637
  %853 = vmatprep.mubr.bf16.mxu0 %v126
  %854 = vmatmul.mubr.bf16.gmra.mrb[0].mxu0 %v125
  %v855 = vpop.f32.mrb[0].mxu0
  %v856 = vadd.f32 %v244, %v855
  %v857 = vpop.f32.mrb[0].mxu0
  %v858 = vadd.f32 %v248, %v857
  %v859 = vpop.f32.mrb[0].mxu0
  %v860 = vadd.f32 %v244, %v859
  %v861 = vpop.f32.mrb[0].mxu0
  %v862 = vadd.f32 %v248, %v861
  %863 = vdwg.mxu0
  %v864 = vpack.c.bf16 %v774, %v770
  %v865 = vpack.c.bf16 %v776, %v772
  %v866 = vpack.c.bf16 %v817, %v813
  %v867 = vpack.c.bf16 %v819, %v815
  %v868 = vpack.c.bf16 %v860, %v856
  %v869 = vpack.c.bf16 %v862, %v858
  %v876 = vunpack.c.l.b16 %v864
  %v877 = vunpack.c.l.b16 %v865
  %v878 = vunpack.c.l.b16 %v866
  %v879 = vunpack.c.l.b16 %v867
  %v880 = vunpack.c.l.b16 %v868
  %v881 = vunpack.c.l.b16 %v869
  %v882 = vunpack.c.h.b16 %v864
  %v883 = vunpack.c.h.b16 %v865
  %v884 = vunpack.c.h.b16 %v866
  %v885 = vunpack.c.h.b16 %v867
  %v886 = vunpack.c.h.b16 %v868
  %v887 = vunpack.c.h.b16 %v869
  %v888 = vpack.c.b16 %v877, %v876
  %v889 = vpack.c.b16 %v879, %v878
  %v890 = vpack.c.b16 %v881, %v880
  %v891 = vpack.c.b16 %v883, %v882
  %v892 = vpack.c.b16 %v885, %v884
  %v893 = vpack.c.b16 %v887, %v886
  %900 = vst [vmem:[%s5] sm:$0xff] %v888
  %901 = vst [vmem:[%s5 + $0x8] sm:$0xff] %v889
  %902 = vst [vmem:[%s5 + $0x10] sm:$0xff] %v890
  %903 = vst [vmem:[%s5 + $0x18] sm:$0xff] %v891
  %904 = vst [vmem:[%s5 + $0x20] sm:$0xff] %v892
  %905 = vst [vmem:[%s5 + $0x28] sm:$0xff] %v893
  // Predicated region
  $region22: #{speech_model_forward.27} parent=0 // pred_check
    _
  $region23: #{speech_model_forward.27} parent=0 // pred_check_branch
    %907 = sbr.rel (0) target = $region25
  $region24: #{speech_model_forward.27} parent=0 // pred_region
    _
  $region25: #{speech_model_forward.27} parent=0 // pred_fallthru
    _
  // Predicated region
  $region26: #{speech_model_forward.27} parent=0 // pred_check
    _
  $region27: #{speech_model_forward.27} parent=0 // pred_check_branch
    %909 = sbr.rel (0) target = $region29
  $region28: #{speech_model_forward.27} parent=0 // pred_region
    _
  $region29: #{speech_model_forward.27} parent=0 // pred_fallthru
    _

</llo_original>
